<compile_context>
chip_gen: v5e
topology: v5e:2x2
jax: 0.10.0
libtpu: 0.0.40
codegen_flags: <defaults>
</compile_context>

<pallas_src>
import functools
import math

import jax
import jax.numpy as jnp
from jax import lax
from jax.experimental import pallas as pl
from jax.experimental.pallas import tpu as pltpu


_MXU_DTYPE = jnp.bfloat16  # matmul operand dtype (accumulation stays f32)

# Scoped VMEM budget: generous on v5e/v6e (128 MiB physical), conservative on
# v7x (64 MiB physical).
try:
    _VMEM_CAP = int(getattr(pltpu.get_tpu_info(), "vmem_capacity_bytes",
                            64 * 1024 * 1024))
except Exception:  # pragma: no cover - fallback if hw query unavailable
    _VMEM_CAP = 64 * 1024 * 1024
_VMEM_LIMIT = int(min(96 * 1024 * 1024, (_VMEM_CAP * 3) // 4))


def _round_up(x, m):
    return ((x + m - 1) // m) * m


def _pad2d(a, rows, cols):
    r, c = a.shape
    if r == rows and c == cols:
        return a
    return jnp.pad(a, ((0, rows - r), (0, cols - c)))


# ----------------------------- tiled linear -----------------------------

def _linear_kernel(x_ref, w_ref, b_ref, o_ref, acc_ref):
    @pl.when(pl.program_id(2) == 0)
    def _():
        acc_ref[...] = jnp.zeros_like(acc_ref)

    acc_ref[...] += jnp.dot(x_ref[...].astype(_MXU_DTYPE),
                            w_ref[...].astype(_MXU_DTYPE),
                            preferred_element_type=jnp.float32)

    @pl.when(pl.program_id(2) == pl.num_programs(2) - 1)
    def _():
        o_ref[...] = (acc_ref[...] + b_ref[...]).astype(o_ref.dtype)


def linear(x2d, w, b):
    """x2d: (M, K) f32, w: (K, N) bf16/f32, b: (N,) f32 -> (M, N) f32."""
    M, K = x2d.shape
    N = w.shape[1]
    tm = min(512, _round_up(M, 8))
    tn = N if N <= 512 else 512
    tk = K if K <= 1024 else 1024
    Mp, Np, Kp = _round_up(M, tm), _round_up(N, tn), _round_up(K, tk)

    xp = _pad2d(x2d, Mp, Kp)                 # no-op at the shapes used here
    wp = _pad2d(w, Kp, Np)
    bp = _pad2d(b.reshape(1, N), 1, Np)

    out = pl.pallas_call(
        _linear_kernel,
        out_shape=jax.ShapeDtypeStruct((Mp, Np), jnp.float32),
        grid=(Mp // tm, Np // tn, Kp // tk),
        in_specs=[
            pl.BlockSpec((tm, tk), lambda i, j, k: (i, k)),
            pl.BlockSpec((tk, tn), lambda i, j, k: (k, j)),
            pl.BlockSpec((1, tn), lambda i, j, k: (0, j)),
        ],
        out_specs=pl.BlockSpec((tm, tn), lambda i, j, k: (i, j)),
        scratch_shapes=[pltpu.VMEM((tm, tn), jnp.float32)],
        compiler_params=pltpu.CompilerParams(
            dimension_semantics=("parallel", "parallel", "arbitrary"),
            vmem_limit_bytes=_VMEM_LIMIT),
    )(xp, wp, bp)
    if Mp != M or Np != N:
        out = out[:M, :N]
    return out


# ------------------ output-projection + residual + LayerNorm ------------------

def _out_proj_add_ln_kernel(a_ref, w_ref, b_ref, r_ref, g_ref, bb_ref, o_ref,
                            *, eps):
    y = jnp.dot(a_ref[...].astype(_MXU_DTYPE), w_ref[...].astype(_MXU_DTYPE),
                preferred_element_type=jnp.float32) + b_ref[...]
    x = r_ref[...] + y
    mean = jnp.mean(x, axis=-1, keepdims=True)
    xc = x - mean
    var = jnp.mean(xc * xc, axis=-1, keepdims=True)
    o_ref[...] = (xc * lax.rsqrt(var + eps) * g_ref[...]
                  + bb_ref[...]).astype(o_ref.dtype)


def out_proj_add_ln(attn, w, b, residual, gamma, beta, eps=1e-5):
    """LayerNorm(residual + attn @ w + b), fused into one kernel."""
    B, S, D = residual.shape
    M = B * S
    tm = min(512, _round_up(M, 8))
    Mp = _round_up(M, tm)
    a2 = _pad2d(attn.reshape(M, D), Mp, D)
    r2 = _pad2d(residual.reshape(M, D), Mp, D)

    out = pl.pallas_call(
        functools.partial(_out_proj_add_ln_kernel, eps=eps),
        out_shape=jax.ShapeDtypeStruct((Mp, D), jnp.float32),
        grid=(Mp // tm,),
        in_specs=[
            pl.BlockSpec((tm, D), lambda i: (i, 0)),
            pl.BlockSpec((D, D), lambda i: (0, 0)),
            pl.BlockSpec((1, D), lambda i: (0, 0)),
            pl.BlockSpec((tm, D), lambda i: (i, 0)),
            pl.BlockSpec((1, D), lambda i: (0, 0)),
            pl.BlockSpec((1, D), lambda i: (0, 0)),
        ],
        out_specs=pl.BlockSpec((tm, D), lambda i: (i, 0)),
        compiler_params=pltpu.CompilerParams(
            dimension_semantics=("parallel",),
            vmem_limit_bytes=_VMEM_LIMIT),
    )(a2, w, b.reshape(1, D), r2, gamma.reshape(1, D), beta.reshape(1, D))
    if Mp != M:
        out = out[:M]
    return out.reshape(B, S, D)


# ---------------- fused FFN (w1 + relu + w2) + residual + LayerNorm ----------------

def _ffn_add_ln_kernel(x_ref, w1_ref, b1_ref, w2_ref, b2_ref, g_ref, bb_ref,
                       o_ref, acc_ref, *, eps):
    @pl.when(pl.program_id(1) == 0)
    def _():
        acc_ref[...] = jnp.zeros_like(acc_ref)

    h = jnp.dot(x_ref[...].astype(_MXU_DTYPE), w1_ref[...].astype(_MXU_DTYPE),
                preferred_element_type=jnp.float32)
    h = jnp.maximum(h + b1_ref[...], 0.0)
    acc_ref[...] += jnp.dot(h.astype(_MXU_DTYPE), w2_ref[...].astype(_MXU_DTYPE),
                            preferred_element_type=jnp.float32)

    @pl.when(pl.program_id(1) == pl.num_programs(1) - 1)
    def _():
        x = x_ref[...] + acc_ref[...] + b2_ref[...]       # residual = FFN input
        mean = jnp.mean(x, axis=-1, keepdims=True)
        xc = x - mean
        var = jnp.mean(xc * xc, axis=-1, keepdims=True)
        o_ref[...] = (xc * lax.rsqrt(var + eps) * g_ref[...]
                      + bb_ref[...]).astype(o_ref.dtype)


def ffn_add_ln(p, x, gamma, beta, eps=1e-5):
    """LayerNorm(x + relu(x @ w1 + b1) @ w2 + b2), d_ff swept by an 'arbitrary' axis."""
    B, S, D = x.shape
    M = B * S
    F = p["w1"].shape[1]
    tm = min(512, _round_up(M, 8))
    tf = F if F <= 512 else 512
    Mp, Fp = _round_up(M, tm), _round_up(F, tf)

    x2 = _pad2d(x.reshape(M, D), Mp, D)
    w1p = _pad2d(p["w1"], D, Fp)
    b1p = _pad2d(p["b1"].reshape(1, F), 1, Fp)
    w2p = _pad2d(p["w2"], Fp, D)

    out = pl.pallas_call(
        functools.partial(_ffn_add_ln_kernel, eps=eps),
        out_shape=jax.ShapeDtypeStruct((Mp, D), jnp.float32),
        grid=(Mp // tm, Fp // tf),
        in_specs=[
            pl.BlockSpec((tm, D), lambda i, f: (i, 0)),
            pl.BlockSpec((D, tf), lambda i, f: (0, f)),
            pl.BlockSpec((1, tf), lambda i, f: (0, f)),
            pl.BlockSpec((tf, D), lambda i, f: (f, 0)),
            pl.BlockSpec((1, D), lambda i, f: (0, 0)),
            pl.BlockSpec((1, D), lambda i, f: (0, 0)),
            pl.BlockSpec((1, D), lambda i, f: (0, 0)),
        ],
        out_specs=pl.BlockSpec((tm, D), lambda i, f: (i, 0)),
        scratch_shapes=[pltpu.VMEM((tm, D), jnp.float32)],
        compiler_params=pltpu.CompilerParams(
            dimension_semantics=("parallel", "arbitrary"),
            vmem_limit_bytes=_VMEM_LIMIT),
    )(x2, w1p, b1p, w2p, p["b2"].reshape(1, D),
      gamma.reshape(1, D), beta.reshape(1, D))
    if Mp != M:
        out = out[:M]
    return out.reshape(B, S, D)


# ----------------------------- attention -----------------------------

def _attention_kernel(*refs, num_heads, d_model, scale, causal, use_keep,
                      q_start, k_start, v_start, fused_qkv):
    if fused_qkv:                       # self-attention: one (Sq, 3D) slab
        q_slab = refs[0][...]
        kv_slab = q_slab
        rest = refs[1:]
    else:                               # cross-attention: (Sq, D) q + (Sk, 2D) kv
        q_slab = refs[0][...]
        kv_slab = refs[1][...]
        rest = refs[2:]
    if use_keep:
        keep = rest[0][...]             # (1, Sk): 1.0 keep, 0.0 masked key
        o_ref = rest[1]
    else:
        keep = None
        o_ref = rest[0]

    Sq = q_slab.shape[0]
    Sk = kv_slab.shape[0]
    dk = d_model // num_heads
    neg = jnp.float32(-1000000000.0)    # masked_fill value from the reference

    if causal:
        row = lax.broadcasted_iota(jnp.int32, (Sq, Sk), 0)
        col = lax.broadcasted_iota(jnp.int32, (Sq, Sk), 1)
        allowed = col <= row

    outs = []
    for h in range(num_heads):          # static unroll over heads (lane slices)
        qh = (q_slab[:, q_start + h * dk: q_start + (h + 1) * dk]
              * scale).astype(_MXU_DTYPE)
        kh = kv_slab[:, k_start + h * dk: k_start + (h + 1) * dk].astype(_MXU_DTYPE)
        vh = kv_slab[:, v_start + h * dk: v_start + (h + 1) * dk].astype(_MXU_DTYPE)
        # Contract last dims directly (q @ k^T) without materializing kh.T.
        s = lax.dot_general(qh, kh, (((1,), (1,)), ((), ())),
                            preferred_element_type=jnp.float32)   # (Sq, Sk)
        if use_keep:
            s = jnp.where(keep == 0.0, neg, s)
        if causal:
            s = jnp.where(allowed, s, neg)
        s = s - jnp.max(s, axis=-1, keepdims=True)
        p = jnp.exp(s)
        p = p / jnp.sum(p, axis=-1, keepdims=True)   # exact divide (no approx recip)
        outs.append(jnp.dot(p.astype(_MXU_DTYPE), vh,
                            preferred_element_type=jnp.float32))
    # One full-width (Sq, D) store instead of num_heads masked lane-slice stores.
    o_ref[...] = jnp.concatenate(outs, axis=-1).astype(o_ref.dtype)


def self_attention(qkv, key_keep, num_heads, d_model, *, causal):
    """qkv: (B, S, 3D) fused projection slab read directly (no JAX slicing);
    key_keep: (B, 1, S) float or None; causal mask built in-kernel."""
    B, S, W = qkv.shape
    D = d_model
    scale = 1.0 / math.sqrt(D // num_heads)
    use_keep = key_keep is not None
    in_specs = [pl.BlockSpec((None, S, W), lambda b: (b, 0, 0))]
    args = [qkv]
    if use_keep:
        in_specs.append(pl.BlockSpec((None, 1, S), lambda b: (b, 0, 0)))
        args.append(key_keep)
    return pl.pallas_call(
        functools.partial(_attention_kernel, num_heads=num_heads, d_model=D,
                          scale=scale, causal=causal, use_keep=use_keep,
                          q_start=0, k_start=D, v_start=2 * D, fused_qkv=True),
        out_shape=jax.ShapeDtypeStruct((B, S, D), jnp.float32),
        grid=(B,),
        in_specs=in_specs,
        out_specs=pl.BlockSpec((None, S, D), lambda b: (b, 0, 0)),
        compiler_params=pltpu.CompilerParams(
            dimension_semantics=("parallel",),
            vmem_limit_bytes=_VMEM_LIMIT),
    )(*args)


def cross_attention(q, kv, key_keep, num_heads, d_model):
    """q: (B, T, D); kv: (B, S, 2D) fused K/V slab; key_keep: (B, 1, S)."""
    B, T, D = q.shape
    S = kv.shape[1]
    scale = 1.0 / math.sqrt(D // num_heads)
    use_keep = key_keep is not None
    in_specs = [
        pl.BlockSpec((None, T, D), lambda b: (b, 0, 0)),
        pl.BlockSpec((None, S, 2 * D), lambda b: (b, 0, 0)),
    ]
    args = [q, kv]
    if use_keep:
        in_specs.append(pl.BlockSpec((None, 1, S), lambda b: (b, 0, 0)))
        args.append(key_keep)
    return pl.pallas_call(
        functools.partial(_attention_kernel, num_heads=num_heads, d_model=D,
                          scale=scale, causal=False, use_keep=use_keep,
                          q_start=0, k_start=0, v_start=D, fused_qkv=False),
        out_shape=jax.ShapeDtypeStruct((B, T, D), jnp.float32),
        grid=(B,),
        in_specs=in_specs,
        out_specs=pl.BlockSpec((None, T, D), lambda b: (b, 0, 0)),
        compiler_params=pltpu.CompilerParams(
            dimension_semantics=("parallel",),
            vmem_limit_bytes=_VMEM_LIMIT),
    )(*args)


# ----------------------------- layers (plain JAX glue) -----------------------------

def mha_self_block(p, x, key_keep, num_heads, *, causal, ln_g, ln_b):
    """Self-attention sublayer: fused QKV proj -> attention -> (out-proj + residual + LN)."""
    B, S, D = x.shape
    qkv = linear(x.reshape(B * S, D), p["wqkv"], p["bqkv"]).reshape(B, S, 3 * D)
    attn = self_attention(qkv, key_keep, num_heads, D, causal=causal)
    return out_proj_add_ln(attn, p["wo"], p["bo"], x, ln_g, ln_b)


def mha_cross_block(p, x, enc_out, key_keep, num_heads, *, ln_g, ln_b):
    """Cross-attention sublayer: Q proj + fused KV proj -> attention -> (out-proj + residual + LN)."""
    B, T, D = x.shape
    S = enc_out.shape[1]
    q = linear(x.reshape(B * T, D), p["wq"], p["bq"]).reshape(B, T, D)
    kv = linear(enc_out.reshape(B * S, D), p["wkv"], p["bkv"]).reshape(B, S, 2 * D)
    attn = cross_attention(q, kv, key_keep, num_heads, D)
    return out_proj_add_ln(attn, p["wo"], p["bo"], x, ln_g, ln_b)


def encoder_layer(p, x, key_keep, num_heads):
    # TODO(synk): dropout layers omitted (eval-mode identity)
    x = mha_self_block(p["self_attn"], x, key_keep, num_heads, causal=False,
                       ln_g=p["ln1_g"], ln_b=p["ln1_b"])
    x = ffn_add_ln(p["ffn"], x, p["ln2_g"], p["ln2_b"])
    return x


def decoder_layer(p, x, enc_out, key_keep, num_heads):
    x = mha_self_block(p["self_attn"], x, None, num_heads, causal=True,
                       ln_g=p["ln1_g"], ln_b=p["ln1_b"])
    x = mha_cross_block(p["cross_attn"], x, enc_out, key_keep, num_heads,
                        ln_g=p["ln2_g"], ln_b=p["ln2_b"])
    x = ffn_add_ln(p["ffn"], x, p["ln3_g"], p["ln3_b"])
    return x


def positional_encoding(max_len, d_model):
    position = jnp.arange(max_len, dtype=jnp.float32)[:, None]
    div_term = jnp.exp(jnp.arange(0, d_model, 2, dtype=jnp.float32)
                       * (-math.log(10000.0) / d_model))
    pe = jnp.zeros((max_len, d_model), jnp.float32)
    pe = pe.at[:, 0::2].set(jnp.sin(position * div_term))
    pe = pe.at[:, 1::2].set(jnp.cos(position * div_term))
    return pe[None]


def make_key_keep(src):
    """(B, 1, S) float key-keep vector (1 = real token, 0 = padding); the
    dense (Sq, Sk) mask is never materialized in HBM."""
    return (src != 0).astype(jnp.float32)[:, None, :]


def friday_transformer(params, src, trg, num_heads, tgt_vocab):
    B, S = src.shape
    T = trg.shape[1]
    key_keep = make_key_keep(src)

    # Encoder
    x = params["enc_embed"][src] + params["pe"][:, :S, :]
    for p in params["enc_layers"]:
        x = encoder_layer(p, x, key_keep, num_heads)
    enc_out = x

    # Decoder
    y = params["dec_embed"][trg] + params["pe"][:, :T, :]
    for p in params["dec_layers"]:
        y = decoder_layer(p, y, enc_out, key_keep, num_heads)

    # fc_out: weights pre-padded to a lane-dense multiple of 128 at init.
    logits = linear(y.reshape(B * T, -1), params["fc_out_w"], params["fc_out_b"])
    return logits[:, :tgt_vocab].reshape(B, T, tgt_vocab)


# ----------------------------- parameter init -----------------------------

def _linear_params(key, d_in, d_out):
    kw, kb = jax.random.split(key)
    bound = 1.0 / math.sqrt(d_in)
    w = jax.random.uniform(kw, (d_in, d_out), jnp.float32, -bound, bound)
    b = jax.random.uniform(kb, (d_out,), jnp.float32, -bound, bound)
    return w, b


def _mha_params(key, d_model):
    ks = jax.random.split(key, 4)
    (wq, bq), (wk, bk), (wv, bv), (wo, bo) = [
        _linear_params(k, d_model, d_model) for k in ks]
    cast = lambda w: w.astype(_MXU_DTYPE)      # weights stored bf16 (halves DMA)
    return {
        "wq": cast(wq), "bq": bq,
        "wo": cast(wo), "bo": bo,
        # pre-fused projections built once at init (not per forward call)
        "wqkv": cast(jnp.concatenate([wq, wk, wv], axis=1)),
        "bqkv": jnp.concatenate([bq, bk, bv]),
        "wkv": cast(jnp.concatenate([wk, wv], axis=1)),
        "bkv": jnp.concatenate([bk, bv]),
    }


def _ffn_params(key, d_model, d_ff):
    k1, k2 = jax.random.split(key)
    w1, b1 = _linear_params(k1, d_model, d_ff)
    w2, b2 = _linear_params(k2, d_ff, d_model)
    return {"w1": w1.astype(_MXU_DTYPE), "b1": b1,
            "w2": w2.astype(_MXU_DTYPE), "b2": b2}


def init_params(key, d_model, src_vocab, tgt_vocab, num_layers, d_ff, max_len=512):
    keys = jax.random.split(key, 3 + 2 * num_layers)
    params = {
        "enc_embed": 0.02 * jax.random.normal(keys[0], (src_vocab, d_model), jnp.float32),
        "dec_embed": 0.02 * jax.random.normal(keys[1], (tgt_vocab, d_model), jnp.float32),
        "pe": positional_encoding(max_len, d_model),
    }
    enc_layers = []
    for i in range(num_layers):
        k1, k2 = jax.random.split(keys[2 + i])
        enc_layers.append({
            "self_attn": _mha_params(k1, d_model),
            "ffn": _ffn_params(k2, d_model, d_ff),
            "ln1_g": jnp.ones(d_model), "ln1_b": jnp.zeros(d_model),
            "ln2_g": jnp.ones(d_model), "ln2_b": jnp.zeros(d_model),
        })
    dec_layers = []
    for i in range(num_layers):
        k1, k2, k3 = jax.random.split(keys[2 + num_layers + i], 3)
        dec_layers.append({
            "self_attn": _mha_params(k1, d_model),
            "cross_attn": _mha_params(k2, d_model),
            "ffn": _ffn_params(k3, d_model, d_ff),
            "ln1_g": jnp.ones(d_model), "ln1_b": jnp.zeros(d_model),
            "ln2_g": jnp.ones(d_model), "ln2_b": jnp.zeros(d_model),
            "ln3_g": jnp.ones(d_model), "ln3_b": jnp.zeros(d_model),
        })
    wfc, bfc = _linear_params(keys[2 + 2 * num_layers], d_model, tgt_vocab)
    vocab_pad = _round_up(tgt_vocab, 128)      # lane-dense fc_out, padded at init
    params["enc_layers"] = enc_layers
    params["dec_layers"] = dec_layers
    params["fc_out_w"] = _pad2d(wfc, d_model, vocab_pad).astype(_MXU_DTYPE)
    params["fc_out_b"] = jnp.pad(bfc, (0, vocab_pad - tgt_vocab))
    return params


# ----------------------------- main -----------------------------

if __name__ == "__main__":
    B, S_src, S_trg = 2, 8, 8
    embed_dim, src_vocab, tgt_vocab = 32, 50, 60
    num_layers, d_ff, n_heads = 2, 64, 8

    root = jax.random.PRNGKey(0)
    kp, ks, kt = jax.random.split(root, 3)

    params = init_params(kp, embed_dim, src_vocab, tgt_vocab, num_layers, d_ff)

    src = jax.random.randint(ks, (B, S_src), 1, src_vocab, dtype=jnp.int32)
    src = src.at[0, -1].set(0)  # exercise the src padding mask
    trg = jax.random.randint(kt, (B, S_trg), 1, tgt_vocab, dtype=jnp.int32)

    fwd = jax.jit(functools.partial(friday_transformer, num_heads=n_heads,
                                    tgt_vocab=tgt_vocab))
    out = fwd(params, src, trg)                  # (B, S_trg, tgt_vocab)
    jax.block_until_ready(out)
    assert out.shape == (B, S_trg, tgt_vocab)
    assert bool(jnp.all(jnp.isfinite(out)))
    print("KERNEL_OK")
</pallas_src>

<mosaic_0001>
module attributes {stable_mosaic.version = 11 : i64} {
  func.func @_out_proj_add_ln_kernel(%arg0: i32, %arg1: memref<16x32xf32, #tpu.memory_space<vmem>>, %arg2: memref<32x32xbf16, #tpu.memory_space<vmem>>, %arg3: memref<1x32xf32, #tpu.memory_space<vmem>>, %arg4: memref<16x32xf32, #tpu.memory_space<vmem>>, %arg5: memref<1x32xf32, #tpu.memory_space<vmem>>, %arg6: memref<1x32xf32, #tpu.memory_space<vmem>>, %arg7: memref<16x32xf32, #tpu.memory_space<vmem>>) attributes {dimension_semantics = [#tpu.dimension_semantics<parallel>], iteration_bounds = array<i64: 1>, scalar_prefetch = 0 : i64, scratch_operands = 0 : i64, tpu.core_type = #tpu.core_type<tc>, window_params = [{transform_indices = @transform_0, window_bounds = array<i64: 16, 32>}, {pipeline_mode = #tpu.pipeline_mode<synchronous>, transform_indices = @transform_1, window_bounds = array<i64: 32, 32>}, {pipeline_mode = #tpu.pipeline_mode<synchronous>, transform_indices = @transform_2, window_bounds = array<i64: 1, 32>}, {transform_indices = @transform_3, window_bounds = array<i64: 16, 32>}, {pipeline_mode = #tpu.pipeline_mode<synchronous>, transform_indices = @transform_4, window_bounds = array<i64: 1, 32>}, {pipeline_mode = #tpu.pipeline_mode<synchronous>, transform_indices = @transform_5, window_bounds = array<i64: 1, 32>}, {transform_indices = @transform_6, window_bounds = array<i64: 16, 32>}]} {
    %c0 = arith.constant 0 : index
    %c0_0 = arith.constant 0 : index
    %0 = vector.load %arg1[%c0, %c0_0] : memref<16x32xf32, #tpu.memory_space<vmem>>, vector<16x32xf32>
    %1 = arith.truncf %0 : vector<16x32xf32> to vector<16x32xbf16>
    %c0_1 = arith.constant 0 : index
    %c0_2 = arith.constant 0 : index
    %2 = vector.load %arg2[%c0_1, %c0_2] : memref<32x32xbf16, #tpu.memory_space<vmem>>, vector<32x32xbf16>
    %cst = arith.constant dense<0.000000e+00> : vector<16x32xf32>
    %3 = tpu.matmul %1, %2, %cst {dimension_numbers = #tpu.dot_dimension_numbers<[1], [0], [0], [1], [0, 0, 1, 1], [], []>} : vector<16x32xbf16>, vector<32x32xbf16>, vector<16x32xf32> -> vector<16x32xf32>
    %c0_3 = arith.constant 0 : index
    %c0_4 = arith.constant 0 : index
    %4 = vector.load %arg3[%c0_3, %c0_4] : memref<1x32xf32, #tpu.memory_space<vmem>>, vector<1x32xf32>
    %5 = vector.broadcast %4 : vector<1x32xf32> to vector<16x32xf32>
    %6 = arith.addf %3, %5 : vector<16x32xf32>
    %c0_5 = arith.constant 0 : index
    %c0_6 = arith.constant 0 : index
    %7 = vector.load %arg4[%c0_5, %c0_6] : memref<16x32xf32, #tpu.memory_space<vmem>>, vector<16x32xf32>
    %8 = arith.addf %7, %6 : vector<16x32xf32>
    %cst_7 = arith.constant dense<0.000000e+00> : vector<16xf32>
    %9 = vector.multi_reduction <add>, %8, %cst_7 [1] : vector<16x32xf32> to vector<16xf32>
    %10 = vector.shape_cast %9 : vector<16xf32> to vector<16x1xf32>
    %cst_8 = arith.constant 3.200000e+01 : f32
    %11 = vector.broadcast %cst_8 : f32 to vector<16x1xf32>
    %12 = arith.divf %10, %11 : vector<16x1xf32>
    %13 = vector.broadcast %12 : vector<16x1xf32> to vector<16x32xf32>
    %14 = arith.subf %8, %13 : vector<16x32xf32>
    %15 = arith.mulf %14, %14 : vector<16x32xf32>
    %cst_9 = arith.constant dense<0.000000e+00> : vector<16xf32>
    %16 = vector.multi_reduction <add>, %15, %cst_9 [1] : vector<16x32xf32> to vector<16xf32>
    %17 = vector.shape_cast %16 : vector<16xf32> to vector<16x1xf32>
    %cst_10 = arith.constant 3.200000e+01 : f32
    %18 = vector.broadcast %cst_10 : f32 to vector<16x1xf32>
    %19 = arith.divf %17, %18 : vector<16x1xf32>
    %cst_11 = arith.constant 9.99999974E-6 : f32
    %20 = vector.broadcast %cst_11 : f32 to vector<16x1xf32>
    %21 = arith.addf %19, %20 : vector<16x1xf32>
    %22 = math.rsqrt %21 : vector<16x1xf32>
    %23 = vector.broadcast %22 : vector<16x1xf32> to vector<16x32xf32>
    %24 = arith.mulf %14, %23 : vector<16x32xf32>
    %c0_12 = arith.constant 0 : index
    %c0_13 = arith.constant 0 : index
    %25 = vector.load %arg5[%c0_12, %c0_13] : memref<1x32xf32, #tpu.memory_space<vmem>>, vector<1x32xf32>
    %26 = vector.broadcast %25 : vector<1x32xf32> to vector<16x32xf32>
    %27 = arith.mulf %24, %26 : vector<16x32xf32>
    %c0_14 = arith.constant 0 : index
    %c0_15 = arith.constant 0 : index
    %28 = vector.load %arg6[%c0_14, %c0_15] : memref<1x32xf32, #tpu.memory_space<vmem>>, vector<1x32xf32>
    %29 = vector.broadcast %28 : vector<1x32xf32> to vector<16x32xf32>
    %30 = arith.addf %27, %29 : vector<16x32xf32>
    %c0_16 = arith.constant 0 : index
    %c0_17 = arith.constant 0 : index
    %31 = vector.load %arg7[%c0_16, %c0_17] : memref<16x32xf32, #tpu.memory_space<vmem>>, vector<16x32xf32>
    tpu.vector_store %arg7[%c0_16, %c0_17], %30 {strides = array<i32>} : memref<16x32xf32, #tpu.memory_space<vmem>>, vector<16x32xf32>,
    return
  }
  func.func @transform_0(%arg0: i32) -> (i32, i32) {
    %c0_i32 = arith.constant 0 : i32
    %c0_i32_0 = arith.constant 0 : i32
    return %arg0, %c0_i32 : i32, i32
  }
  func.func @transform_1(%arg0: i32) -> (i32, i32) {
    %c0_i32 = arith.constant 0 : i32
    %c0_i32_0 = arith.constant 0 : i32
    %c0_i32_1 = arith.constant 0 : i32
    return %c0_i32, %c0_i32_0 : i32, i32
  }
  func.func @transform_2(%arg0: i32) -> (i32, i32) {
    %c0_i32 = arith.constant 0 : i32
    %c0_i32_0 = arith.constant 0 : i32
    %c0_i32_1 = arith.constant 0 : i32
    return %c0_i32, %c0_i32_0 : i32, i32
  }
  func.func @transform_3(%arg0: i32) -> (i32, i32) {
    %c0_i32 = arith.constant 0 : i32
    %c0_i32_0 = arith.constant 0 : i32
    return %arg0, %c0_i32 : i32, i32
  }
  func.func @transform_4(%arg0: i32) -> (i32, i32) {
    %c0_i32 = arith.constant 0 : i32
    %c0_i32_0 = arith.constant 0 : i32
    %c0_i32_1 = arith.constant 0 : i32
    return %c0_i32, %c0_i32_0 : i32, i32
  }
  func.func @transform_5(%arg0: i32) -> (i32, i32) {
    %c0_i32 = arith.constant 0 : i32
    %c0_i32_0 = arith.constant 0 : i32
    %c0_i32_1 = arith.constant 0 : i32
    return %c0_i32, %c0_i32_0 : i32, i32
  }
  func.func @transform_6(%arg0: i32) -> (i32, i32) {
    %c0_i32 = arith.constant 0 : i32
    %c0_i32_0 = arith.constant 0 : i32
    return %arg0, %c0_i32 : i32, i32
  }
}

module attributes {stable_mosaic.version = 11 : i64} {
  func.func @_linear_kernel(%arg0: i32, %arg1: i32, %arg2: i32, %arg3: memref<16x32xf32, #tpu.memory_space<vmem>>, %arg4: memref<32x96xbf16, #tpu.memory_space<vmem>>, %arg5: memref<1x96xf32, #tpu.memory_space<vmem>>, %arg6: memref<16x96xf32, #tpu.memory_space<vmem>>, %arg7: memref<16x96xf32, #tpu.memory_space<vmem>>) attributes {dimension_semantics = [#tpu.dimension_semantics<parallel>, #tpu.dimension_semantics<parallel>, #tpu.dimension_semantics<arbitrary>], iteration_bounds = array<i64: 1, 1, 1>, scalar_prefetch = 0 : i64, scratch_operands = 1 : i64, tpu.core_type = #tpu.core_type<tc>, window_params = [{transform_indices = @transform_0, window_bounds = array<i64: 16, 32>}, {transform_indices = @transform_1, window_bounds = array<i64: 32, 96>}, {transform_indices = @transform_2, window_bounds = array<i64: 1, 96>}, {transform_indices = @transform_3, window_bounds = array<i64: 16, 96>}]} {
    %c0_i32 = arith.constant 0 : i32
    %0 = arith.cmpi eq, %arg2, %c0_i32 : i32
    %1 = arith.extui %0 : i1 to i32
    %c0_i32_0 = arith.constant 0 : i32
    %2 = arith.cmpi ne, %1, %c0_i32_0 : i32
    scf.if %2 {
      %cst_10 = arith.constant 0.000000e+00 : f32
      %13 = vector.broadcast %cst_10 : f32 to vector<16x96xf32>
      %c0_11 = arith.constant 0 : index
      %c0_12 = arith.constant 0 : index
      %14 = vector.load %arg7[%c0_11, %c0_12] : memref<16x96xf32, #tpu.memory_space<vmem>>, vector<16x96xf32>
      tpu.vector_store %arg7[%c0_11, %c0_12], %13 {strides = array<i32>} : memref<16x96xf32, #tpu.memory_space<vmem>>, vector<16x96xf32>,
    } else {
    }
    %c0 = arith.constant 0 : index
    %c0_1 = arith.constant 0 : index
    %3 = vector.load %arg7[%c0, %c0_1] : memref<16x96xf32, #tpu.memory_space<vmem>>, vector<16x96xf32>
    %c0_2 = arith.constant 0 : index
    %c0_3 = arith.constant 0 : index
    %4 = vector.load %arg3[%c0_2, %c0_3] : memref<16x32xf32, #tpu.memory_space<vmem>>, vector<16x32xf32>
    %5 = arith.truncf %4 : vector<16x32xf32> to vector<16x32xbf16>
    %c0_4 = arith.constant 0 : index
    %c0_5 = arith.constant 0 : index
    %6 = vector.load %arg4[%c0_4, %c0_5] : memref<32x96xbf16, #tpu.memory_space<vmem>>, vector<32x96xbf16>
    %cst = arith.constant dense<0.000000e+00> : vector<16x96xf32>
    %7 = tpu.matmul %5, %6, %cst {dimension_numbers = #tpu.dot_dimension_numbers<[1], [0], [0], [1], [0, 0, 1, 1], [], []>} : vector<16x32xbf16>, vector<32x96xbf16>, vector<16x96xf32> -> vector<16x96xf32>
    %8 = arith.addf %3, %7 : vector<16x96xf32>
    %c0_6 = arith.constant 0 : index
    %c0_7 = arith.constant 0 : index
    %9 = vector.load %arg7[%c0_6, %c0_7] : memref<16x96xf32, #tpu.memory_space<vmem>>, vector<16x96xf32>
    tpu.vector_store %arg7[%c0_6, %c0_7], %8 {strides = array<i32>} : memref<16x96xf32, #tpu.memory_space<vmem>>, vector<16x96xf32>,
    %c0_i32_8 = arith.constant 0 : i32
    %10 = arith.cmpi eq, %arg2, %c0_i32_8 : i32
    %11 = arith.extui %10 : i1 to i32
    %c0_i32_9 = arith.constant 0 : i32
    %12 = arith.cmpi ne, %11, %c0_i32_9 : i32
    scf.if %12 {
      %c0_10 = arith.constant 0 : index
      %c0_11 = arith.constant 0 : index
      %13 = vector.load %arg7[%c0_10, %c0_11] : memref<16x96xf32, #tpu.memory_space<vmem>>, vector<16x96xf32>
      %c0_12 = arith.constant 0 : index
      %c0_13 = arith.constant 0 : index
      %14 = vector.load %arg5[%c0_12, %c0_13] : memref<1x96xf32, #tpu.memory_space<vmem>>, vector<1x96xf32>
      %15 = vector.broadcast %14 : vector<1x96xf32> to vector<16x96xf32>
      %16 = arith.addf %13, %15 : vector<16x96xf32>
      %c0_14 = arith.constant 0 : index
      %c0_15 = arith.constant 0 : index
      %17 = vector.load %arg6[%c0_14, %c0_15] : memref<16x96xf32, #tpu.memory_space<vmem>>, vector<16x96xf32>
      tpu.vector_store %arg6[%c0_14, %c0_15], %16 {strides = array<i32>} : memref<16x96xf32, #tpu.memory_space<vmem>>, vector<16x96xf32>,
    } else {
    }
    return
  }
  func.func @transform_0(%arg0: i32, %arg1: i32, %arg2: i32) -> (i32, i32) {
    %c0_i32 = arith.constant 0 : i32
    return %arg0, %arg2 : i32, i32
  }
  func.func @transform_1(%arg0: i32, %arg1: i32, %arg2: i32) -> (i32, i32) {
    %c0_i32 = arith.constant 0 : i32
    return %arg2, %arg1 : i32, i32
  }
  func.func @transform_2(%arg0: i32, %arg1: i32, %arg2: i32) -> (i32, i32) {
    %c0_i32 = arith.constant 0 : i32
    %c0_i32_0 = arith.constant 0 : i32
    return %c0_i32, %arg1 : i32, i32
  }
  func.func @transform_3(%arg0: i32, %arg1: i32, %arg2: i32) -> (i32, i32) {
    %c0_i32 = arith.constant 0 : i32
    return %arg0, %arg1 : i32, i32
  }
}

module attributes {stable_mosaic.version = 11 : i64} {
  func.func @_attention_kernel(%arg0: i32, %arg1: memref<1x8x96xf32, #tpu.memory_space<vmem>>, %arg2: memref<1x1x8xf32, #tpu.memory_space<vmem>>, %arg3: memref<1x8x32xf32, #tpu.memory_space<vmem>>) attributes {dimension_semantics = [#tpu.dimension_semantics<parallel>], iteration_bounds = array<i64: 2>, scalar_prefetch = 0 : i64, scratch_operands = 0 : i64, tpu.core_type = #tpu.core_type<tc>, window_params = [{transform_indices = @transform_0, window_bounds = array<i64: 1, 8, 96>}, {transform_indices = @transform_1, window_bounds = array<i64: 1, 1, 8>}, {transform_indices = @transform_2, window_bounds = array<i64: 1, 8, 32>}]} {
    %c0 = arith.constant 0 : index
    %c0_0 = arith.constant 0 : index
    %c0_1 = arith.constant 0 : index
    %0 = vector.load %arg1[%c0, %c0_0, %c0_1] : memref<1x8x96xf32, #tpu.memory_space<vmem>>, vector<1x8x96xf32>
    %1 = vector.shape_cast %0 : vector<1x8x96xf32> to vector<8x96xf32>
    %c0_2 = arith.constant 0 : index
    %c0_3 = arith.constant 0 : index
    %c0_4 = arith.constant 0 : index
    %2 = vector.load %arg2[%c0_2, %c0_3, %c0_4] : memref<1x1x8xf32, #tpu.memory_space<vmem>>, vector<1x1x8xf32>
    %3 = vector.shape_cast %2 : vector<1x1x8xf32> to vector<1x8xf32>
    %4 = vector.extract_strided_slice %1 {offsets = [0, 0], sizes = [8, 4], strides = [1, 1]} : vector<8x96xf32> to vector<8x4xf32>
    %cst = arith.constant 5.000000e-01 : f32
    %5 = vector.broadcast %cst : f32 to vector<8x4xf32>
    %6 = arith.mulf %4, %5 : vector<8x4xf32>
    %7 = arith.truncf %6 : vector<8x4xf32> to vector<8x4xbf16>
    %8 = vector.extract_strided_slice %1 {offsets = [0, 32], sizes = [8, 4], strides = [1, 1]} : vector<8x96xf32> to vector<8x4xf32>
    %9 = arith.truncf %8 : vector<8x4xf32> to vector<8x4xbf16>
    %10 = vector.extract_strided_slice %1 {offsets = [0, 64], sizes = [8, 4], strides = [1, 1]} : vector<8x96xf32> to vector<8x4xf32>
    %11 = arith.truncf %10 : vector<8x4xf32> to vector<8x4xbf16>
    %cst_5 = arith.constant dense<0.000000e+00> : vector<8x8xf32>
    %12 = tpu.matmul %7, %9, %cst_5 {dimension_numbers = #tpu.dot_dimension_numbers<[1], [1], [0], [0], [0, 0, 1, 0], [], []>} : vector<8x4xbf16>, vector<8x4xbf16>, vector<8x8xf32> -> vector<8x8xf32>
    %cst_6 = arith.constant 0.000000e+00 : f32
    %13 = vector.broadcast %cst_6 : f32 to vector<1x8xf32>
    %14 = arith.cmpf oeq, %3, %13 : vector<1x8xf32>
    %cst_7 = arith.constant -1.000000e+09 : f32
    %15 = vector.shape_cast %14 : vector<1x8xi1> to vector<1x8xi1>
    %16 = vector.broadcast %15 : vector<1x8xi1> to vector<8x8xi1>
    %17 = vector.broadcast %cst_7 : f32 to vector<8x8xf32>
    %18 = arith.select %16, %17, %12 : vector<8x8xi1>, vector<8x8xf32>
    %cst_8 = arith.constant dense<0xFF800000> : vector<8xf32>
    %19 = vector.multi_reduction <maximumf>, %18, %cst_8 [1] : vector<8x8xf32> to vector<8xf32>
    %20 = vector.shape_cast %19 : vector<8xf32> to vector<8x1xf32>
    %21 = vector.broadcast %20 : vector<8x1xf32> to vector<8x8xf32>
    %22 = arith.subf %18, %21 : vector<8x8xf32>
    %23 = math.exp %22 : vector<8x8xf32>
    %cst_9 = arith.constant dense<0.000000e+00> : vector<8xf32>
    %24 = vector.multi_reduction <add>, %23, %cst_9 [1] : vector<8x8xf32> to vector<8xf32>
    %25 = vector.shape_cast %24 : vector<8xf32> to vector<8x1xf32>
    %26 = vector.broadcast %25 : vector<8x1xf32> to vector<8x8xf32>
    %27 = arith.divf %23, %26 : vector<8x8xf32>
    %28 = arith.truncf %27 : vector<8x8xf32> to vector<8x8xbf16>
    %cst_10 = arith.constant dense<0.000000e+00> : vector<8x4xf32>
    %29 = tpu.matmul %28, %11, %cst_10 {dimension_numbers = #tpu.dot_dimension_numbers<[1], [0], [0], [1], [0, 0, 1, 1], [], []>} : vector<8x8xbf16>, vector<8x4xbf16>, vector<8x4xf32> -> vector<8x4xf32>
    %30 = vector.extract_strided_slice %1 {offsets = [0, 4], sizes = [8, 4], strides = [1, 1]} : vector<8x96xf32> to vector<8x4xf32>
    %cst_11 = arith.constant 5.000000e-01 : f32
    %31 = vector.broadcast %cst_11 : f32 to vector<8x4xf32>
    %32 = arith.mulf %30, %31 : vector<8x4xf32>
    %33 = arith.truncf %32 : vector<8x4xf32> to vector<8x4xbf16>
    %34 = vector.extract_strided_slice %1 {offsets = [0, 36], sizes = [8, 4], strides = [1, 1]} : vector<8x96xf32> to vector<8x4xf32>
    %35 = arith.truncf %34 : vector<8x4xf32> to vector<8x4xbf16>
    %36 = vector.extract_strided_slice %1 {offsets = [0, 68], sizes = [8, 4], strides = [1, 1]} : vector<8x96xf32> to vector<8x4xf32>
    %37 = arith.truncf %36 : vector<8x4xf32> to vector<8x4xbf16>
    %cst_12 = arith.constant dense<0.000000e+00> : vector<8x8xf32>
    %38 = tpu.matmul %33, %35, %cst_12 {dimension_numbers = #tpu.dot_dimension_numbers<[1], [1], [0], [0], [0, 0, 1, 0], [], []>} : vector<8x4xbf16>, vector<8x4xbf16>, vector<8x8xf32> -> vector<8x8xf32>
    %cst_13 = arith.constant 0.000000e+00 : f32
    %39 = vector.broadcast %cst_13 : f32 to vector<1x8xf32>
    %40 = arith.cmpf oeq, %3, %39 : vector<1x8xf32>
    %cst_14 = arith.constant -1.000000e+09 : f32
    %41 = vector.shape_cast %40 : vector<1x8xi1> to vector<1x8xi1>
    %42 = vector.broadcast %41 : vector<1x8xi1> to vector<8x8xi1>
    %43 = vector.broadcast %cst_14 : f32 to vector<8x8xf32>
    %44 = arith.select %42, %43, %38 : vector<8x8xi1>, vector<8x8xf32>
    %cst_15 = arith.constant dense<0xFF800000> : vector<8xf32>
    %45 = vector.multi_reduction <maximumf>, %44, %cst_15 [1] : vector<8x8xf32> to vector<8xf32>
    %46 = vector.shape_cast %45 : vector<8xf32> to vector<8x1xf32>
    %47 = vector.broadcast %46 : vector<8x1xf32> to vector<8x8xf32>
    %48 = arith.subf %44, %47 : vector<8x8xf32>
    %49 = math.exp %48 : vector<8x8xf32>
    %cst_16 = arith.constant dense<0.000000e+00> : vector<8xf32>
    %50 = vector.multi_reduction <add>, %49, %cst_16 [1] : vector<8x8xf32> to vector<8xf32>
    %51 = vector.shape_cast %50 : vector<8xf32> to vector<8x1xf32>
    %52 = vector.broadcast %51 : vector<8x1xf32> to vector<8x8xf32>
    %53 = arith.divf %49, %52 : vector<8x8xf32>
    %54 = arith.truncf %53 : vector<8x8xf32> to vector<8x8xbf16>
    %cst_17 = arith.constant dense<0.000000e+00> : vector<8x4xf32>
    %55 = tpu.matmul %54, %37, %cst_17 {dimension_numbers = #tpu.dot_dimension_numbers<[1], [0], [0], [1], [0, 0, 1, 1], [], []>} : vector<8x8xbf16>, vector<8x4xbf16>, vector<8x4xf32> -> vector<8x4xf32>
    %56 = vector.extract_strided_slice %1 {offsets = [0, 8], sizes = [8, 4], strides = [1, 1]} : vector<8x96xf32> to vector<8x4xf32>
    %cst_18 = arith.constant 5.000000e-01 : f32
    %57 = vector.broadcast %cst_18 : f32 to vector<8x4xf32>
    %58 = arith.mulf %56, %57 : vector<8x4xf32>
    %59 = arith.truncf %58 : vector<8x4xf32> to vector<8x4xbf16>
    %60 = vector.extract_strided_slice %1 {offsets = [0, 40], sizes = [8, 4], strides = [1, 1]} : vector<8x96xf32> to vector<8x4xf32>
    %61 = arith.truncf %60 : vector<8x4xf32> to vector<8x4xbf16>
    %62 = vector.extract_strided_slice %1 {offsets = [0, 72], sizes = [8, 4], strides = [1, 1]} : vector<8x96xf32> to vector<8x4xf32>
    %63 = arith.truncf %62 : vector<8x4xf32> to vector<8x4xbf16>
    %cst_19 = arith.constant dense<0.000000e+00> : vector<8x8xf32>
    %64 = tpu.matmul %59, %61, %cst_19 {dimension_numbers = #tpu.dot_dimension_numbers<[1], [1], [0], [0], [0, 0, 1, 0], [], []>} : vector<8x4xbf16>, vector<8x4xbf16>, vector<8x8xf32> -> vector<8x8xf32>
    %cst_20 = arith.constant 0.000000e+00 : f32
    %65 = vector.broadcast %cst_20 : f32 to vector<1x8xf32>
    %66 = arith.cmpf oeq, %3, %65 : vector<1x8xf32>
    %cst_21 = arith.constant -1.000000e+09 : f32
    %67 = vector.shape_cast %66 : vector<1x8xi1> to vector<1x8xi1>
    %68 = vector.broadcast %67 : vector<1x8xi1> to vector<8x8xi1>
    %69 = vector.broadcast %cst_21 : f32 to vector<8x8xf32>
    %70 = arith.select %68, %69, %64 : vector<8x8xi1>, vector<8x8xf32>
    %cst_22 = arith.constant dense<0xFF800000> : vector<8xf32>
    %71 = vector.multi_reduction <maximumf>, %70, %cst_22 [1] : vector<8x8xf32> to vector<8xf32>
    %72 = vector.shape_cast %71 : vector<8xf32> to vector<8x1xf32>
    %73 = vector.broadcast %72 : vector<8x1xf32> to vector<8x8xf32>
    %74 = arith.subf %70, %73 : vector<8x8xf32>
    %75 = math.exp %74 : vector<8x8xf32>
    %cst_23 = arith.constant dense<0.000000e+00> : vector<8xf32>
    %76 = vector.multi_reduction <add>, %75, %cst_23 [1] : vector<8x8xf32> to vector<8xf32>
    %77 = vector.shape_cast %76 : vector<8xf32> to vector<8x1xf32>
    %78 = vector.broadcast %77 : vector<8x1xf32> to vector<8x8xf32>
    %79 = arith.divf %75, %78 : vector<8x8xf32>
    %80 = arith.truncf %79 : vector<8x8xf32> to vector<8x8xbf16>
    %cst_24 = arith.constant dense<0.000000e+00> : vector<8x4xf32>
    %81 = tpu.matmul %80, %63, %cst_24 {dimension_numbers = #tpu.dot_dimension_numbers<[1], [0], [0], [1], [0, 0, 1, 1], [], []>} : vector<8x8xbf16>, vector<8x4xbf16>, vector<8x4xf32> -> vector<8x4xf32>
    %82 = vector.extract_strided_slice %1 {offsets = [0, 12], sizes = [8, 4], strides = [1, 1]} : vector<8x96xf32> to vector<8x4xf32>
    %cst_25 = arith.constant 5.000000e-01 : f32
    %83 = vector.broadcast %cst_25 : f32 to vector<8x4xf32>
    %84 = arith.mulf %82, %83 : vector<8x4xf32>
    %85 = arith.truncf %84 : vector<8x4xf32> to vector<8x4xbf16>
    %86 = vector.extract_strided_slice %1 {offsets = [0, 44], sizes = [8, 4], strides = [1, 1]} : vector<8x96xf32> to vector<8x4xf32>
    %87 = arith.truncf %86 : vector<8x4xf32> to vector<8x4xbf16>
    %88 = vector.extract_strided_slice %1 {offsets = [0, 76], sizes = [8, 4], strides = [1, 1]} : vector<8x96xf32> to vector<8x4xf32>
    %89 = arith.truncf %88 : vector<8x4xf32> to vector<8x4xbf16>
    %cst_26 = arith.constant dense<0.000000e+00> : vector<8x8xf32>
    %90 = tpu.matmul %85, %87, %cst_26 {dimension_numbers = #tpu.dot_dimension_numbers<[1], [1], [0], [0], [0, 0, 1, 0], [], []>} : vector<8x4xbf16>, vector<8x4xbf16>, vector<8x8xf32> -> vector<8x8xf32>
    %cst_27 = arith.constant 0.000000e+00 : f32
    %91 = vector.broadcast %cst_27 : f32 to vector<1x8xf32>
    %92 = arith.cmpf oeq, %3, %91 : vector<1x8xf32>
    %cst_28 = arith.constant -1.000000e+09 : f32
    %93 = vector.shape_cast %92 : vector<1x8xi1> to vector<1x8xi1>
    %94 = vector.broadcast %93 : vector<1x8xi1> to vector<8x8xi1>
    %95 = vector.broadcast %cst_28 : f32 to vector<8x8xf32>
    %96 = arith.select %94, %95, %90 : vector<8x8xi1>, vector<8x8xf32>
    %cst_29 = arith.constant dense<0xFF800000> : vector<8xf32>
    %97 = vector.multi_reduction <maximumf>, %96, %cst_29 [1] : vector<8x8xf32> to vector<8xf32>
    %98 = vector.shape_cast %97 : vector<8xf32> to vector<8x1xf32>
    %99 = vector.broadcast %98 : vector<8x1xf32> to vector<8x8xf32>
    %100 = arith.subf %96, %99 : vector<8x8xf32>
    %101 = math.exp %100 : vector<8x8xf32>
    %cst_30 = arith.constant dense<0.000000e+00> : vector<8xf32>
    %102 = vector.multi_reduction <add>, %101, %cst_30 [1] : vector<8x8xf32> to vector<8xf32>
    %103 = vector.shape_cast %102 : vector<8xf32> to vector<8x1xf32>
    %104 = vector.broadcast %103 : vector<8x1xf32> to vector<8x8xf32>
    %105 = arith.divf %101, %104 : vector<8x8xf32>
    %106 = arith.truncf %105 : vector<8x8xf32> to vector<8x8xbf16>
    %cst_31 = arith.constant dense<0.000000e+00> : vector<8x4xf32>
    %107 = tpu.matmul %106, %89, %cst_31 {dimension_numbers = #tpu.dot_dimension_numbers<[1], [0], [0], [1], [0, 0, 1, 1], [], []>} : vector<8x8xbf16>, vector<8x4xbf16>, vector<8x4xf32> -> vector<8x4xf32>
    %108 = vector.extract_strided_slice %1 {offsets = [0, 16], sizes = [8, 4], strides = [1, 1]} : vector<8x96xf32> to vector<8x4xf32>
    %cst_32 = arith.constant 5.000000e-01 : f32
    %109 = vector.broadcast %cst_32 : f32 to vector<8x4xf32>
    %110 = arith.mulf %108, %109 : vector<8x4xf32>
    %111 = arith.truncf %110 : vector<8x4xf32> to vector<8x4xbf16>
    %112 = vector.extract_strided_slice %1 {offsets = [0, 48], sizes = [8, 4], strides = [1, 1]} : vector<8x96xf32> to vector<8x4xf32>
    %113 = arith.truncf %112 : vector<8x4xf32> to vector<8x4xbf16>
    %114 = vector.extract_strided_slice %1 {offsets = [0, 80], sizes = [8, 4], strides = [1, 1]} : vector<8x96xf32> to vector<8x4xf32>
    %115 = arith.truncf %114 : vector<8x4xf32> to vector<8x4xbf16>
    %cst_33 = arith.constant dense<0.000000e+00> : vector<8x8xf32>
    %116 = tpu.matmul %111, %113, %cst_33 {dimension_numbers = #tpu.dot_dimension_numbers<[1], [1], [0], [0], [0, 0, 1, 0], [], []>} : vector<8x4xbf16>, vector<8x4xbf16>, vector<8x8xf32> -> vector<8x8xf32>
    %cst_34 = arith.constant 0.000000e+00 : f32
    %117 = vector.broadcast %cst_34 : f32 to vector<1x8xf32>
    %118 = arith.cmpf oeq, %3, %117 : vector<1x8xf32>
    %cst_35 = arith.constant -1.000000e+09 : f32
    %119 = vector.shape_cast %118 : vector<1x8xi1> to vector<1x8xi1>
    %120 = vector.broadcast %119 : vector<1x8xi1> to vector<8x8xi1>
    %121 = vector.broadcast %cst_35 : f32 to vector<8x8xf32>
    %122 = arith.select %120, %121, %116 : vector<8x8xi1>, vector<8x8xf32>
    %cst_36 = arith.constant dense<0xFF800000> : vector<8xf32>
    %123 = vector.multi_reduction <maximumf>, %122, %cst_36 [1] : vector<8x8xf32> to vector<8xf32>
    %124 = vector.shape_cast %123 : vector<8xf32> to vector<8x1xf32>
    %125 = vector.broadcast %124 : vector<8x1xf32> to vector<8x8xf32>
    %126 = arith.subf %122, %125 : vector<8x8xf32>
    %127 = math.exp %126 : vector<8x8xf32>
    %cst_37 = arith.constant dense<0.000000e+00> : vector<8xf32>
    %128 = vector.multi_reduction <add>, %127, %cst_37 [1] : vector<8x8xf32> to vector<8xf32>
    %129 = vector.shape_cast %128 : vector<8xf32> to vector<8x1xf32>
    %130 = vector.broadcast %129 : vector<8x1xf32> to vector<8x8xf32>
    %131 = arith.divf %127, %130 : vector<8x8xf32>
    %132 = arith.truncf %131 : vector<8x8xf32> to vector<8x8xbf16>
    %cst_38 = arith.constant dense<0.000000e+00> : vector<8x4xf32>
    %133 = tpu.matmul %132, %115, %cst_38 {dimension_numbers = #tpu.dot_dimension_numbers<[1], [0], [0], [1], [0, 0, 1, 1], [], []>} : vector<8x8xbf16>, vector<8x4xbf16>, vector<8x4xf32> -> vector<8x4xf32>
    %134 = vector.extract_strided_slice %1 {offsets = [0, 20], sizes = [8, 4], strides = [1, 1]} : vector<8x96xf32> to vector<8x4xf32>
    %cst_39 = arith.constant 5.000000e-01 : f32
    %135 = vector.broadcast %cst_39 : f32 to vector<8x4xf32>
    %136 = arith.mulf %134, %135 : vector<8x4xf32>
    %137 = arith.truncf %136 : vector<8x4xf32> to vector<8x4xbf16>
    %138 = vector.extract_strided_slice %1 {offsets = [0, 52], sizes = [8, 4], strides = [1, 1]} : vector<8x96xf32> to vector<8x4xf32>
    %139 = arith.truncf %138 : vector<8x4xf32> to vector<8x4xbf16>
    %140 = vector.extract_strided_slice %1 {offsets = [0, 84], sizes = [8, 4], strides = [1, 1]} : vector<8x96xf32> to vector<8x4xf32>
    %141 = arith.truncf %140 : vector<8x4xf32> to vector<8x4xbf16>
    %cst_40 = arith.constant dense<0.000000e+00> : vector<8x8xf32>
    %142 = tpu.matmul %137, %139, %cst_40 {dimension_numbers = #tpu.dot_dimension_numbers<[1], [1], [0], [0], [0, 0, 1, 0], [], []>} : vector<8x4xbf16>, vector<8x4xbf16>, vector<8x8xf32> -> vector<8x8xf32>
    %cst_41 = arith.constant 0.000000e+00 : f32
    %143 = vector.broadcast %cst_41 : f32 to vector<1x8xf32>
    %144 = arith.cmpf oeq, %3, %143 : vector<1x8xf32>
    %cst_42 = arith.constant -1.000000e+09 : f32
    %145 = vector.shape_cast %144 : vector<1x8xi1> to vector<1x8xi1>
    %146 = vector.broadcast %145 : vector<1x8xi1> to vector<8x8xi1>
    %147 = vector.broadcast %cst_42 : f32 to vector<8x8xf32>
    %148 = arith.select %146, %147, %142 : vector<8x8xi1>, vector<8x8xf32>
    %cst_43 = arith.constant dense<0xFF800000> : vector<8xf32>
    %149 = vector.multi_reduction <maximumf>, %148, %cst_43 [1] : vector<8x8xf32> to vector<8xf32>
    %150 = vector.shape_cast %149 : vector<8xf32> to vector<8x1xf32>
    %151 = vector.broadcast %150 : vector<8x1xf32> to vector<8x8xf32>
    %152 = arith.subf %148, %151 : vector<8x8xf32>
    %153 = math.exp %152 : vector<8x8xf32>
    %cst_44 = arith.constant dense<0.000000e+00> : vector<8xf32>
    %154 = vector.multi_reduction <add>, %153, %cst_44 [1] : vector<8x8xf32> to vector<8xf32>
    %155 = vector.shape_cast %154 : vector<8xf32> to vector<8x1xf32>
    %156 = vector.broadcast %155 : vector<8x1xf32> to vector<8x8xf32>
    %157 = arith.divf %153, %156 : vector<8x8xf32>
    %158 = arith.truncf %157 : vector<8x8xf32> to vector<8x8xbf16>
    %cst_45 = arith.constant dense<0.000000e+00> : vector<8x4xf32>
    %159 = tpu.matmul %158, %141, %cst_45 {dimension_numbers = #tpu.dot_dimension_numbers<[1], [0], [0], [1], [0, 0, 1, 1], [], []>} : vector<8x8xbf16>, vector<8x4xbf16>, vector<8x4xf32> -> vector<8x4xf32>
    %160 = vector.extract_strided_slice %1 {offsets = [0, 24], sizes = [8, 4], strides = [1, 1]} : vector<8x96xf32> to vector<8x4xf32>
    %cst_46 = arith.constant 5.000000e-01 : f32
    %161 = vector.broadcast %cst_46 : f32 to vector<8x4xf32>
    %162 = arith.mulf %160, %161 : vector<8x4xf32>
    %163 = arith.truncf %162 : vector<8x4xf32> to vector<8x4xbf16>
    %164 = vector.extract_strided_slice %1 {offsets = [0, 56], sizes = [8, 4], strides = [1, 1]} : vector<8x96xf32> to vector<8x4xf32>
    %165 = arith.truncf %164 : vector<8x4xf32> to vector<8x4xbf16>
    %166 = vector.extract_strided_slice %1 {offsets = [0, 88], sizes = [8, 4], strides = [1, 1]} : vector<8x96xf32> to vector<8x4xf32>
    %167 = arith.truncf %166 : vector<8x4xf32> to vector<8x4xbf16>
    %cst_47 = arith.constant dense<0.000000e+00> : vector<8x8xf32>
    %168 = tpu.matmul %163, %165, %cst_47 {dimension_numbers = #tpu.dot_dimension_numbers<[1], [1], [0], [0], [0, 0, 1, 0], [], []>} : vector<8x4xbf16>, vector<8x4xbf16>, vector<8x8xf32> -> vector<8x8xf32>
    %cst_48 = arith.constant 0.000000e+00 : f32
    %169 = vector.broadcast %cst_48 : f32 to vector<1x8xf32>
    %170 = arith.cmpf oeq, %3, %169 : vector<1x8xf32>
    %cst_49 = arith.constant -1.000000e+09 : f32
    %171 = vector.shape_cast %170 : vector<1x8xi1> to vector<1x8xi1>
    %172 = vector.broadcast %171 : vector<1x8xi1> to vector<8x8xi1>
    %173 = vector.broadcast %cst_49 : f32 to vector<8x8xf32>
    %174 = arith.select %172, %173, %168 : vector<8x8xi1>, vector<8x8xf32>
    %cst_50 = arith.constant dense<0xFF800000> : vector<8xf32>
    %175 = vector.multi_reduction <maximumf>, %174, %cst_50 [1] : vector<8x8xf32> to vector<8xf32>
    %176 = vector.shape_cast %175 : vector<8xf32> to vector<8x1xf32>
    %177 = vector.broadcast %176 : vector<8x1xf32> to vector<8x8xf32>
    %178 = arith.subf %174, %177 : vector<8x8xf32>
    %179 = math.exp %178 : vector<8x8xf32>
    %cst_51 = arith.constant dense<0.000000e+00> : vector<8xf32>
    %180 = vector.multi_reduction <add>, %179, %cst_51 [1] : vector<8x8xf32> to vector<8xf32>
    %181 = vector.shape_cast %180 : vector<8xf32> to vector<8x1xf32>
    %182 = vector.broadcast %181 : vector<8x1xf32> to vector<8x8xf32>
    %183 = arith.divf %179, %182 : vector<8x8xf32>
    %184 = arith.truncf %183 : vector<8x8xf32> to vector<8x8xbf16>
    %cst_52 = arith.constant dense<0.000000e+00> : vector<8x4xf32>
    %185 = tpu.matmul %184, %167, %cst_52 {dimension_numbers = #tpu.dot_dimension_numbers<[1], [0], [0], [1], [0, 0, 1, 1], [], []>} : vector<8x8xbf16>, vector<8x4xbf16>, vector<8x4xf32> -> vector<8x4xf32>
    %186 = vector.extract_strided_slice %1 {offsets = [0, 28], sizes = [8, 4], strides = [1, 1]} : vector<8x96xf32> to vector<8x4xf32>
    %cst_53 = arith.constant 5.000000e-01 : f32
    %187 = vector.broadcast %cst_53 : f32 to vector<8x4xf32>
    %188 = arith.mulf %186, %187 : vector<8x4xf32>
    %189 = arith.truncf %188 : vector<8x4xf32> to vector<8x4xbf16>
    %190 = vector.extract_strided_slice %1 {offsets = [0, 60], sizes = [8, 4], strides = [1, 1]} : vector<8x96xf32> to vector<8x4xf32>
    %191 = arith.truncf %190 : vector<8x4xf32> to vector<8x4xbf16>
    %192 = vector.extract_strided_slice %1 {offsets = [0, 92], sizes = [8, 4], strides = [1, 1]} : vector<8x96xf32> to vector<8x4xf32>
    %193 = arith.truncf %192 : vector<8x4xf32> to vector<8x4xbf16>
    %cst_54 = arith.constant dense<0.000000e+00> : vector<8x8xf32>
    %194 = tpu.matmul %189, %191, %cst_54 {dimension_numbers = #tpu.dot_dimension_numbers<[1], [1], [0], [0], [0, 0, 1, 0], [], []>} : vector<8x4xbf16>, vector<8x4xbf16>, vector<8x8xf32> -> vector<8x8xf32>
    %cst_55 = arith.constant 0.000000e+00 : f32
    %195 = vector.broadcast %cst_55 : f32 to vector<1x8xf32>
    %196 = arith.cmpf oeq, %3, %195 : vector<1x8xf32>
    %cst_56 = arith.constant -1.000000e+09 : f32
    %197 = vector.shape_cast %196 : vector<1x8xi1> to vector<1x8xi1>
    %198 = vector.broadcast %197 : vector<1x8xi1> to vector<8x8xi1>
    %199 = vector.broadcast %cst_56 : f32 to vector<8x8xf32>
    %200 = arith.select %198, %199, %194 : vector<8x8xi1>, vector<8x8xf32>
    %cst_57 = arith.constant dense<0xFF800000> : vector<8xf32>
    %201 = vector.multi_reduction <maximumf>, %200, %cst_57 [1] : vector<8x8xf32> to vector<8xf32>
    %202 = vector.shape_cast %201 : vector<8xf32> to vector<8x1xf32>
    %203 = vector.broadcast %202 : vector<8x1xf32> to vector<8x8xf32>
    %204 = arith.subf %200, %203 : vector<8x8xf32>
    %205 = math.exp %204 : vector<8x8xf32>
    %cst_58 = arith.constant dense<0.000000e+00> : vector<8xf32>
    %206 = vector.multi_reduction <add>, %205, %cst_58 [1] : vector<8x8xf32> to vector<8xf32>
    %207 = vector.shape_cast %206 : vector<8xf32> to vector<8x1xf32>
    %208 = vector.broadcast %207 : vector<8x1xf32> to vector<8x8xf32>
    %209 = arith.divf %205, %208 : vector<8x8xf32>
    %210 = arith.truncf %209 : vector<8x8xf32> to vector<8x8xbf16>
    %cst_59 = arith.constant dense<0.000000e+00> : vector<8x4xf32>
    %211 = tpu.matmul %210, %193, %cst_59 {dimension_numbers = #tpu.dot_dimension_numbers<[1], [0], [0], [1], [0, 0, 1, 1], [], []>} : vector<8x8xbf16>, vector<8x4xbf16>, vector<8x4xf32> -> vector<8x4xf32>
    %212 = tpu.concatenate %29, %55, %81, %107, %133, %159, %185, %211 in 1 : vector<8x4xf32>, vector<8x4xf32>, vector<8x4xf32>, vector<8x4xf32>, vector<8x4xf32>, vector<8x4xf32>, vector<8x4xf32>, vector<8x4xf32> -> vector<8x32xf32>
    %c0_60 = arith.constant 0 : index
    %c0_61 = arith.constant 0 : index
    %c0_62 = arith.constant 0 : index
    %213 = vector.load %arg3[%c0_60, %c0_61, %c0_62] : memref<1x8x32xf32, #tpu.memory_space<vmem>>, vector<1x8x32xf32>
    %214 = vector.shape_cast %213 : vector<1x8x32xf32> to vector<8x32xf32>
    %215 = vector.shape_cast %212 : vector<8x32xf32> to vector<1x8x32xf32>
    tpu.vector_store %arg3[%c0_60, %c0_61, %c0_62], %215 {strides = array<i32>} : memref<1x8x32xf32, #tpu.memory_space<vmem>>, vector<1x8x32xf32>,
    return
  }
  func.func @transform_0(%arg0: i32) -> (i32, i32, i32) {
    %c0_i32 = arith.constant 0 : i32
    %c0_i32_0 = arith.constant 0 : i32
    %c0_i32_1 = arith.constant 0 : i32
    return %arg0, %c0_i32, %c0_i32_0 : i32, i32, i32
  }
  func.func @transform_1(%arg0: i32) -> (i32, i32, i32) {
    %c0_i32 = arith.constant 0 : i32
    %c0_i32_0 = arith.constant 0 : i32
    %c0_i32_1 = arith.constant 0 : i32
    return %arg0, %c0_i32, %c0_i32_0 : i32, i32, i32
  }
  func.func @transform_2(%arg0: i32) -> (i32, i32, i32) {
    %c0_i32 = arith.constant 0 : i32
    %c0_i32_0 = arith.constant 0 : i32
    %c0_i32_1 = arith.constant 0 : i32
    return %arg0, %c0_i32, %c0_i32_0 : i32, i32, i32
  }
}

module attributes {stable_mosaic.version = 11 : i64} {
  func.func @_ffn_add_ln_kernel(%arg0: i32, %arg1: i32, %arg2: memref<16x32xf32, #tpu.memory_space<vmem>>, %arg3: memref<32x64xbf16, #tpu.memory_space<vmem>>, %arg4: memref<1x64xf32, #tpu.memory_space<vmem>>, %arg5: memref<64x32xbf16, #tpu.memory_space<vmem>>, %arg6: memref<1x32xf32, #tpu.memory_space<vmem>>, %arg7: memref<1x32xf32, #tpu.memory_space<vmem>>, %arg8: memref<1x32xf32, #tpu.memory_space<vmem>>, %arg9: memref<16x32xf32, #tpu.memory_space<vmem>>, %arg10: memref<16x32xf32, #tpu.memory_space<vmem>>) attributes {dimension_semantics = [#tpu.dimension_semantics<parallel>, #tpu.dimension_semantics<arbitrary>], iteration_bounds = array<i64: 1, 1>, scalar_prefetch = 0 : i64, scratch_operands = 1 : i64, tpu.core_type = #tpu.core_type<tc>, window_params = [{transform_indices = @transform_0, window_bounds = array<i64: 16, 32>}, {transform_indices = @transform_1, window_bounds = array<i64: 32, 64>}, {transform_indices = @transform_2, window_bounds = array<i64: 1, 64>}, {transform_indices = @transform_3, window_bounds = array<i64: 64, 32>}, {pipeline_mode = #tpu.pipeline_mode<synchronous>, transform_indices = @transform_4, window_bounds = array<i64: 1, 32>}, {pipeline_mode = #tpu.pipeline_mode<synchronous>, transform_indices = @transform_5, window_bounds = array<i64: 1, 32>}, {pipeline_mode = #tpu.pipeline_mode<synchronous>, transform_indices = @transform_6, window_bounds = array<i64: 1, 32>}, {transform_indices = @transform_7, window_bounds = array<i64: 16, 32>}]} {
    %c0_i32 = arith.constant 0 : i32
    %0 = arith.cmpi eq, %arg1, %c0_i32 : i32
    %1 = arith.extui %0 : i1 to i32
    %c0_i32_0 = arith.constant 0 : i32
    %2 = arith.cmpi ne, %1, %c0_i32_0 : i32
    scf.if %2 {
      %cst_16 = arith.constant 0.000000e+00 : f32
      %21 = vector.broadcast %cst_16 : f32 to vector<16x32xf32>
      %c0_17 = arith.constant 0 : index
      %c0_18 = arith.constant 0 : index
      %22 = vector.load %arg10[%c0_17, %c0_18] : memref<16x32xf32, #tpu.memory_space<vmem>>, vector<16x32xf32>
      tpu.vector_store %arg10[%c0_17, %c0_18], %21 {strides = array<i32>} : memref<16x32xf32, #tpu.memory_space<vmem>>, vector<16x32xf32>,
    } else {
    }
    %c0 = arith.constant 0 : index
    %c0_1 = arith.constant 0 : index
    %3 = vector.load %arg2[%c0, %c0_1] : memref<16x32xf32, #tpu.memory_space<vmem>>, vector<16x32xf32>
    %4 = arith.truncf %3 : vector<16x32xf32> to vector<16x32xbf16>
    %c0_2 = arith.constant 0 : index
    %c0_3 = arith.constant 0 : index
    %5 = vector.load %arg3[%c0_2, %c0_3] : memref<32x64xbf16, #tpu.memory_space<vmem>>, vector<32x64xbf16>
    %cst = arith.constant dense<0.000000e+00> : vector<16x64xf32>
    %6 = tpu.matmul %4, %5, %cst {dimension_numbers = #tpu.dot_dimension_numbers<[1], [0], [0], [1], [0, 0, 1, 1], [], []>} : vector<16x32xbf16>, vector<32x64xbf16>, vector<16x64xf32> -> vector<16x64xf32>
    %c0_4 = arith.constant 0 : index
    %c0_5 = arith.constant 0 : index
    %7 = vector.load %arg4[%c0_4, %c0_5] : memref<1x64xf32, #tpu.memory_space<vmem>>, vector<1x64xf32>
    %8 = vector.broadcast %7 : vector<1x64xf32> to vector<16x64xf32>
    %9 = arith.addf %6, %8 : vector<16x64xf32>
    %cst_6 = arith.constant 0.000000e+00 : f32
    %10 = vector.broadcast %cst_6 : f32 to vector<16x64xf32>
    %11 = arith.maximumf %9, %10 : vector<16x64xf32>
    %c0_7 = arith.constant 0 : index
    %c0_8 = arith.constant 0 : index
    %12 = vector.load %arg10[%c0_7, %c0_8] : memref<16x32xf32, #tpu.memory_space<vmem>>, vector<16x32xf32>
    %13 = arith.truncf %11 : vector<16x64xf32> to vector<16x64xbf16>
    %c0_9 = arith.constant 0 : index
    %c0_10 = arith.constant 0 : index
    %14 = vector.load %arg5[%c0_9, %c0_10] : memref<64x32xbf16, #tpu.memory_space<vmem>>, vector<64x32xbf16>
    %cst_11 = arith.constant dense<0.000000e+00> : vector<16x32xf32>
    %15 = tpu.matmul %13, %14, %cst_11 {dimension_numbers = #tpu.dot_dimension_numbers<[1], [0], [0], [1], [0, 0, 1, 1], [], []>} : vector<16x64xbf16>, vector<64x32xbf16>, vector<16x32xf32> -> vector<16x32xf32>
    %16 = arith.addf %12, %15 : vector<16x32xf32>
    %c0_12 = arith.constant 0 : index
    %c0_13 = arith.constant 0 : index
    %17 = vector.load %arg10[%c0_12, %c0_13] : memref<16x32xf32, #tpu.memory_space<vmem>>, vector<16x32xf32>
    tpu.vector_store %arg10[%c0_12, %c0_13], %16 {strides = array<i32>} : memref<16x32xf32, #tpu.memory_space<vmem>>, vector<16x32xf32>,
    %c0_i32_14 = arith.constant 0 : i32
    %18 = arith.cmpi eq, %arg1, %c0_i32_14 : i32
    %19 = arith.extui %18 : i1 to i32
    %c0_i32_15 = arith.constant 0 : i32
    %20 = arith.cmpi ne, %19, %c0_i32_15 : i32
    scf.if %20 {
      %c0_16 = arith.constant 0 : index
      %c0_17 = arith.constant 0 : index
      %21 = vector.load %arg2[%c0_16, %c0_17] : memref<16x32xf32, #tpu.memory_space<vmem>>, vector<16x32xf32>
      %c0_18 = arith.constant 0 : index
      %c0_19 = arith.constant 0 : index
      %22 = vector.load %arg10[%c0_18, %c0_19] : memref<16x32xf32, #tpu.memory_space<vmem>>, vector<16x32xf32>
      %23 = arith.addf %21, %22 : vector<16x32xf32>
      %c0_20 = arith.constant 0 : index
      %c0_21 = arith.constant 0 : index
      %24 = vector.load %arg6[%c0_20, %c0_21] : memref<1x32xf32, #tpu.memory_space<vmem>>, vector<1x32xf32>
      %25 = vector.broadcast %24 : vector<1x32xf32> to vector<16x32xf32>
      %26 = arith.addf %23, %25 : vector<16x32xf32>
      %cst_22 = arith.constant dense<0.000000e+00> : vector<16xf32>
      %27 = vector.multi_reduction <add>, %26, %cst_22 [1] : vector<16x32xf32> to vector<16xf32>
      %28 = vector.shape_cast %27 : vector<16xf32> to vector<16x1xf32>
      %cst_23 = arith.constant 3.200000e+01 : f32
      %29 = vector.broadcast %cst_23 : f32 to vector<16x1xf32>
      %30 = arith.divf %28, %29 : vector<16x1xf32>
      %31 = vector.broadcast %30 : vector<16x1xf32> to vector<16x32xf32>
      %32 = arith.subf %26, %31 : vector<16x32xf32>
      %33 = arith.mulf %32, %32 : vector<16x32xf32>
      %cst_24 = arith.constant dense<0.000000e+00> : vector<16xf32>
      %34 = vector.multi_reduction <add>, %33, %cst_24 [1] : vector<16x32xf32> to vector<16xf32>
      %35 = vector.shape_cast %34 : vector<16xf32> to vector<16x1xf32>
      %cst_25 = arith.constant 3.200000e+01 : f32
      %36 = vector.broadcast %cst_25 : f32 to vector<16x1xf32>
      %37 = arith.divf %35, %36 : vector<16x1xf32>
      %cst_26 = arith.constant 9.99999974E-6 : f32
      %38 = vector.broadcast %cst_26 : f32 to vector<16x1xf32>
      %39 = arith.addf %37, %38 : vector<16x1xf32>
      %40 = math.rsqrt %39 : vector<16x1xf32>
      %41 = vector.broadcast %40 : vector<16x1xf32> to vector<16x32xf32>
      %42 = arith.mulf %32, %41 : vector<16x32xf32>
      %c0_27 = arith.constant 0 : index
      %c0_28 = arith.constant 0 : index
      %43 = vector.load %arg7[%c0_27, %c0_28] : memref<1x32xf32, #tpu.memory_space<vmem>>, vector<1x32xf32>
      %44 = vector.broadcast %43 : vector<1x32xf32> to vector<16x32xf32>
      %45 = arith.mulf %42, %44 : vector<16x32xf32>
      %c0_29 = arith.constant 0 : index
      %c0_30 = arith.constant 0 : index
      %46 = vector.load %arg8[%c0_29, %c0_30] : memref<1x32xf32, #tpu.memory_space<vmem>>, vector<1x32xf32>
      %47 = vector.broadcast %46 : vector<1x32xf32> to vector<16x32xf32>
      %48 = arith.addf %45, %47 : vector<16x32xf32>
      %c0_31 = arith.constant 0 : index
      %c0_32 = arith.constant 0 : index
      %49 = vector.load %arg9[%c0_31, %c0_32] : memref<16x32xf32, #tpu.memory_space<vmem>>, vector<16x32xf32>
      tpu.vector_store %arg9[%c0_31, %c0_32], %48 {strides = array<i32>} : memref<16x32xf32, #tpu.memory_space<vmem>>, vector<16x32xf32>,
    } else {
    }
    return
  }
  func.func @transform_0(%arg0: i32, %arg1: i32) -> (i32, i32) {
    %c0_i32 = arith.constant 0 : i32
    %c0_i32_0 = arith.constant 0 : i32
    return %arg0, %c0_i32 : i32, i32
  }
  func.func @transform_1(%arg0: i32, %arg1: i32) -> (i32, i32) {
    %c0_i32 = arith.constant 0 : i32
    %c0_i32_0 = arith.constant 0 : i32
    return %c0_i32, %arg1 : i32, i32
  }
  func.func @transform_2(%arg0: i32, %arg1: i32) -> (i32, i32) {
    %c0_i32 = arith.constant 0 : i32
    %c0_i32_0 = arith.constant 0 : i32
    return %c0_i32, %arg1 : i32, i32
  }
  func.func @transform_3(%arg0: i32, %arg1: i32) -> (i32, i32) {
    %c0_i32 = arith.constant 0 : i32
    %c0_i32_0 = arith.constant 0 : i32
    return %arg1, %c0_i32 : i32, i32
  }
  func.func @transform_4(%arg0: i32, %arg1: i32) -> (i32, i32) {
    %c0_i32 = arith.constant 0 : i32
    %c0_i32_0 = arith.constant 0 : i32
    %c0_i32_1 = arith.constant 0 : i32
    return %c0_i32, %c0_i32_0 : i32, i32
  }
  func.func @transform_5(%arg0: i32, %arg1: i32) -> (i32, i32) {
    %c0_i32 = arith.constant 0 : i32
    %c0_i32_0 = arith.constant 0 : i32
    %c0_i32_1 = arith.constant 0 : i32
    return %c0_i32, %c0_i32_0 : i32, i32
  }
  func.func @transform_6(%arg0: i32, %arg1: i32) -> (i32, i32) {
    %c0_i32 = arith.constant 0 : i32
    %c0_i32_0 = arith.constant 0 : i32
    %c0_i32_1 = arith.constant 0 : i32
    return %c0_i32, %c0_i32_0 : i32, i32
  }
  func.func @transform_7(%arg0: i32, %arg1: i32) -> (i32, i32) {
    %c0_i32 = arith.constant 0 : i32
    %c0_i32_0 = arith.constant 0 : i32
    return %arg0, %c0_i32 : i32, i32
  }
}

module attributes {stable_mosaic.version = 11 : i64} {
  func.func @_linear_kernel(%arg0: i32, %arg1: i32, %arg2: i32, %arg3: memref<16x32xf32, #tpu.memory_space<vmem>>, %arg4: memref<32x64xbf16, #tpu.memory_space<vmem>>, %arg5: memref<1x64xf32, #tpu.memory_space<vmem>>, %arg6: memref<16x64xf32, #tpu.memory_space<vmem>>, %arg7: memref<16x64xf32, #tpu.memory_space<vmem>>) attributes {dimension_semantics = [#tpu.dimension_semantics<parallel>, #tpu.dimension_semantics<parallel>, #tpu.dimension_semantics<arbitrary>], iteration_bounds = array<i64: 1, 1, 1>, scalar_prefetch = 0 : i64, scratch_operands = 1 : i64, tpu.core_type = #tpu.core_type<tc>, window_params = [{transform_indices = @transform_0, window_bounds = array<i64: 16, 32>}, {transform_indices = @transform_1, window_bounds = array<i64: 32, 64>}, {transform_indices = @transform_2, window_bounds = array<i64: 1, 64>}, {transform_indices = @transform_3, window_bounds = array<i64: 16, 64>}]} {
    %c0_i32 = arith.constant 0 : i32
    %0 = arith.cmpi eq, %arg2, %c0_i32 : i32
    %1 = arith.extui %0 : i1 to i32
    %c0_i32_0 = arith.constant 0 : i32
    %2 = arith.cmpi ne, %1, %c0_i32_0 : i32
    scf.if %2 {
      %cst_10 = arith.constant 0.000000e+00 : f32
      %13 = vector.broadcast %cst_10 : f32 to vector<16x64xf32>
      %c0_11 = arith.constant 0 : index
      %c0_12 = arith.constant 0 : index
      %14 = vector.load %arg7[%c0_11, %c0_12] : memref<16x64xf32, #tpu.memory_space<vmem>>, vector<16x64xf32>
      tpu.vector_store %arg7[%c0_11, %c0_12], %13 {strides = array<i32>} : memref<16x64xf32, #tpu.memory_space<vmem>>, vector<16x64xf32>,
    } else {
    }
    %c0 = arith.constant 0 : index
    %c0_1 = arith.constant 0 : index
    %3 = vector.load %arg7[%c0, %c0_1] : memref<16x64xf32, #tpu.memory_space<vmem>>, vector<16x64xf32>
    %c0_2 = arith.constant 0 : index
    %c0_3 = arith.constant 0 : index
    %4 = vector.load %arg3[%c0_2, %c0_3] : memref<16x32xf32, #tpu.memory_space<vmem>>, vector<16x32xf32>
    %5 = arith.truncf %4 : vector<16x32xf32> to vector<16x32xbf16>
    %c0_4 = arith.constant 0 : index
    %c0_5 = arith.constant 0 : index
    %6 = vector.load %arg4[%c0_4, %c0_5] : memref<32x64xbf16, #tpu.memory_space<vmem>>, vector<32x64xbf16>
    %cst = arith.constant dense<0.000000e+00> : vector<16x64xf32>
    %7 = tpu.matmul %5, %6, %cst {dimension_numbers = #tpu.dot_dimension_numbers<[1], [0], [0], [1], [0, 0, 1, 1], [], []>} : vector<16x32xbf16>, vector<32x64xbf16>, vector<16x64xf32> -> vector<16x64xf32>
    %8 = arith.addf %3, %7 : vector<16x64xf32>
    %c0_6 = arith.constant 0 : index
    %c0_7 = arith.constant 0 : index
    %9 = vector.load %arg7[%c0_6, %c0_7] : memref<16x64xf32, #tpu.memory_space<vmem>>, vector<16x64xf32>
    tpu.vector_store %arg7[%c0_6, %c0_7], %8 {strides = array<i32>} : memref<16x64xf32, #tpu.memory_space<vmem>>, vector<16x64xf32>,
    %c0_i32_8 = arith.constant 0 : i32
    %10 = arith.cmpi eq, %arg2, %c0_i32_8 : i32
    %11 = arith.extui %10 : i1 to i32
    %c0_i32_9 = arith.constant 0 : i32
    %12 = arith.cmpi ne, %11, %c0_i32_9 : i32
    scf.if %12 {
      %c0_10 = arith.constant 0 : index
      %c0_11 = arith.constant 0 : index
      %13 = vector.load %arg7[%c0_10, %c0_11] : memref<16x64xf32, #tpu.memory_space<vmem>>, vector<16x64xf32>
      %c0_12 = arith.constant 0 : index
      %c0_13 = arith.constant 0 : index
      %14 = vector.load %arg5[%c0_12, %c0_13] : memref<1x64xf32, #tpu.memory_space<vmem>>, vector<1x64xf32>
      %15 = vector.broadcast %14 : vector<1x64xf32> to vector<16x64xf32>
      %16 = arith.addf %13, %15 : vector<16x64xf32>
      %c0_14 = arith.constant 0 : index
      %c0_15 = arith.constant 0 : index
      %17 = vector.load %arg6[%c0_14, %c0_15] : memref<16x64xf32, #tpu.memory_space<vmem>>, vector<16x64xf32>
      tpu.vector_store %arg6[%c0_14, %c0_15], %16 {strides = array<i32>} : memref<16x64xf32, #tpu.memory_space<vmem>>, vector<16x64xf32>,
    } else {
    }
    return
  }
  func.func @transform_0(%arg0: i32, %arg1: i32, %arg2: i32) -> (i32, i32) {
    %c0_i32 = arith.constant 0 : i32
    return %arg0, %arg2 : i32, i32
  }
  func.func @transform_1(%arg0: i32, %arg1: i32, %arg2: i32) -> (i32, i32) {
    %c0_i32 = arith.constant 0 : i32
    return %arg2, %arg1 : i32, i32
  }
  func.func @transform_2(%arg0: i32, %arg1: i32, %arg2: i32) -> (i32, i32) {
    %c0_i32 = arith.constant 0 : i32
    %c0_i32_0 = arith.constant 0 : i32
    return %c0_i32, %arg1 : i32, i32
  }
  func.func @transform_3(%arg0: i32, %arg1: i32, %arg2: i32) -> (i32, i32) {
    %c0_i32 = arith.constant 0 : i32
    return %arg0, %arg1 : i32, i32
  }
}

module attributes {stable_mosaic.version = 11 : i64} {
  func.func @_attention_kernel(%arg0: i32, %arg1: memref<1x8x96xf32, #tpu.memory_space<vmem>>, %arg2: memref<1x8x32xf32, #tpu.memory_space<vmem>>) attributes {dimension_semantics = [#tpu.dimension_semantics<parallel>], iteration_bounds = array<i64: 2>, scalar_prefetch = 0 : i64, scratch_operands = 0 : i64, tpu.core_type = #tpu.core_type<tc>, window_params = [{transform_indices = @transform_0, window_bounds = array<i64: 1, 8, 96>}, {transform_indices = @transform_1, window_bounds = array<i64: 1, 8, 32>}]} {
    %c0 = arith.constant 0 : index
    %c0_0 = arith.constant 0 : index
    %c0_1 = arith.constant 0 : index
    %0 = vector.load %arg1[%c0, %c0_0, %c0_1] : memref<1x8x96xf32, #tpu.memory_space<vmem>>, vector<1x8x96xf32>
    %1 = vector.shape_cast %0 : vector<1x8x96xf32> to vector<8x96xf32>
    %2 = tpu.iota {dimensions = array<i32: 0>} : vector<8x8xi32>
    %3 = tpu.iota {dimensions = array<i32: 1>} : vector<8x8xi32>
    %4 = arith.cmpi sle, %3, %2 : vector<8x8xi32>
    %5 = vector.extract_strided_slice %1 {offsets = [0, 0], sizes = [8, 4], strides = [1, 1]} : vector<8x96xf32> to vector<8x4xf32>
    %cst = arith.constant 5.000000e-01 : f32
    %6 = vector.broadcast %cst : f32 to vector<8x4xf32>
    %7 = arith.mulf %5, %6 : vector<8x4xf32>
    %8 = arith.truncf %7 : vector<8x4xf32> to vector<8x4xbf16>
    %9 = vector.extract_strided_slice %1 {offsets = [0, 32], sizes = [8, 4], strides = [1, 1]} : vector<8x96xf32> to vector<8x4xf32>
    %10 = arith.truncf %9 : vector<8x4xf32> to vector<8x4xbf16>
    %11 = vector.extract_strided_slice %1 {offsets = [0, 64], sizes = [8, 4], strides = [1, 1]} : vector<8x96xf32> to vector<8x4xf32>
    %12 = arith.truncf %11 : vector<8x4xf32> to vector<8x4xbf16>
    %cst_2 = arith.constant dense<0.000000e+00> : vector<8x8xf32>
    %13 = tpu.matmul %8, %10, %cst_2 {dimension_numbers = #tpu.dot_dimension_numbers<[1], [1], [0], [0], [0, 0, 1, 0], [], []>} : vector<8x4xbf16>, vector<8x4xbf16>, vector<8x8xf32> -> vector<8x8xf32>
    %cst_3 = arith.constant -1.000000e+09 : f32
    %14 = vector.broadcast %cst_3 : f32 to vector<8x8xf32>
    %15 = arith.select %4, %13, %14 : vector<8x8xi1>, vector<8x8xf32>
    %cst_4 = arith.constant dense<0xFF800000> : vector<8xf32>
    %16 = vector.multi_reduction <maximumf>, %15, %cst_4 [1] : vector<8x8xf32> to vector<8xf32>
    %17 = vector.shape_cast %16 : vector<8xf32> to vector<8x1xf32>
    %18 = vector.broadcast %17 : vector<8x1xf32> to vector<8x8xf32>
    %19 = arith.subf %15, %18 : vector<8x8xf32>
    %20 = math.exp %19 : vector<8x8xf32>
    %cst_5 = arith.constant dense<0.000000e+00> : vector<8xf32>
    %21 = vector.multi_reduction <add>, %20, %cst_5 [1] : vector<8x8xf32> to vector<8xf32>
    %22 = vector.shape_cast %21 : vector<8xf32> to vector<8x1xf32>
    %23 = vector.broadcast %22 : vector<8x1xf32> to vector<8x8xf32>
    %24 = arith.divf %20, %23 : vector<8x8xf32>
    %25 = arith.truncf %24 : vector<8x8xf32> to vector<8x8xbf16>
    %cst_6 = arith.constant dense<0.000000e+00> : vector<8x4xf32>
    %26 = tpu.matmul %25, %12, %cst_6 {dimension_numbers = #tpu.dot_dimension_numbers<[1], [0], [0], [1], [0, 0, 1, 1], [], []>} : vector<8x8xbf16>, vector<8x4xbf16>, vector<8x4xf32> -> vector<8x4xf32>
    %27 = vector.extract_strided_slice %1 {offsets = [0, 4], sizes = [8, 4], strides = [1, 1]} : vector<8x96xf32> to vector<8x4xf32>
    %cst_7 = arith.constant 5.000000e-01 : f32
    %28 = vector.broadcast %cst_7 : f32 to vector<8x4xf32>
    %29 = arith.mulf %27, %28 : vector<8x4xf32>
    %30 = arith.truncf %29 : vector<8x4xf32> to vector<8x4xbf16>
    %31 = vector.extract_strided_slice %1 {offsets = [0, 36], sizes = [8, 4], strides = [1, 1]} : vector<8x96xf32> to vector<8x4xf32>
    %32 = arith.truncf %31 : vector<8x4xf32> to vector<8x4xbf16>
    %33 = vector.extract_strided_slice %1 {offsets = [0, 68], sizes = [8, 4], strides = [1, 1]} : vector<8x96xf32> to vector<8x4xf32>
    %34 = arith.truncf %33 : vector<8x4xf32> to vector<8x4xbf16>
    %cst_8 = arith.constant dense<0.000000e+00> : vector<8x8xf32>
    %35 = tpu.matmul %30, %32, %cst_8 {dimension_numbers = #tpu.dot_dimension_numbers<[1], [1], [0], [0], [0, 0, 1, 0], [], []>} : vector<8x4xbf16>, vector<8x4xbf16>, vector<8x8xf32> -> vector<8x8xf32>
    %cst_9 = arith.constant -1.000000e+09 : f32
    %36 = vector.broadcast %cst_9 : f32 to vector<8x8xf32>
    %37 = arith.select %4, %35, %36 : vector<8x8xi1>, vector<8x8xf32>
    %cst_10 = arith.constant dense<0xFF800000> : vector<8xf32>
    %38 = vector.multi_reduction <maximumf>, %37, %cst_10 [1] : vector<8x8xf32> to vector<8xf32>
    %39 = vector.shape_cast %38 : vector<8xf32> to vector<8x1xf32>
    %40 = vector.broadcast %39 : vector<8x1xf32> to vector<8x8xf32>
    %41 = arith.subf %37, %40 : vector<8x8xf32>
    %42 = math.exp %41 : vector<8x8xf32>
    %cst_11 = arith.constant dense<0.000000e+00> : vector<8xf32>
    %43 = vector.multi_reduction <add>, %42, %cst_11 [1] : vector<8x8xf32> to vector<8xf32>
    %44 = vector.shape_cast %43 : vector<8xf32> to vector<8x1xf32>
    %45 = vector.broadcast %44 : vector<8x1xf32> to vector<8x8xf32>
    %46 = arith.divf %42, %45 : vector<8x8xf32>
    %47 = arith.truncf %46 : vector<8x8xf32> to vector<8x8xbf16>
    %cst_12 = arith.constant dense<0.000000e+00> : vector<8x4xf32>
    %48 = tpu.matmul %47, %34, %cst_12 {dimension_numbers = #tpu.dot_dimension_numbers<[1], [0], [0], [1], [0, 0, 1, 1], [], []>} : vector<8x8xbf16>, vector<8x4xbf16>, vector<8x4xf32> -> vector<8x4xf32>
    %49 = vector.extract_strided_slice %1 {offsets = [0, 8], sizes = [8, 4], strides = [1, 1]} : vector<8x96xf32> to vector<8x4xf32>
    %cst_13 = arith.constant 5.000000e-01 : f32
    %50 = vector.broadcast %cst_13 : f32 to vector<8x4xf32>
    %51 = arith.mulf %49, %50 : vector<8x4xf32>
    %52 = arith.truncf %51 : vector<8x4xf32> to vector<8x4xbf16>
    %53 = vector.extract_strided_slice %1 {offsets = [0, 40], sizes = [8, 4], strides = [1, 1]} : vector<8x96xf32> to vector<8x4xf32>
    %54 = arith.truncf %53 : vector<8x4xf32> to vector<8x4xbf16>
    %55 = vector.extract_strided_slice %1 {offsets = [0, 72], sizes = [8, 4], strides = [1, 1]} : vector<8x96xf32> to vector<8x4xf32>
    %56 = arith.truncf %55 : vector<8x4xf32> to vector<8x4xbf16>
    %cst_14 = arith.constant dense<0.000000e+00> : vector<8x8xf32>
    %57 = tpu.matmul %52, %54, %cst_14 {dimension_numbers = #tpu.dot_dimension_numbers<[1], [1], [0], [0], [0, 0, 1, 0], [], []>} : vector<8x4xbf16>, vector<8x4xbf16>, vector<8x8xf32> -> vector<8x8xf32>
    %cst_15 = arith.constant -1.000000e+09 : f32
    %58 = vector.broadcast %cst_15 : f32 to vector<8x8xf32>
    %59 = arith.select %4, %57, %58 : vector<8x8xi1>, vector<8x8xf32>
    %cst_16 = arith.constant dense<0xFF800000> : vector<8xf32>
    %60 = vector.multi_reduction <maximumf>, %59, %cst_16 [1] : vector<8x8xf32> to vector<8xf32>
    %61 = vector.shape_cast %60 : vector<8xf32> to vector<8x1xf32>
    %62 = vector.broadcast %61 : vector<8x1xf32> to vector<8x8xf32>
    %63 = arith.subf %59, %62 : vector<8x8xf32>
    %64 = math.exp %63 : vector<8x8xf32>
    %cst_17 = arith.constant dense<0.000000e+00> : vector<8xf32>
    %65 = vector.multi_reduction <add>, %64, %cst_17 [1] : vector<8x8xf32> to vector<8xf32>
    %66 = vector.shape_cast %65 : vector<8xf32> to vector<8x1xf32>
    %67 = vector.broadcast %66 : vector<8x1xf32> to vector<8x8xf32>
    %68 = arith.divf %64, %67 : vector<8x8xf32>
    %69 = arith.truncf %68 : vector<8x8xf32> to vector<8x8xbf16>
    %cst_18 = arith.constant dense<0.000000e+00> : vector<8x4xf32>
    %70 = tpu.matmul %69, %56, %cst_18 {dimension_numbers = #tpu.dot_dimension_numbers<[1], [0], [0], [1], [0, 0, 1, 1], [], []>} : vector<8x8xbf16>, vector<8x4xbf16>, vector<8x4xf32> -> vector<8x4xf32>
    %71 = vector.extract_strided_slice %1 {offsets = [0, 12], sizes = [8, 4], strides = [1, 1]} : vector<8x96xf32> to vector<8x4xf32>
    %cst_19 = arith.constant 5.000000e-01 : f32
    %72 = vector.broadcast %cst_19 : f32 to vector<8x4xf32>
    %73 = arith.mulf %71, %72 : vector<8x4xf32>
    %74 = arith.truncf %73 : vector<8x4xf32> to vector<8x4xbf16>
    %75 = vector.extract_strided_slice %1 {offsets = [0, 44], sizes = [8, 4], strides = [1, 1]} : vector<8x96xf32> to vector<8x4xf32>
    %76 = arith.truncf %75 : vector<8x4xf32> to vector<8x4xbf16>
    %77 = vector.extract_strided_slice %1 {offsets = [0, 76], sizes = [8, 4], strides = [1, 1]} : vector<8x96xf32> to vector<8x4xf32>
    %78 = arith.truncf %77 : vector<8x4xf32> to vector<8x4xbf16>
    %cst_20 = arith.constant dense<0.000000e+00> : vector<8x8xf32>
    %79 = tpu.matmul %74, %76, %cst_20 {dimension_numbers = #tpu.dot_dimension_numbers<[1], [1], [0], [0], [0, 0, 1, 0], [], []>} : vector<8x4xbf16>, vector<8x4xbf16>, vector<8x8xf32> -> vector<8x8xf32>
    %cst_21 = arith.constant -1.000000e+09 : f32
    %80 = vector.broadcast %cst_21 : f32 to vector<8x8xf32>
    %81 = arith.select %4, %79, %80 : vector<8x8xi1>, vector<8x8xf32>
    %cst_22 = arith.constant dense<0xFF800000> : vector<8xf32>
    %82 = vector.multi_reduction <maximumf>, %81, %cst_22 [1] : vector<8x8xf32> to vector<8xf32>
    %83 = vector.shape_cast %82 : vector<8xf32> to vector<8x1xf32>
    %84 = vector.broadcast %83 : vector<8x1xf32> to vector<8x8xf32>
    %85 = arith.subf %81, %84 : vector<8x8xf32>
    %86 = math.exp %85 : vector<8x8xf32>
    %cst_23 = arith.constant dense<0.000000e+00> : vector<8xf32>
    %87 = vector.multi_reduction <add>, %86, %cst_23 [1] : vector<8x8xf32> to vector<8xf32>
    %88 = vector.shape_cast %87 : vector<8xf32> to vector<8x1xf32>
    %89 = vector.broadcast %88 : vector<8x1xf32> to vector<8x8xf32>
    %90 = arith.divf %86, %89 : vector<8x8xf32>
    %91 = arith.truncf %90 : vector<8x8xf32> to vector<8x8xbf16>
    %cst_24 = arith.constant dense<0.000000e+00> : vector<8x4xf32>
    %92 = tpu.matmul %91, %78, %cst_24 {dimension_numbers = #tpu.dot_dimension_numbers<[1], [0], [0], [1], [0, 0, 1, 1], [], []>} : vector<8x8xbf16>, vector<8x4xbf16>, vector<8x4xf32> -> vector<8x4xf32>
    %93 = vector.extract_strided_slice %1 {offsets = [0, 16], sizes = [8, 4], strides = [1, 1]} : vector<8x96xf32> to vector<8x4xf32>
    %cst_25 = arith.constant 5.000000e-01 : f32
    %94 = vector.broadcast %cst_25 : f32 to vector<8x4xf32>
    %95 = arith.mulf %93, %94 : vector<8x4xf32>
    %96 = arith.truncf %95 : vector<8x4xf32> to vector<8x4xbf16>
    %97 = vector.extract_strided_slice %1 {offsets = [0, 48], sizes = [8, 4], strides = [1, 1]} : vector<8x96xf32> to vector<8x4xf32>
    %98 = arith.truncf %97 : vector<8x4xf32> to vector<8x4xbf16>
    %99 = vector.extract_strided_slice %1 {offsets = [0, 80], sizes = [8, 4], strides = [1, 1]} : vector<8x96xf32> to vector<8x4xf32>
    %100 = arith.truncf %99 : vector<8x4xf32> to vector<8x4xbf16>
    %cst_26 = arith.constant dense<0.000000e+00> : vector<8x8xf32>
    %101 = tpu.matmul %96, %98, %cst_26 {dimension_numbers = #tpu.dot_dimension_numbers<[1], [1], [0], [0], [0, 0, 1, 0], [], []>} : vector<8x4xbf16>, vector<8x4xbf16>, vector<8x8xf32> -> vector<8x8xf32>
    %cst_27 = arith.constant -1.000000e+09 : f32
    %102 = vector.broadcast %cst_27 : f32 to vector<8x8xf32>
    %103 = arith.select %4, %101, %102 : vector<8x8xi1>, vector<8x8xf32>
    %cst_28 = arith.constant dense<0xFF800000> : vector<8xf32>
    %104 = vector.multi_reduction <maximumf>, %103, %cst_28 [1] : vector<8x8xf32> to vector<8xf32>
    %105 = vector.shape_cast %104 : vector<8xf32> to vector<8x1xf32>
    %106 = vector.broadcast %105 : vector<8x1xf32> to vector<8x8xf32>
    %107 = arith.subf %103, %106 : vector<8x8xf32>
    %108 = math.exp %107 : vector<8x8xf32>
    %cst_29 = arith.constant dense<0.000000e+00> : vector<8xf32>
    %109 = vector.multi_reduction <add>, %108, %cst_29 [1] : vector<8x8xf32> to vector<8xf32>
    %110 = vector.shape_cast %109 : vector<8xf32> to vector<8x1xf32>
    %111 = vector.broadcast %110 : vector<8x1xf32> to vector<8x8xf32>
    %112 = arith.divf %108, %111 : vector<8x8xf32>
    %113 = arith.truncf %112 : vector<8x8xf32> to vector<8x8xbf16>
    %cst_30 = arith.constant dense<0.000000e+00> : vector<8x4xf32>
    %114 = tpu.matmul %113, %100, %cst_30 {dimension_numbers = #tpu.dot_dimension_numbers<[1], [0], [0], [1], [0, 0, 1, 1], [], []>} : vector<8x8xbf16>, vector<8x4xbf16>, vector<8x4xf32> -> vector<8x4xf32>
    %115 = vector.extract_strided_slice %1 {offsets = [0, 20], sizes = [8, 4], strides = [1, 1]} : vector<8x96xf32> to vector<8x4xf32>
    %cst_31 = arith.constant 5.000000e-01 : f32
    %116 = vector.broadcast %cst_31 : f32 to vector<8x4xf32>
    %117 = arith.mulf %115, %116 : vector<8x4xf32>
    %118 = arith.truncf %117 : vector<8x4xf32> to vector<8x4xbf16>
    %119 = vector.extract_strided_slice %1 {offsets = [0, 52], sizes = [8, 4], strides = [1, 1]} : vector<8x96xf32> to vector<8x4xf32>
    %120 = arith.truncf %119 : vector<8x4xf32> to vector<8x4xbf16>
    %121 = vector.extract_strided_slice %1 {offsets = [0, 84], sizes = [8, 4], strides = [1, 1]} : vector<8x96xf32> to vector<8x4xf32>
    %122 = arith.truncf %121 : vector<8x4xf32> to vector<8x4xbf16>
    %cst_32 = arith.constant dense<0.000000e+00> : vector<8x8xf32>
    %123 = tpu.matmul %118, %120, %cst_32 {dimension_numbers = #tpu.dot_dimension_numbers<[1], [1], [0], [0], [0, 0, 1, 0], [], []>} : vector<8x4xbf16>, vector<8x4xbf16>, vector<8x8xf32> -> vector<8x8xf32>
    %cst_33 = arith.constant -1.000000e+09 : f32
    %124 = vector.broadcast %cst_33 : f32 to vector<8x8xf32>
    %125 = arith.select %4, %123, %124 : vector<8x8xi1>, vector<8x8xf32>
    %cst_34 = arith.constant dense<0xFF800000> : vector<8xf32>
    %126 = vector.multi_reduction <maximumf>, %125, %cst_34 [1] : vector<8x8xf32> to vector<8xf32>
    %127 = vector.shape_cast %126 : vector<8xf32> to vector<8x1xf32>
    %128 = vector.broadcast %127 : vector<8x1xf32> to vector<8x8xf32>
    %129 = arith.subf %125, %128 : vector<8x8xf32>
    %130 = math.exp %129 : vector<8x8xf32>
    %cst_35 = arith.constant dense<0.000000e+00> : vector<8xf32>
    %131 = vector.multi_reduction <add>, %130, %cst_35 [1] : vector<8x8xf32> to vector<8xf32>
    %132 = vector.shape_cast %131 : vector<8xf32> to vector<8x1xf32>
    %133 = vector.broadcast %132 : vector<8x1xf32> to vector<8x8xf32>
    %134 = arith.divf %130, %133 : vector<8x8xf32>
    %135 = arith.truncf %134 : vector<8x8xf32> to vector<8x8xbf16>
    %cst_36 = arith.constant dense<0.000000e+00> : vector<8x4xf32>
    %136 = tpu.matmul %135, %122, %cst_36 {dimension_numbers = #tpu.dot_dimension_numbers<[1], [0], [0], [1], [0, 0, 1, 1], [], []>} : vector<8x8xbf16>, vector<8x4xbf16>, vector<8x4xf32> -> vector<8x4xf32>
    %137 = vector.extract_strided_slice %1 {offsets = [0, 24], sizes = [8, 4], strides = [1, 1]} : vector<8x96xf32> to vector<8x4xf32>
    %cst_37 = arith.constant 5.000000e-01 : f32
    %138 = vector.broadcast %cst_37 : f32 to vector<8x4xf32>
    %139 = arith.mulf %137, %138 : vector<8x4xf32>
    %140 = arith.truncf %139 : vector<8x4xf32> to vector<8x4xbf16>
    %141 = vector.extract_strided_slice %1 {offsets = [0, 56], sizes = [8, 4], strides = [1, 1]} : vector<8x96xf32> to vector<8x4xf32>
    %142 = arith.truncf %141 : vector<8x4xf32> to vector<8x4xbf16>
    %143 = vector.extract_strided_slice %1 {offsets = [0, 88], sizes = [8, 4], strides = [1, 1]} : vector<8x96xf32> to vector<8x4xf32>
    %144 = arith.truncf %143 : vector<8x4xf32> to vector<8x4xbf16>
    %cst_38 = arith.constant dense<0.000000e+00> : vector<8x8xf32>
    %145 = tpu.matmul %140, %142, %cst_38 {dimension_numbers = #tpu.dot_dimension_numbers<[1], [1], [0], [0], [0, 0, 1, 0], [], []>} : vector<8x4xbf16>, vector<8x4xbf16>, vector<8x8xf32> -> vector<8x8xf32>
    %cst_39 = arith.constant -1.000000e+09 : f32
    %146 = vector.broadcast %cst_39 : f32 to vector<8x8xf32>
    %147 = arith.select %4, %145, %146 : vector<8x8xi1>, vector<8x8xf32>
    %cst_40 = arith.constant dense<0xFF800000> : vector<8xf32>
    %148 = vector.multi_reduction <maximumf>, %147, %cst_40 [1] : vector<8x8xf32> to vector<8xf32>
    %149 = vector.shape_cast %148 : vector<8xf32> to vector<8x1xf32>
    %150 = vector.broadcast %149 : vector<8x1xf32> to vector<8x8xf32>
    %151 = arith.subf %147, %150 : vector<8x8xf32>
    %152 = math.exp %151 : vector<8x8xf32>
    %cst_41 = arith.constant dense<0.000000e+00> : vector<8xf32>
    %153 = vector.multi_reduction <add>, %152, %cst_41 [1] : vector<8x8xf32> to vector<8xf32>
    %154 = vector.shape_cast %153 : vector<8xf32> to vector<8x1xf32>
    %155 = vector.broadcast %154 : vector<8x1xf32> to vector<8x8xf32>
    %156 = arith.divf %152, %155 : vector<8x8xf32>
    %157 = arith.truncf %156 : vector<8x8xf32> to vector<8x8xbf16>
    %cst_42 = arith.constant dense<0.000000e+00> : vector<8x4xf32>
    %158 = tpu.matmul %157, %144, %cst_42 {dimension_numbers = #tpu.dot_dimension_numbers<[1], [0], [0], [1], [0, 0, 1, 1], [], []>} : vector<8x8xbf16>, vector<8x4xbf16>, vector<8x4xf32> -> vector<8x4xf32>
    %159 = vector.extract_strided_slice %1 {offsets = [0, 28], sizes = [8, 4], strides = [1, 1]} : vector<8x96xf32> to vector<8x4xf32>
    %cst_43 = arith.constant 5.000000e-01 : f32
    %160 = vector.broadcast %cst_43 : f32 to vector<8x4xf32>
    %161 = arith.mulf %159, %160 : vector<8x4xf32>
    %162 = arith.truncf %161 : vector<8x4xf32> to vector<8x4xbf16>
    %163 = vector.extract_strided_slice %1 {offsets = [0, 60], sizes = [8, 4], strides = [1, 1]} : vector<8x96xf32> to vector<8x4xf32>
    %164 = arith.truncf %163 : vector<8x4xf32> to vector<8x4xbf16>
    %165 = vector.extract_strided_slice %1 {offsets = [0, 92], sizes = [8, 4], strides = [1, 1]} : vector<8x96xf32> to vector<8x4xf32>
    %166 = arith.truncf %165 : vector<8x4xf32> to vector<8x4xbf16>
    %cst_44 = arith.constant dense<0.000000e+00> : vector<8x8xf32>
    %167 = tpu.matmul %162, %164, %cst_44 {dimension_numbers = #tpu.dot_dimension_numbers<[1], [1], [0], [0], [0, 0, 1, 0], [], []>} : vector<8x4xbf16>, vector<8x4xbf16>, vector<8x8xf32> -> vector<8x8xf32>
    %cst_45 = arith.constant -1.000000e+09 : f32
    %168 = vector.broadcast %cst_45 : f32 to vector<8x8xf32>
    %169 = arith.select %4, %167, %168 : vector<8x8xi1>, vector<8x8xf32>
    %cst_46 = arith.constant dense<0xFF800000> : vector<8xf32>
    %170 = vector.multi_reduction <maximumf>, %169, %cst_46 [1] : vector<8x8xf32> to vector<8xf32>
    %171 = vector.shape_cast %170 : vector<8xf32> to vector<8x1xf32>
    %172 = vector.broadcast %171 : vector<8x1xf32> to vector<8x8xf32>
    %173 = arith.subf %169, %172 : vector<8x8xf32>
    %174 = math.exp %173 : vector<8x8xf32>
    %cst_47 = arith.constant dense<0.000000e+00> : vector<8xf32>
    %175 = vector.multi_reduction <add>, %174, %cst_47 [1] : vector<8x8xf32> to vector<8xf32>
    %176 = vector.shape_cast %175 : vector<8xf32> to vector<8x1xf32>
    %177 = vector.broadcast %176 : vector<8x1xf32> to vector<8x8xf32>
    %178 = arith.divf %174, %177 : vector<8x8xf32>
    %179 = arith.truncf %178 : vector<8x8xf32> to vector<8x8xbf16>
    %cst_48 = arith.constant dense<0.000000e+00> : vector<8x4xf32>
    %180 = tpu.matmul %179, %166, %cst_48 {dimension_numbers = #tpu.dot_dimension_numbers<[1], [0], [0], [1], [0, 0, 1, 1], [], []>} : vector<8x8xbf16>, vector<8x4xbf16>, vector<8x4xf32> -> vector<8x4xf32>
    %181 = tpu.concatenate %26, %48, %70, %92, %114, %136, %158, %180 in 1 : vector<8x4xf32>, vector<8x4xf32>, vector<8x4xf32>, vector<8x4xf32>, vector<8x4xf32>, vector<8x4xf32>, vector<8x4xf32>, vector<8x4xf32> -> vector<8x32xf32>
    %c0_49 = arith.constant 0 : index
    %c0_50 = arith.constant 0 : index
    %c0_51 = arith.constant 0 : index
    %182 = vector.load %arg2[%c0_49, %c0_50, %c0_51] : memref<1x8x32xf32, #tpu.memory_space<vmem>>, vector<1x8x32xf32>
    %183 = vector.shape_cast %182 : vector<1x8x32xf32> to vector<8x32xf32>
    %184 = vector.shape_cast %181 : vector<8x32xf32> to vector<1x8x32xf32>
    tpu.vector_store %arg2[%c0_49, %c0_50, %c0_51], %184 {strides = array<i32>} : memref<1x8x32xf32, #tpu.memory_space<vmem>>, vector<1x8x32xf32>,
    return
  }
  func.func @transform_0(%arg0: i32) -> (i32, i32, i32) {
    %c0_i32 = arith.constant 0 : i32
    %c0_i32_0 = arith.constant 0 : i32
    %c0_i32_1 = arith.constant 0 : i32
    return %arg0, %c0_i32, %c0_i32_0 : i32, i32, i32
  }
  func.func @transform_1(%arg0: i32) -> (i32, i32, i32) {
    %c0_i32 = arith.constant 0 : i32
    %c0_i32_0 = arith.constant 0 : i32
    %c0_i32_1 = arith.constant 0 : i32
    return %arg0, %c0_i32, %c0_i32_0 : i32, i32, i32
  }
}

module attributes {stable_mosaic.version = 11 : i64} {
  func.func @_linear_kernel(%arg0: i32, %arg1: i32, %arg2: i32, %arg3: memref<16x32xf32, #tpu.memory_space<vmem>>, %arg4: memref<32x32xbf16, #tpu.memory_space<vmem>>, %arg5: memref<1x32xf32, #tpu.memory_space<vmem>>, %arg6: memref<16x32xf32, #tpu.memory_space<vmem>>, %arg7: memref<16x32xf32, #tpu.memory_space<vmem>>) attributes {dimension_semantics = [#tpu.dimension_semantics<parallel>, #tpu.dimension_semantics<parallel>, #tpu.dimension_semantics<arbitrary>], iteration_bounds = array<i64: 1, 1, 1>, scalar_prefetch = 0 : i64, scratch_operands = 1 : i64, tpu.core_type = #tpu.core_type<tc>, window_params = [{transform_indices = @transform_0, window_bounds = array<i64: 16, 32>}, {transform_indices = @transform_1, window_bounds = array<i64: 32, 32>}, {transform_indices = @transform_2, window_bounds = array<i64: 1, 32>}, {transform_indices = @transform_3, window_bounds = array<i64: 16, 32>}]} {
    %c0_i32 = arith.constant 0 : i32
    %0 = arith.cmpi eq, %arg2, %c0_i32 : i32
    %1 = arith.extui %0 : i1 to i32
    %c0_i32_0 = arith.constant 0 : i32
    %2 = arith.cmpi ne, %1, %c0_i32_0 : i32
    scf.if %2 {
      %cst_10 = arith.constant 0.000000e+00 : f32
      %13 = vector.broadcast %cst_10 : f32 to vector<16x32xf32>
      %c0_11 = arith.constant 0 : index
      %c0_12 = arith.constant 0 : index
      %14 = vector.load %arg7[%c0_11, %c0_12] : memref<16x32xf32, #tpu.memory_space<vmem>>, vector<16x32xf32>
      tpu.vector_store %arg7[%c0_11, %c0_12], %13 {strides = array<i32>} : memref<16x32xf32, #tpu.memory_space<vmem>>, vector<16x32xf32>,
    } else {
    }
    %c0 = arith.constant 0 : index
    %c0_1 = arith.constant 0 : index
    %3 = vector.load %arg7[%c0, %c0_1] : memref<16x32xf32, #tpu.memory_space<vmem>>, vector<16x32xf32>
    %c0_2 = arith.constant 0 : index
    %c0_3 = arith.constant 0 : index
    %4 = vector.load %arg3[%c0_2, %c0_3] : memref<16x32xf32, #tpu.memory_space<vmem>>, vector<16x32xf32>
    %5 = arith.truncf %4 : vector<16x32xf32> to vector<16x32xbf16>
    %c0_4 = arith.constant 0 : index
    %c0_5 = arith.constant 0 : index
    %6 = vector.load %arg4[%c0_4, %c0_5] : memref<32x32xbf16, #tpu.memory_space<vmem>>, vector<32x32xbf16>
    %cst = arith.constant dense<0.000000e+00> : vector<16x32xf32>
    %7 = tpu.matmul %5, %6, %cst {dimension_numbers = #tpu.dot_dimension_numbers<[1], [0], [0], [1], [0, 0, 1, 1], [], []>} : vector<16x32xbf16>, vector<32x32xbf16>, vector<16x32xf32> -> vector<16x32xf32>
    %8 = arith.addf %3, %7 : vector<16x32xf32>
    %c0_6 = arith.constant 0 : index
    %c0_7 = arith.constant 0 : index
    %9 = vector.load %arg7[%c0_6, %c0_7] : memref<16x32xf32, #tpu.memory_space<vmem>>, vector<16x32xf32>
    tpu.vector_store %arg7[%c0_6, %c0_7], %8 {strides = array<i32>} : memref<16x32xf32, #tpu.memory_space<vmem>>, vector<16x32xf32>,
    %c0_i32_8 = arith.constant 0 : i32
    %10 = arith.cmpi eq, %arg2, %c0_i32_8 : i32
    %11 = arith.extui %10 : i1 to i32
    %c0_i32_9 = arith.constant 0 : i32
    %12 = arith.cmpi ne, %11, %c0_i32_9 : i32
    scf.if %12 {
      %c0_10 = arith.constant 0 : index
      %c0_11 = arith.constant 0 : index
      %13 = vector.load %arg7[%c0_10, %c0_11] : memref<16x32xf32, #tpu.memory_space<vmem>>, vector<16x32xf32>
      %c0_12 = arith.constant 0 : index
      %c0_13 = arith.constant 0 : index
      %14 = vector.load %arg5[%c0_12, %c0_13] : memref<1x32xf32, #tpu.memory_space<vmem>>, vector<1x32xf32>
      %15 = vector.broadcast %14 : vector<1x32xf32> to vector<16x32xf32>
      %16 = arith.addf %13, %15 : vector<16x32xf32>
      %c0_14 = arith.constant 0 : index
      %c0_15 = arith.constant 0 : index
      %17 = vector.load %arg6[%c0_14, %c0_15] : memref<16x32xf32, #tpu.memory_space<vmem>>, vector<16x32xf32>
      tpu.vector_store %arg6[%c0_14, %c0_15], %16 {strides = array<i32>} : memref<16x32xf32, #tpu.memory_space<vmem>>, vector<16x32xf32>,
    } else {
    }
    return
  }
  func.func @transform_0(%arg0: i32, %arg1: i32, %arg2: i32) -> (i32, i32) {
    %c0_i32 = arith.constant 0 : i32
    return %arg0, %arg2 : i32, i32
  }
  func.func @transform_1(%arg0: i32, %arg1: i32, %arg2: i32) -> (i32, i32) {
    %c0_i32 = arith.constant 0 : i32
    return %arg2, %arg1 : i32, i32
  }
  func.func @transform_2(%arg0: i32, %arg1: i32, %arg2: i32) -> (i32, i32) {
    %c0_i32 = arith.constant 0 : i32
    %c0_i32_0 = arith.constant 0 : i32
    return %c0_i32, %arg1 : i32, i32
  }
  func.func @transform_3(%arg0: i32, %arg1: i32, %arg2: i32) -> (i32, i32) {
    %c0_i32 = arith.constant 0 : i32
    return %arg0, %arg1 : i32, i32
  }
}

module attributes {stable_mosaic.version = 11 : i64} {
  func.func @_out_proj_add_ln_kernel(%arg0: i32, %arg1: memref<16x32xf32, #tpu.memory_space<vmem>>, %arg2: memref<32x32xbf16, #tpu.memory_space<vmem>>, %arg3: memref<1x32xf32, #tpu.memory_space<vmem>>, %arg4: memref<16x32xf32, #tpu.memory_space<vmem>>, %arg5: memref<1x32xf32, #tpu.memory_space<vmem>>, %arg6: memref<1x32xf32, #tpu.memory_space<vmem>>, %arg7: memref<16x32xf32, #tpu.memory_space<vmem>>) attributes {dimension_semantics = [#tpu.dimension_semantics<parallel>], iteration_bounds = array<i64: 1>, scalar_prefetch = 0 : i64, scratch_operands = 0 : i64, tpu.core_type = #tpu.core_type<tc>, window_params = [{transform_indices = @transform_0, window_bounds = array<i64: 16, 32>}, {pipeline_mode = #tpu.pipeline_mode<synchronous>, transform_indices = @transform_1, window_bounds = array<i64: 32, 32>}, {pipeline_mode = #tpu.pipeline_mode<synchronous>, transform_indices = @transform_2, window_bounds = array<i64: 1, 32>}, {transform_indices = @transform_3, window_bounds = array<i64: 16, 32>}, {pipeline_mode = #tpu.pipeline_mode<synchronous>, transform_indices = @transform_4, window_bounds = array<i64: 1, 32>}, {pipeline_mode = #tpu.pipeline_mode<synchronous>, transform_indices = @transform_5, window_bounds = array<i64: 1, 32>}, {transform_indices = @transform_6, window_bounds = array<i64: 16, 32>}]} {
    %c0 = arith.constant 0 : index
    %c0_0 = arith.constant 0 : index
    %0 = vector.load %arg1[%c0, %c0_0] : memref<16x32xf32, #tpu.memory_space<vmem>>, vector<16x32xf32>
    %1 = arith.truncf %0 : vector<16x32xf32> to vector<16x32xbf16>
    %c0_1 = arith.constant 0 : index
    %c0_2 = arith.constant 0 : index
    %2 = vector.load %arg2[%c0_1, %c0_2] : memref<32x32xbf16, #tpu.memory_space<vmem>>, vector<32x32xbf16>
    %cst = arith.constant dense<0.000000e+00> : vector<16x32xf32>
    %3 = tpu.matmul %1, %2, %cst {dimension_numbers = #tpu.dot_dimension_numbers<[1], [0], [0], [1], [0, 0, 1, 1], [], []>} : vector<16x32xbf16>, vector<32x32xbf16>, vector<16x32xf32> -> vector<16x32xf32>
    %c0_3 = arith.constant 0 : index
    %c0_4 = arith.constant 0 : index
    %4 = vector.load %arg3[%c0_3, %c0_4] : memref<1x32xf32, #tpu.memory_space<vmem>>, vector<1x32xf32>
    %5 = vector.broadcast %4 : vector<1x32xf32> to vector<16x32xf32>
    %6 = arith.addf %3, %5 : vector<16x32xf32>
    %c0_5 = arith.constant 0 : index
    %c0_6 = arith.constant 0 : index
    %7 = vector.load %arg4[%c0_5, %c0_6] : memref<16x32xf32, #tpu.memory_space<vmem>>, vector<16x32xf32>
    %8 = arith.addf %7, %6 : vector<16x32xf32>
    %cst_7 = arith.constant dense<0.000000e+00> : vector<16xf32>
    %9 = vector.multi_reduction <add>, %8, %cst_7 [1] : vector<16x32xf32> to vector<16xf32>
    %10 = vector.shape_cast %9 : vector<16xf32> to vector<16x1xf32>
    %cst_8 = arith.constant 3.200000e+01 : f32
    %11 = vector.broadcast %cst_8 : f32 to vector<16x1xf32>
    %12 = arith.divf %10, %11 : vector<16x1xf32>
    %13 = vector.broadcast %12 : vector<16x1xf32> to vector<16x32xf32>
    %14 = arith.subf %8, %13 : vector<16x32xf32>
    %15 = arith.mulf %14, %14 : vector<16x32xf32>
    %cst_9 = arith.constant dense<0.000000e+00> : vector<16xf32>
    %16 = vector.multi_reduction <add>, %15, %cst_9 [1] : vector<16x32xf32> to vector<16xf32>
    %17 = vector.shape_cast %16 : vector<16xf32> to vector<16x1xf32>
    %cst_10 = arith.constant 3.200000e+01 : f32
    %18 = vector.broadcast %cst_10 : f32 to vector<16x1xf32>
    %19 = arith.divf %17, %18 : vector<16x1xf32>
    %cst_11 = arith.constant 9.99999974E-6 : f32
    %20 = vector.broadcast %cst_11 : f32 to vector<16x1xf32>
    %21 = arith.addf %19, %20 : vector<16x1xf32>
    %22 = math.rsqrt %21 : vector<16x1xf32>
    %23 = vector.broadcast %22 : vector<16x1xf32> to vector<16x32xf32>
    %24 = arith.mulf %14, %23 : vector<16x32xf32>
    %c0_12 = arith.constant 0 : index
    %c0_13 = arith.constant 0 : index
    %25 = vector.load %arg5[%c0_12, %c0_13] : memref<1x32xf32, #tpu.memory_space<vmem>>, vector<1x32xf32>
    %26 = vector.broadcast %25 : vector<1x32xf32> to vector<16x32xf32>
    %27 = arith.mulf %24, %26 : vector<16x32xf32>
    %c0_14 = arith.constant 0 : index
    %c0_15 = arith.constant 0 : index
    %28 = vector.load %arg6[%c0_14, %c0_15] : memref<1x32xf32, #tpu.memory_space<vmem>>, vector<1x32xf32>
    %29 = vector.broadcast %28 : vector<1x32xf32> to vector<16x32xf32>
    %30 = arith.addf %27, %29 : vector<16x32xf32>
    %c0_16 = arith.constant 0 : index
    %c0_17 = arith.constant 0 : index
    %31 = vector.load %arg7[%c0_16, %c0_17] : memref<16x32xf32, #tpu.memory_space<vmem>>, vector<16x32xf32>
    tpu.vector_store %arg7[%c0_16, %c0_17], %30 {strides = array<i32>} : memref<16x32xf32, #tpu.memory_space<vmem>>, vector<16x32xf32>,
    return
  }
  func.func @transform_0(%arg0: i32) -> (i32, i32) {
    %c0_i32 = arith.constant 0 : i32
    %c0_i32_0 = arith.constant 0 : i32
    return %arg0, %c0_i32 : i32, i32
  }
  func.func @transform_1(%arg0: i32) -> (i32, i32) {
    %c0_i32 = arith.constant 0 : i32
    %c0_i32_0 = arith.constant 0 : i32
    %c0_i32_1 = arith.constant 0 : i32
    return %c0_i32, %c0_i32_0 : i32, i32
  }
  func.func @transform_2(%arg0: i32) -> (i32, i32) {
    %c0_i32 = arith.constant 0 : i32
    %c0_i32_0 = arith.constant 0 : i32
    %c0_i32_1 = arith.constant 0 : i32
    return %c0_i32, %c0_i32_0 : i32, i32
  }
  func.func @transform_3(%arg0: i32) -> (i32, i32) {
    %c0_i32 = arith.constant 0 : i32
    %c0_i32_0 = arith.constant 0 : i32
    return %arg0, %c0_i32 : i32, i32
  }
  func.func @transform_4(%arg0: i32) -> (i32, i32) {
    %c0_i32 = arith.constant 0 : i32
    %c0_i32_0 = arith.constant 0 : i32
    %c0_i32_1 = arith.constant 0 : i32
    return %c0_i32, %c0_i32_0 : i32, i32
  }
  func.func @transform_5(%arg0: i32) -> (i32, i32) {
    %c0_i32 = arith.constant 0 : i32
    %c0_i32_0 = arith.constant 0 : i32
    %c0_i32_1 = arith.constant 0 : i32
    return %c0_i32, %c0_i32_0 : i32, i32
  }
  func.func @transform_6(%arg0: i32) -> (i32, i32) {
    %c0_i32 = arith.constant 0 : i32
    %c0_i32_0 = arith.constant 0 : i32
    return %arg0, %c0_i32 : i32, i32
  }
}

module attributes {stable_mosaic.version = 11 : i64} {
  func.func @_attention_kernel(%arg0: i32, %arg1: memref<1x8x32xf32, #tpu.memory_space<vmem>>, %arg2: memref<1x8x64xf32, #tpu.memory_space<vmem>>, %arg3: memref<1x1x8xf32, #tpu.memory_space<vmem>>, %arg4: memref<1x8x32xf32, #tpu.memory_space<vmem>>) attributes {dimension_semantics = [#tpu.dimension_semantics<parallel>], iteration_bounds = array<i64: 2>, scalar_prefetch = 0 : i64, scratch_operands = 0 : i64, tpu.core_type = #tpu.core_type<tc>, window_params = [{transform_indices = @transform_0, window_bounds = array<i64: 1, 8, 32>}, {transform_indices = @transform_1, window_bounds = array<i64: 1, 8, 64>}, {transform_indices = @transform_2, window_bounds = array<i64: 1, 1, 8>}, {transform_indices = @transform_3, window_bounds = array<i64: 1, 8, 32>}]} {
    %c0 = arith.constant 0 : index
    %c0_0 = arith.constant 0 : index
    %c0_1 = arith.constant 0 : index
    %0 = vector.load %arg1[%c0, %c0_0, %c0_1] : memref<1x8x32xf32, #tpu.memory_space<vmem>>, vector<1x8x32xf32>
    %1 = vector.shape_cast %0 : vector<1x8x32xf32> to vector<8x32xf32>
    %c0_2 = arith.constant 0 : index
    %c0_3 = arith.constant 0 : index
    %c0_4 = arith.constant 0 : index
    %2 = vector.load %arg2[%c0_2, %c0_3, %c0_4] : memref<1x8x64xf32, #tpu.memory_space<vmem>>, vector<1x8x64xf32>
    %3 = vector.shape_cast %2 : vector<1x8x64xf32> to vector<8x64xf32>
    %c0_5 = arith.constant 0 : index
    %c0_6 = arith.constant 0 : index
    %c0_7 = arith.constant 0 : index
    %4 = vector.load %arg3[%c0_5, %c0_6, %c0_7] : memref<1x1x8xf32, #tpu.memory_space<vmem>>, vector<1x1x8xf32>
    %5 = vector.shape_cast %4 : vector<1x1x8xf32> to vector<1x8xf32>
    %6 = vector.extract_strided_slice %1 {offsets = [0, 0], sizes = [8, 4], strides = [1, 1]} : vector<8x32xf32> to vector<8x4xf32>
    %cst = arith.constant 5.000000e-01 : f32
    %7 = vector.broadcast %cst : f32 to vector<8x4xf32>
    %8 = arith.mulf %6, %7 : vector<8x4xf32>
    %9 = arith.truncf %8 : vector<8x4xf32> to vector<8x4xbf16>
    %10 = vector.extract_strided_slice %3 {offsets = [0, 0], sizes = [8, 4], strides = [1, 1]} : vector<8x64xf32> to vector<8x4xf32>
    %11 = arith.truncf %10 : vector<8x4xf32> to vector<8x4xbf16>
    %12 = vector.extract_strided_slice %3 {offsets = [0, 32], sizes = [8, 4], strides = [1, 1]} : vector<8x64xf32> to vector<8x4xf32>
    %13 = arith.truncf %12 : vector<8x4xf32> to vector<8x4xbf16>
    %cst_8 = arith.constant dense<0.000000e+00> : vector<8x8xf32>
    %14 = tpu.matmul %9, %11, %cst_8 {dimension_numbers = #tpu.dot_dimension_numbers<[1], [1], [0], [0], [0, 0, 1, 0], [], []>} : vector<8x4xbf16>, vector<8x4xbf16>, vector<8x8xf32> -> vector<8x8xf32>
    %cst_9 = arith.constant 0.000000e+00 : f32
    %15 = vector.broadcast %cst_9 : f32 to vector<1x8xf32>
    %16 = arith.cmpf oeq, %5, %15 : vector<1x8xf32>
    %cst_10 = arith.constant -1.000000e+09 : f32
    %17 = vector.shape_cast %16 : vector<1x8xi1> to vector<1x8xi1>
    %18 = vector.broadcast %17 : vector<1x8xi1> to vector<8x8xi1>
    %19 = vector.broadcast %cst_10 : f32 to vector<8x8xf32>
    %20 = arith.select %18, %19, %14 : vector<8x8xi1>, vector<8x8xf32>
    %cst_11 = arith.constant dense<0xFF800000> : vector<8xf32>
    %21 = vector.multi_reduction <maximumf>, %20, %cst_11 [1] : vector<8x8xf32> to vector<8xf32>
    %22 = vector.shape_cast %21 : vector<8xf32> to vector<8x1xf32>
    %23 = vector.broadcast %22 : vector<8x1xf32> to vector<8x8xf32>
    %24 = arith.subf %20, %23 : vector<8x8xf32>
    %25 = math.exp %24 : vector<8x8xf32>
    %cst_12 = arith.constant dense<0.000000e+00> : vector<8xf32>
    %26 = vector.multi_reduction <add>, %25, %cst_12 [1] : vector<8x8xf32> to vector<8xf32>
    %27 = vector.shape_cast %26 : vector<8xf32> to vector<8x1xf32>
    %28 = vector.broadcast %27 : vector<8x1xf32> to vector<8x8xf32>
    %29 = arith.divf %25, %28 : vector<8x8xf32>
    %30 = arith.truncf %29 : vector<8x8xf32> to vector<8x8xbf16>
    %cst_13 = arith.constant dense<0.000000e+00> : vector<8x4xf32>
    %31 = tpu.matmul %30, %13, %cst_13 {dimension_numbers = #tpu.dot_dimension_numbers<[1], [0], [0], [1], [0, 0, 1, 1], [], []>} : vector<8x8xbf16>, vector<8x4xbf16>, vector<8x4xf32> -> vector<8x4xf32>
    %32 = vector.extract_strided_slice %1 {offsets = [0, 4], sizes = [8, 4], strides = [1, 1]} : vector<8x32xf32> to vector<8x4xf32>
    %cst_14 = arith.constant 5.000000e-01 : f32
    %33 = vector.broadcast %cst_14 : f32 to vector<8x4xf32>
    %34 = arith.mulf %32, %33 : vector<8x4xf32>
    %35 = arith.truncf %34 : vector<8x4xf32> to vector<8x4xbf16>
    %36 = vector.extract_strided_slice %3 {offsets = [0, 4], sizes = [8, 4], strides = [1, 1]} : vector<8x64xf32> to vector<8x4xf32>
    %37 = arith.truncf %36 : vector<8x4xf32> to vector<8x4xbf16>
    %38 = vector.extract_strided_slice %3 {offsets = [0, 36], sizes = [8, 4], strides = [1, 1]} : vector<8x64xf32> to vector<8x4xf32>
    %39 = arith.truncf %38 : vector<8x4xf32> to vector<8x4xbf16>
    %cst_15 = arith.constant dense<0.000000e+00> : vector<8x8xf32>
    %40 = tpu.matmul %35, %37, %cst_15 {dimension_numbers = #tpu.dot_dimension_numbers<[1], [1], [0], [0], [0, 0, 1, 0], [], []>} : vector<8x4xbf16>, vector<8x4xbf16>, vector<8x8xf32> -> vector<8x8xf32>
    %cst_16 = arith.constant 0.000000e+00 : f32
    %41 = vector.broadcast %cst_16 : f32 to vector<1x8xf32>
    %42 = arith.cmpf oeq, %5, %41 : vector<1x8xf32>
    %cst_17 = arith.constant -1.000000e+09 : f32
    %43 = vector.shape_cast %42 : vector<1x8xi1> to vector<1x8xi1>
    %44 = vector.broadcast %43 : vector<1x8xi1> to vector<8x8xi1>
    %45 = vector.broadcast %cst_17 : f32 to vector<8x8xf32>
    %46 = arith.select %44, %45, %40 : vector<8x8xi1>, vector<8x8xf32>
    %cst_18 = arith.constant dense<0xFF800000> : vector<8xf32>
    %47 = vector.multi_reduction <maximumf>, %46, %cst_18 [1] : vector<8x8xf32> to vector<8xf32>
    %48 = vector.shape_cast %47 : vector<8xf32> to vector<8x1xf32>
    %49 = vector.broadcast %48 : vector<8x1xf32> to vector<8x8xf32>
    %50 = arith.subf %46, %49 : vector<8x8xf32>
    %51 = math.exp %50 : vector<8x8xf32>
    %cst_19 = arith.constant dense<0.000000e+00> : vector<8xf32>
    %52 = vector.multi_reduction <add>, %51, %cst_19 [1] : vector<8x8xf32> to vector<8xf32>
    %53 = vector.shape_cast %52 : vector<8xf32> to vector<8x1xf32>
    %54 = vector.broadcast %53 : vector<8x1xf32> to vector<8x8xf32>
    %55 = arith.divf %51, %54 : vector<8x8xf32>
    %56 = arith.truncf %55 : vector<8x8xf32> to vector<8x8xbf16>
    %cst_20 = arith.constant dense<0.000000e+00> : vector<8x4xf32>
    %57 = tpu.matmul %56, %39, %cst_20 {dimension_numbers = #tpu.dot_dimension_numbers<[1], [0], [0], [1], [0, 0, 1, 1], [], []>} : vector<8x8xbf16>, vector<8x4xbf16>, vector<8x4xf32> -> vector<8x4xf32>
    %58 = vector.extract_strided_slice %1 {offsets = [0, 8], sizes = [8, 4], strides = [1, 1]} : vector<8x32xf32> to vector<8x4xf32>
    %cst_21 = arith.constant 5.000000e-01 : f32
    %59 = vector.broadcast %cst_21 : f32 to vector<8x4xf32>
    %60 = arith.mulf %58, %59 : vector<8x4xf32>
    %61 = arith.truncf %60 : vector<8x4xf32> to vector<8x4xbf16>
    %62 = vector.extract_strided_slice %3 {offsets = [0, 8], sizes = [8, 4], strides = [1, 1]} : vector<8x64xf32> to vector<8x4xf32>
    %63 = arith.truncf %62 : vector<8x4xf32> to vector<8x4xbf16>
    %64 = vector.extract_strided_slice %3 {offsets = [0, 40], sizes = [8, 4], strides = [1, 1]} : vector<8x64xf32> to vector<8x4xf32>
    %65 = arith.truncf %64 : vector<8x4xf32> to vector<8x4xbf16>
    %cst_22 = arith.constant dense<0.000000e+00> : vector<8x8xf32>
    %66 = tpu.matmul %61, %63, %cst_22 {dimension_numbers = #tpu.dot_dimension_numbers<[1], [1], [0], [0], [0, 0, 1, 0], [], []>} : vector<8x4xbf16>, vector<8x4xbf16>, vector<8x8xf32> -> vector<8x8xf32>
    %cst_23 = arith.constant 0.000000e+00 : f32
    %67 = vector.broadcast %cst_23 : f32 to vector<1x8xf32>
    %68 = arith.cmpf oeq, %5, %67 : vector<1x8xf32>
    %cst_24 = arith.constant -1.000000e+09 : f32
    %69 = vector.shape_cast %68 : vector<1x8xi1> to vector<1x8xi1>
    %70 = vector.broadcast %69 : vector<1x8xi1> to vector<8x8xi1>
    %71 = vector.broadcast %cst_24 : f32 to vector<8x8xf32>
    %72 = arith.select %70, %71, %66 : vector<8x8xi1>, vector<8x8xf32>
    %cst_25 = arith.constant dense<0xFF800000> : vector<8xf32>
    %73 = vector.multi_reduction <maximumf>, %72, %cst_25 [1] : vector<8x8xf32> to vector<8xf32>
    %74 = vector.shape_cast %73 : vector<8xf32> to vector<8x1xf32>
    %75 = vector.broadcast %74 : vector<8x1xf32> to vector<8x8xf32>
    %76 = arith.subf %72, %75 : vector<8x8xf32>
    %77 = math.exp %76 : vector<8x8xf32>
    %cst_26 = arith.constant dense<0.000000e+00> : vector<8xf32>
    %78 = vector.multi_reduction <add>, %77, %cst_26 [1] : vector<8x8xf32> to vector<8xf32>
    %79 = vector.shape_cast %78 : vector<8xf32> to vector<8x1xf32>
    %80 = vector.broadcast %79 : vector<8x1xf32> to vector<8x8xf32>
    %81 = arith.divf %77, %80 : vector<8x8xf32>
    %82 = arith.truncf %81 : vector<8x8xf32> to vector<8x8xbf16>
    %cst_27 = arith.constant dense<0.000000e+00> : vector<8x4xf32>
    %83 = tpu.matmul %82, %65, %cst_27 {dimension_numbers = #tpu.dot_dimension_numbers<[1], [0], [0], [1], [0, 0, 1, 1], [], []>} : vector<8x8xbf16>, vector<8x4xbf16>, vector<8x4xf32> -> vector<8x4xf32>
    %84 = vector.extract_strided_slice %1 {offsets = [0, 12], sizes = [8, 4], strides = [1, 1]} : vector<8x32xf32> to vector<8x4xf32>
    %cst_28 = arith.constant 5.000000e-01 : f32
    %85 = vector.broadcast %cst_28 : f32 to vector<8x4xf32>
    %86 = arith.mulf %84, %85 : vector<8x4xf32>
    %87 = arith.truncf %86 : vector<8x4xf32> to vector<8x4xbf16>
    %88 = vector.extract_strided_slice %3 {offsets = [0, 12], sizes = [8, 4], strides = [1, 1]} : vector<8x64xf32> to vector<8x4xf32>
    %89 = arith.truncf %88 : vector<8x4xf32> to vector<8x4xbf16>
    %90 = vector.extract_strided_slice %3 {offsets = [0, 44], sizes = [8, 4], strides = [1, 1]} : vector<8x64xf32> to vector<8x4xf32>
    %91 = arith.truncf %90 : vector<8x4xf32> to vector<8x4xbf16>
    %cst_29 = arith.constant dense<0.000000e+00> : vector<8x8xf32>
    %92 = tpu.matmul %87, %89, %cst_29 {dimension_numbers = #tpu.dot_dimension_numbers<[1], [1], [0], [0], [0, 0, 1, 0], [], []>} : vector<8x4xbf16>, vector<8x4xbf16>, vector<8x8xf32> -> vector<8x8xf32>
    %cst_30 = arith.constant 0.000000e+00 : f32
    %93 = vector.broadcast %cst_30 : f32 to vector<1x8xf32>
    %94 = arith.cmpf oeq, %5, %93 : vector<1x8xf32>
    %cst_31 = arith.constant -1.000000e+09 : f32
    %95 = vector.shape_cast %94 : vector<1x8xi1> to vector<1x8xi1>
    %96 = vector.broadcast %95 : vector<1x8xi1> to vector<8x8xi1>
    %97 = vector.broadcast %cst_31 : f32 to vector<8x8xf32>
    %98 = arith.select %96, %97, %92 : vector<8x8xi1>, vector<8x8xf32>
    %cst_32 = arith.constant dense<0xFF800000> : vector<8xf32>
    %99 = vector.multi_reduction <maximumf>, %98, %cst_32 [1] : vector<8x8xf32> to vector<8xf32>
    %100 = vector.shape_cast %99 : vector<8xf32> to vector<8x1xf32>
    %101 = vector.broadcast %100 : vector<8x1xf32> to vector<8x8xf32>
    %102 = arith.subf %98, %101 : vector<8x8xf32>
    %103 = math.exp %102 : vector<8x8xf32>
    %cst_33 = arith.constant dense<0.000000e+00> : vector<8xf32>
    %104 = vector.multi_reduction <add>, %103, %cst_33 [1] : vector<8x8xf32> to vector<8xf32>
    %105 = vector.shape_cast %104 : vector<8xf32> to vector<8x1xf32>
    %106 = vector.broadcast %105 : vector<8x1xf32> to vector<8x8xf32>
    %107 = arith.divf %103, %106 : vector<8x8xf32>
    %108 = arith.truncf %107 : vector<8x8xf32> to vector<8x8xbf16>
    %cst_34 = arith.constant dense<0.000000e+00> : vector<8x4xf32>
    %109 = tpu.matmul %108, %91, %cst_34 {dimension_numbers = #tpu.dot_dimension_numbers<[1], [0], [0], [1], [0, 0, 1, 1], [], []>} : vector<8x8xbf16>, vector<8x4xbf16>, vector<8x4xf32> -> vector<8x4xf32>
    %110 = vector.extract_strided_slice %1 {offsets = [0, 16], sizes = [8, 4], strides = [1, 1]} : vector<8x32xf32> to vector<8x4xf32>
    %cst_35 = arith.constant 5.000000e-01 : f32
    %111 = vector.broadcast %cst_35 : f32 to vector<8x4xf32>
    %112 = arith.mulf %110, %111 : vector<8x4xf32>
    %113 = arith.truncf %112 : vector<8x4xf32> to vector<8x4xbf16>
    %114 = vector.extract_strided_slice %3 {offsets = [0, 16], sizes = [8, 4], strides = [1, 1]} : vector<8x64xf32> to vector<8x4xf32>
    %115 = arith.truncf %114 : vector<8x4xf32> to vector<8x4xbf16>
    %116 = vector.extract_strided_slice %3 {offsets = [0, 48], sizes = [8, 4], strides = [1, 1]} : vector<8x64xf32> to vector<8x4xf32>
    %117 = arith.truncf %116 : vector<8x4xf32> to vector<8x4xbf16>
    %cst_36 = arith.constant dense<0.000000e+00> : vector<8x8xf32>
    %118 = tpu.matmul %113, %115, %cst_36 {dimension_numbers = #tpu.dot_dimension_numbers<[1], [1], [0], [0], [0, 0, 1, 0], [], []>} : vector<8x4xbf16>, vector<8x4xbf16>, vector<8x8xf32> -> vector<8x8xf32>
    %cst_37 = arith.constant 0.000000e+00 : f32
    %119 = vector.broadcast %cst_37 : f32 to vector<1x8xf32>
    %120 = arith.cmpf oeq, %5, %119 : vector<1x8xf32>
    %cst_38 = arith.constant -1.000000e+09 : f32
    %121 = vector.shape_cast %120 : vector<1x8xi1> to vector<1x8xi1>
    %122 = vector.broadcast %121 : vector<1x8xi1> to vector<8x8xi1>
    %123 = vector.broadcast %cst_38 : f32 to vector<8x8xf32>
    %124 = arith.select %122, %123, %118 : vector<8x8xi1>, vector<8x8xf32>
    %cst_39 = arith.constant dense<0xFF800000> : vector<8xf32>
    %125 = vector.multi_reduction <maximumf>, %124, %cst_39 [1] : vector<8x8xf32> to vector<8xf32>
    %126 = vector.shape_cast %125 : vector<8xf32> to vector<8x1xf32>
    %127 = vector.broadcast %126 : vector<8x1xf32> to vector<8x8xf32>
    %128 = arith.subf %124, %127 : vector<8x8xf32>
    %129 = math.exp %128 : vector<8x8xf32>
    %cst_40 = arith.constant dense<0.000000e+00> : vector<8xf32>
    %130 = vector.multi_reduction <add>, %129, %cst_40 [1] : vector<8x8xf32> to vector<8xf32>
    %131 = vector.shape_cast %130 : vector<8xf32> to vector<8x1xf32>
    %132 = vector.broadcast %131 : vector<8x1xf32> to vector<8x8xf32>
    %133 = arith.divf %129, %132 : vector<8x8xf32>
    %134 = arith.truncf %133 : vector<8x8xf32> to vector<8x8xbf16>
    %cst_41 = arith.constant dense<0.000000e+00> : vector<8x4xf32>
    %135 = tpu.matmul %134, %117, %cst_41 {dimension_numbers = #tpu.dot_dimension_numbers<[1], [0], [0], [1], [0, 0, 1, 1], [], []>} : vector<8x8xbf16>, vector<8x4xbf16>, vector<8x4xf32> -> vector<8x4xf32>
    %136 = vector.extract_strided_slice %1 {offsets = [0, 20], sizes = [8, 4], strides = [1, 1]} : vector<8x32xf32> to vector<8x4xf32>
    %cst_42 = arith.constant 5.000000e-01 : f32
    %137 = vector.broadcast %cst_42 : f32 to vector<8x4xf32>
    %138 = arith.mulf %136, %137 : vector<8x4xf32>
    %139 = arith.truncf %138 : vector<8x4xf32> to vector<8x4xbf16>
    %140 = vector.extract_strided_slice %3 {offsets = [0, 20], sizes = [8, 4], strides = [1, 1]} : vector<8x64xf32> to vector<8x4xf32>
    %141 = arith.truncf %140 : vector<8x4xf32> to vector<8x4xbf16>
    %142 = vector.extract_strided_slice %3 {offsets = [0, 52], sizes = [8, 4], strides = [1, 1]} : vector<8x64xf32> to vector<8x4xf32>
    %143 = arith.truncf %142 : vector<8x4xf32> to vector<8x4xbf16>
    %cst_43 = arith.constant dense<0.000000e+00> : vector<8x8xf32>
    %144 = tpu.matmul %139, %141, %cst_43 {dimension_numbers = #tpu.dot_dimension_numbers<[1], [1], [0], [0], [0, 0, 1, 0], [], []>} : vector<8x4xbf16>, vector<8x4xbf16>, vector<8x8xf32> -> vector<8x8xf32>
    %cst_44 = arith.constant 0.000000e+00 : f32
    %145 = vector.broadcast %cst_44 : f32 to vector<1x8xf32>
    %146 = arith.cmpf oeq, %5, %145 : vector<1x8xf32>
    %cst_45 = arith.constant -1.000000e+09 : f32
    %147 = vector.shape_cast %146 : vector<1x8xi1> to vector<1x8xi1>
    %148 = vector.broadcast %147 : vector<1x8xi1> to vector<8x8xi1>
    %149 = vector.broadcast %cst_45 : f32 to vector<8x8xf32>
    %150 = arith.select %148, %149, %144 : vector<8x8xi1>, vector<8x8xf32>
    %cst_46 = arith.constant dense<0xFF800000> : vector<8xf32>
    %151 = vector.multi_reduction <maximumf>, %150, %cst_46 [1] : vector<8x8xf32> to vector<8xf32>
    %152 = vector.shape_cast %151 : vector<8xf32> to vector<8x1xf32>
    %153 = vector.broadcast %152 : vector<8x1xf32> to vector<8x8xf32>
    %154 = arith.subf %150, %153 : vector<8x8xf32>
    %155 = math.exp %154 : vector<8x8xf32>
    %cst_47 = arith.constant dense<0.000000e+00> : vector<8xf32>
    %156 = vector.multi_reduction <add>, %155, %cst_47 [1] : vector<8x8xf32> to vector<8xf32>
    %157 = vector.shape_cast %156 : vector<8xf32> to vector<8x1xf32>
    %158 = vector.broadcast %157 : vector<8x1xf32> to vector<8x8xf32>
    %159 = arith.divf %155, %158 : vector<8x8xf32>
    %160 = arith.truncf %159 : vector<8x8xf32> to vector<8x8xbf16>
    %cst_48 = arith.constant dense<0.000000e+00> : vector<8x4xf32>
    %161 = tpu.matmul %160, %143, %cst_48 {dimension_numbers = #tpu.dot_dimension_numbers<[1], [0], [0], [1], [0, 0, 1, 1], [], []>} : vector<8x8xbf16>, vector<8x4xbf16>, vector<8x4xf32> -> vector<8x4xf32>
    %162 = vector.extract_strided_slice %1 {offsets = [0, 24], sizes = [8, 4], strides = [1, 1]} : vector<8x32xf32> to vector<8x4xf32>
    %cst_49 = arith.constant 5.000000e-01 : f32
    %163 = vector.broadcast %cst_49 : f32 to vector<8x4xf32>
    %164 = arith.mulf %162, %163 : vector<8x4xf32>
    %165 = arith.truncf %164 : vector<8x4xf32> to vector<8x4xbf16>
    %166 = vector.extract_strided_slice %3 {offsets = [0, 24], sizes = [8, 4], strides = [1, 1]} : vector<8x64xf32> to vector<8x4xf32>
    %167 = arith.truncf %166 : vector<8x4xf32> to vector<8x4xbf16>
    %168 = vector.extract_strided_slice %3 {offsets = [0, 56], sizes = [8, 4], strides = [1, 1]} : vector<8x64xf32> to vector<8x4xf32>
    %169 = arith.truncf %168 : vector<8x4xf32> to vector<8x4xbf16>
    %cst_50 = arith.constant dense<0.000000e+00> : vector<8x8xf32>
    %170 = tpu.matmul %165, %167, %cst_50 {dimension_numbers = #tpu.dot_dimension_numbers<[1], [1], [0], [0], [0, 0, 1, 0], [], []>} : vector<8x4xbf16>, vector<8x4xbf16>, vector<8x8xf32> -> vector<8x8xf32>
    %cst_51 = arith.constant 0.000000e+00 : f32
    %171 = vector.broadcast %cst_51 : f32 to vector<1x8xf32>
    %172 = arith.cmpf oeq, %5, %171 : vector<1x8xf32>
    %cst_52 = arith.constant -1.000000e+09 : f32
    %173 = vector.shape_cast %172 : vector<1x8xi1> to vector<1x8xi1>
    %174 = vector.broadcast %173 : vector<1x8xi1> to vector<8x8xi1>
    %175 = vector.broadcast %cst_52 : f32 to vector<8x8xf32>
    %176 = arith.select %174, %175, %170 : vector<8x8xi1>, vector<8x8xf32>
    %cst_53 = arith.constant dense<0xFF800000> : vector<8xf32>
    %177 = vector.multi_reduction <maximumf>, %176, %cst_53 [1] : vector<8x8xf32> to vector<8xf32>
    %178 = vector.shape_cast %177 : vector<8xf32> to vector<8x1xf32>
    %179 = vector.broadcast %178 : vector<8x1xf32> to vector<8x8xf32>
    %180 = arith.subf %176, %179 : vector<8x8xf32>
    %181 = math.exp %180 : vector<8x8xf32>
    %cst_54 = arith.constant dense<0.000000e+00> : vector<8xf32>
    %182 = vector.multi_reduction <add>, %181, %cst_54 [1] : vector<8x8xf32> to vector<8xf32>
    %183 = vector.shape_cast %182 : vector<8xf32> to vector<8x1xf32>
    %184 = vector.broadcast %183 : vector<8x1xf32> to vector<8x8xf32>
    %185 = arith.divf %181, %184 : vector<8x8xf32>
    %186 = arith.truncf %185 : vector<8x8xf32> to vector<8x8xbf16>
    %cst_55 = arith.constant dense<0.000000e+00> : vector<8x4xf32>
    %187 = tpu.matmul %186, %169, %cst_55 {dimension_numbers = #tpu.dot_dimension_numbers<[1], [0], [0], [1], [0, 0, 1, 1], [], []>} : vector<8x8xbf16>, vector<8x4xbf16>, vector<8x4xf32> -> vector<8x4xf32>
    %188 = vector.extract_strided_slice %1 {offsets = [0, 28], sizes = [8, 4], strides = [1, 1]} : vector<8x32xf32> to vector<8x4xf32>
    %cst_56 = arith.constant 5.000000e-01 : f32
    %189 = vector.broadcast %cst_56 : f32 to vector<8x4xf32>
    %190 = arith.mulf %188, %189 : vector<8x4xf32>
    %191 = arith.truncf %190 : vector<8x4xf32> to vector<8x4xbf16>
    %192 = vector.extract_strided_slice %3 {offsets = [0, 28], sizes = [8, 4], strides = [1, 1]} : vector<8x64xf32> to vector<8x4xf32>
    %193 = arith.truncf %192 : vector<8x4xf32> to vector<8x4xbf16>
    %194 = vector.extract_strided_slice %3 {offsets = [0, 60], sizes = [8, 4], strides = [1, 1]} : vector<8x64xf32> to vector<8x4xf32>
    %195 = arith.truncf %194 : vector<8x4xf32> to vector<8x4xbf16>
    %cst_57 = arith.constant dense<0.000000e+00> : vector<8x8xf32>
    %196 = tpu.matmul %191, %193, %cst_57 {dimension_numbers = #tpu.dot_dimension_numbers<[1], [1], [0], [0], [0, 0, 1, 0], [], []>} : vector<8x4xbf16>, vector<8x4xbf16>, vector<8x8xf32> -> vector<8x8xf32>
    %cst_58 = arith.constant 0.000000e+00 : f32
    %197 = vector.broadcast %cst_58 : f32 to vector<1x8xf32>
    %198 = arith.cmpf oeq, %5, %197 : vector<1x8xf32>
    %cst_59 = arith.constant -1.000000e+09 : f32
    %199 = vector.shape_cast %198 : vector<1x8xi1> to vector<1x8xi1>
    %200 = vector.broadcast %199 : vector<1x8xi1> to vector<8x8xi1>
    %201 = vector.broadcast %cst_59 : f32 to vector<8x8xf32>
    %202 = arith.select %200, %201, %196 : vector<8x8xi1>, vector<8x8xf32>
    %cst_60 = arith.constant dense<0xFF800000> : vector<8xf32>
    %203 = vector.multi_reduction <maximumf>, %202, %cst_60 [1] : vector<8x8xf32> to vector<8xf32>
    %204 = vector.shape_cast %203 : vector<8xf32> to vector<8x1xf32>
    %205 = vector.broadcast %204 : vector<8x1xf32> to vector<8x8xf32>
    %206 = arith.subf %202, %205 : vector<8x8xf32>
    %207 = math.exp %206 : vector<8x8xf32>
    %cst_61 = arith.constant dense<0.000000e+00> : vector<8xf32>
    %208 = vector.multi_reduction <add>, %207, %cst_61 [1] : vector<8x8xf32> to vector<8xf32>
    %209 = vector.shape_cast %208 : vector<8xf32> to vector<8x1xf32>
    %210 = vector.broadcast %209 : vector<8x1xf32> to vector<8x8xf32>
    %211 = arith.divf %207, %210 : vector<8x8xf32>
    %212 = arith.truncf %211 : vector<8x8xf32> to vector<8x8xbf16>
    %cst_62 = arith.constant dense<0.000000e+00> : vector<8x4xf32>
    %213 = tpu.matmul %212, %195, %cst_62 {dimension_numbers = #tpu.dot_dimension_numbers<[1], [0], [0], [1], [0, 0, 1, 1], [], []>} : vector<8x8xbf16>, vector<8x4xbf16>, vector<8x4xf32> -> vector<8x4xf32>
    %214 = tpu.concatenate %31, %57, %83, %109, %135, %161, %187, %213 in 1 : vector<8x4xf32>, vector<8x4xf32>, vector<8x4xf32>, vector<8x4xf32>, vector<8x4xf32>, vector<8x4xf32>, vector<8x4xf32>, vector<8x4xf32> -> vector<8x32xf32>
    %c0_63 = arith.constant 0 : index
    %c0_64 = arith.constant 0 : index
    %c0_65 = arith.constant 0 : index
    %215 = vector.load %arg4[%c0_63, %c0_64, %c0_65] : memref<1x8x32xf32, #tpu.memory_space<vmem>>, vector<1x8x32xf32>
    %216 = vector.shape_cast %215 : vector<1x8x32xf32> to vector<8x32xf32>
    %217 = vector.shape_cast %214 : vector<8x32xf32> to vector<1x8x32xf32>
    tpu.vector_store %arg4[%c0_63, %c0_64, %c0_65], %217 {strides = array<i32>} : memref<1x8x32xf32, #tpu.memory_space<vmem>>, vector<1x8x32xf32>,
    return
  }
  func.func @transform_0(%arg0: i32) -> (i32, i32, i32) {
    %c0_i32 = arith.constant 0 : i32
    %c0_i32_0 = arith.constant 0 : i32
    %c0_i32_1 = arith.constant 0 : i32
    return %arg0, %c0_i32, %c0_i32_0 : i32, i32, i32
  }
  func.func @transform_1(%arg0: i32) -> (i32, i32, i32) {
    %c0_i32 = arith.constant 0 : i32
    %c0_i32_0 = arith.constant 0 : i32
    %c0_i32_1 = arith.constant 0 : i32
    return %arg0, %c0_i32, %c0_i32_0 : i32, i32, i32
  }
  func.func @transform_2(%arg0: i32) -> (i32, i32, i32) {
    %c0_i32 = arith.constant 0 : i32
    %c0_i32_0 = arith.constant 0 : i32
    %c0_i32_1 = arith.constant 0 : i32
    return %arg0, %c0_i32, %c0_i32_0 : i32, i32, i32
  }
  func.func @transform_3(%arg0: i32) -> (i32, i32, i32) {
    %c0_i32 = arith.constant 0 : i32
    %c0_i32_0 = arith.constant 0 : i32
    %c0_i32_1 = arith.constant 0 : i32
    return %arg0, %c0_i32, %c0_i32_0 : i32, i32, i32
  }
}

module attributes {stable_mosaic.version = 11 : i64} {
  func.func @_linear_kernel(%arg0: i32, %arg1: i32, %arg2: i32, %arg3: memref<16x32xf32, #tpu.memory_space<vmem>>, %arg4: memref<32x64xbf16, #tpu.memory_space<vmem>>, %arg5: memref<1x64xf32, #tpu.memory_space<vmem>>, %arg6: memref<16x64xf32, #tpu.memory_space<vmem>>, %arg7: memref<16x64xf32, #tpu.memory_space<vmem>>) attributes {dimension_semantics = [#tpu.dimension_semantics<parallel>, #tpu.dimension_semantics<parallel>, #tpu.dimension_semantics<arbitrary>], iteration_bounds = array<i64: 1, 1, 1>, scalar_prefetch = 0 : i64, scratch_operands = 1 : i64, tpu.core_type = #tpu.core_type<tc>, window_params = [{transform_indices = @transform_0, window_bounds = array<i64: 16, 32>}, {transform_indices = @transform_1, window_bounds = array<i64: 32, 64>}, {transform_indices = @transform_2, window_bounds = array<i64: 1, 64>}, {transform_indices = @transform_3, window_bounds = array<i64: 16, 64>}]} {
    %c0_i32 = arith.constant 0 : i32
    %0 = arith.cmpi eq, %arg2, %c0_i32 : i32
    %1 = arith.extui %0 : i1 to i32
    %c0_i32_0 = arith.constant 0 : i32
    %2 = arith.cmpi ne, %1, %c0_i32_0 : i32
    scf.if %2 {
      %cst_10 = arith.constant 0.000000e+00 : f32
      %13 = vector.broadcast %cst_10 : f32 to vector<16x64xf32>
      %c0_11 = arith.constant 0 : index
      %c0_12 = arith.constant 0 : index
      %14 = vector.load %arg7[%c0_11, %c0_12] : memref<16x64xf32, #tpu.memory_space<vmem>>, vector<16x64xf32>
      tpu.vector_store %arg7[%c0_11, %c0_12], %13 {strides = array<i32>} : memref<16x64xf32, #tpu.memory_space<vmem>>, vector<16x64xf32>,
    } else {
    }
    %c0 = arith.constant 0 : index
    %c0_1 = arith.constant 0 : index
    %3 = vector.load %arg7[%c0, %c0_1] : memref<16x64xf32, #tpu.memory_space<vmem>>, vector<16x64xf32>
    %c0_2 = arith.constant 0 : index
    %c0_3 = arith.constant 0 : index
    %4 = vector.load %arg3[%c0_2, %c0_3] : memref<16x32xf32, #tpu.memory_space<vmem>>, vector<16x32xf32>
    %5 = arith.truncf %4 : vector<16x32xf32> to vector<16x32xbf16>
    %c0_4 = arith.constant 0 : index
    %c0_5 = arith.constant 0 : index
    %6 = vector.load %arg4[%c0_4, %c0_5] : memref<32x64xbf16, #tpu.memory_space<vmem>>, vector<32x64xbf16>
    %cst = arith.constant dense<0.000000e+00> : vector<16x64xf32>
    %7 = tpu.matmul %5, %6, %cst {dimension_numbers = #tpu.dot_dimension_numbers<[1], [0], [0], [1], [0, 0, 1, 1], [], []>} : vector<16x32xbf16>, vector<32x64xbf16>, vector<16x64xf32> -> vector<16x64xf32>
    %8 = arith.addf %3, %7 : vector<16x64xf32>
    %c0_6 = arith.constant 0 : index
    %c0_7 = arith.constant 0 : index
    %9 = vector.load %arg7[%c0_6, %c0_7] : memref<16x64xf32, #tpu.memory_space<vmem>>, vector<16x64xf32>
    tpu.vector_store %arg7[%c0_6, %c0_7], %8 {strides = array<i32>} : memref<16x64xf32, #tpu.memory_space<vmem>>, vector<16x64xf32>,
    %c0_i32_8 = arith.constant 0 : i32
    %10 = arith.cmpi eq, %arg2, %c0_i32_8 : i32
    %11 = arith.extui %10 : i1 to i32
    %c0_i32_9 = arith.constant 0 : i32
    %12 = arith.cmpi ne, %11, %c0_i32_9 : i32
    scf.if %12 {
      %c0_10 = arith.constant 0 : index
      %c0_11 = arith.constant 0 : index
      %13 = vector.load %arg7[%c0_10, %c0_11] : memref<16x64xf32, #tpu.memory_space<vmem>>, vector<16x64xf32>
      %c0_12 = arith.constant 0 : index
      %c0_13 = arith.constant 0 : index
      %14 = vector.load %arg5[%c0_12, %c0_13] : memref<1x64xf32, #tpu.memory_space<vmem>>, vector<1x64xf32>
      %15 = vector.broadcast %14 : vector<1x64xf32> to vector<16x64xf32>
      %16 = arith.addf %13, %15 : vector<16x64xf32>
      %c0_14 = arith.constant 0 : index
      %c0_15 = arith.constant 0 : index
      %17 = vector.load %arg6[%c0_14, %c0_15] : memref<16x64xf32, #tpu.memory_space<vmem>>, vector<16x64xf32>
      tpu.vector_store %arg6[%c0_14, %c0_15], %16 {strides = array<i32>} : memref<16x64xf32, #tpu.memory_space<vmem>>, vector<16x64xf32>,
    } else {
    }
    return
  }
  func.func @transform_0(%arg0: i32, %arg1: i32, %arg2: i32) -> (i32, i32) {
    %c0_i32 = arith.constant 0 : i32
    return %arg0, %arg2 : i32, i32
  }
  func.func @transform_1(%arg0: i32, %arg1: i32, %arg2: i32) -> (i32, i32) {
    %c0_i32 = arith.constant 0 : i32
    return %arg2, %arg1 : i32, i32
  }
  func.func @transform_2(%arg0: i32, %arg1: i32, %arg2: i32) -> (i32, i32) {
    %c0_i32 = arith.constant 0 : i32
    %c0_i32_0 = arith.constant 0 : i32
    return %c0_i32, %arg1 : i32, i32
  }
  func.func @transform_3(%arg0: i32, %arg1: i32, %arg2: i32) -> (i32, i32) {
    %c0_i32 = arith.constant 0 : i32
    return %arg0, %arg1 : i32, i32
  }
}

module attributes {stable_mosaic.version = 11 : i64} {
  func.func @_out_proj_add_ln_kernel(%arg0: i32, %arg1: memref<16x32xf32, #tpu.memory_space<vmem>>, %arg2: memref<32x32xbf16, #tpu.memory_space<vmem>>, %arg3: memref<1x32xf32, #tpu.memory_space<vmem>>, %arg4: memref<16x32xf32, #tpu.memory_space<vmem>>, %arg5: memref<1x32xf32, #tpu.memory_space<vmem>>, %arg6: memref<1x32xf32, #tpu.memory_space<vmem>>, %arg7: memref<16x32xf32, #tpu.memory_space<vmem>>) attributes {dimension_semantics = [#tpu.dimension_semantics<parallel>], iteration_bounds = array<i64: 1>, scalar_prefetch = 0 : i64, scratch_operands = 0 : i64, tpu.core_type = #tpu.core_type<tc>, window_params = [{transform_indices = @transform_0, window_bounds = array<i64: 16, 32>}, {pipeline_mode = #tpu.pipeline_mode<synchronous>, transform_indices = @transform_1, window_bounds = array<i64: 32, 32>}, {pipeline_mode = #tpu.pipeline_mode<synchronous>, transform_indices = @transform_2, window_bounds = array<i64: 1, 32>}, {transform_indices = @transform_3, window_bounds = array<i64: 16, 32>}, {pipeline_mode = #tpu.pipeline_mode<synchronous>, transform_indices = @transform_4, window_bounds = array<i64: 1, 32>}, {pipeline_mode = #tpu.pipeline_mode<synchronous>, transform_indices = @transform_5, window_bounds = array<i64: 1, 32>}, {transform_indices = @transform_6, window_bounds = array<i64: 16, 32>}]} {
    %c0 = arith.constant 0 : index
    %c0_0 = arith.constant 0 : index
    %0 = vector.load %arg1[%c0, %c0_0] : memref<16x32xf32, #tpu.memory_space<vmem>>, vector<16x32xf32>
    %1 = arith.truncf %0 : vector<16x32xf32> to vector<16x32xbf16>
    %c0_1 = arith.constant 0 : index
    %c0_2 = arith.constant 0 : index
    %2 = vector.load %arg2[%c0_1, %c0_2] : memref<32x32xbf16, #tpu.memory_space<vmem>>, vector<32x32xbf16>
    %cst = arith.constant dense<0.000000e+00> : vector<16x32xf32>
    %3 = tpu.matmul %1, %2, %cst {dimension_numbers = #tpu.dot_dimension_numbers<[1], [0], [0], [1], [0, 0, 1, 1], [], []>} : vector<16x32xbf16>, vector<32x32xbf16>, vector<16x32xf32> -> vector<16x32xf32>
    %c0_3 = arith.constant 0 : index
    %c0_4 = arith.constant 0 : index
    %4 = vector.load %arg3[%c0_3, %c0_4] : memref<1x32xf32, #tpu.memory_space<vmem>>, vector<1x32xf32>
    %5 = vector.broadcast %4 : vector<1x32xf32> to vector<16x32xf32>
    %6 = arith.addf %3, %5 : vector<16x32xf32>
    %c0_5 = arith.constant 0 : index
    %c0_6 = arith.constant 0 : index
    %7 = vector.load %arg4[%c0_5, %c0_6] : memref<16x32xf32, #tpu.memory_space<vmem>>, vector<16x32xf32>
    %8 = arith.addf %7, %6 : vector<16x32xf32>
    %cst_7 = arith.constant dense<0.000000e+00> : vector<16xf32>
    %9 = vector.multi_reduction <add>, %8, %cst_7 [1] : vector<16x32xf32> to vector<16xf32>
    %10 = vector.shape_cast %9 : vector<16xf32> to vector<16x1xf32>
    %cst_8 = arith.constant 3.200000e+01 : f32
    %11 = vector.broadcast %cst_8 : f32 to vector<16x1xf32>
    %12 = arith.divf %10, %11 : vector<16x1xf32>
    %13 = vector.broadcast %12 : vector<16x1xf32> to vector<16x32xf32>
    %14 = arith.subf %8, %13 : vector<16x32xf32>
    %15 = arith.mulf %14, %14 : vector<16x32xf32>
    %cst_9 = arith.constant dense<0.000000e+00> : vector<16xf32>
    %16 = vector.multi_reduction <add>, %15, %cst_9 [1] : vector<16x32xf32> to vector<16xf32>
    %17 = vector.shape_cast %16 : vector<16xf32> to vector<16x1xf32>
    %cst_10 = arith.constant 3.200000e+01 : f32
    %18 = vector.broadcast %cst_10 : f32 to vector<16x1xf32>
    %19 = arith.divf %17, %18 : vector<16x1xf32>
    %cst_11 = arith.constant 9.99999974E-6 : f32
    %20 = vector.broadcast %cst_11 : f32 to vector<16x1xf32>
    %21 = arith.addf %19, %20 : vector<16x1xf32>
    %22 = math.rsqrt %21 : vector<16x1xf32>
    %23 = vector.broadcast %22 : vector<16x1xf32> to vector<16x32xf32>
    %24 = arith.mulf %14, %23 : vector<16x32xf32>
    %c0_12 = arith.constant 0 : index
    %c0_13 = arith.constant 0 : index
    %25 = vector.load %arg5[%c0_12, %c0_13] : memref<1x32xf32, #tpu.memory_space<vmem>>, vector<1x32xf32>
    %26 = vector.broadcast %25 : vector<1x32xf32> to vector<16x32xf32>
    %27 = arith.mulf %24, %26 : vector<16x32xf32>
    %c0_14 = arith.constant 0 : index
    %c0_15 = arith.constant 0 : index
    %28 = vector.load %arg6[%c0_14, %c0_15] : memref<1x32xf32, #tpu.memory_space<vmem>>, vector<1x32xf32>
    %29 = vector.broadcast %28 : vector<1x32xf32> to vector<16x32xf32>
    %30 = arith.addf %27, %29 : vector<16x32xf32>
    %c0_16 = arith.constant 0 : index
    %c0_17 = arith.constant 0 : index
    %31 = vector.load %arg7[%c0_16, %c0_17] : memref<16x32xf32, #tpu.memory_space<vmem>>, vector<16x32xf32>
    tpu.vector_store %arg7[%c0_16, %c0_17], %30 {strides = array<i32>} : memref<16x32xf32, #tpu.memory_space<vmem>>, vector<16x32xf32>,
    return
  }
  func.func @transform_0(%arg0: i32) -> (i32, i32) {
    %c0_i32 = arith.constant 0 : i32
    %c0_i32_0 = arith.constant 0 : i32
    return %arg0, %c0_i32 : i32, i32
  }
  func.func @transform_1(%arg0: i32) -> (i32, i32) {
    %c0_i32 = arith.constant 0 : i32
    %c0_i32_0 = arith.constant 0 : i32
    %c0_i32_1 = arith.constant 0 : i32
    return %c0_i32, %c0_i32_0 : i32, i32
  }
  func.func @transform_2(%arg0: i32) -> (i32, i32) {
    %c0_i32 = arith.constant 0 : i32
    %c0_i32_0 = arith.constant 0 : i32
    %c0_i32_1 = arith.constant 0 : i32
    return %c0_i32, %c0_i32_0 : i32, i32
  }
  func.func @transform_3(%arg0: i32) -> (i32, i32) {
    %c0_i32 = arith.constant 0 : i32
    %c0_i32_0 = arith.constant 0 : i32
    return %arg0, %c0_i32 : i32, i32
  }
  func.func @transform_4(%arg0: i32) -> (i32, i32) {
    %c0_i32 = arith.constant 0 : i32
    %c0_i32_0 = arith.constant 0 : i32
    %c0_i32_1 = arith.constant 0 : i32
    return %c0_i32, %c0_i32_0 : i32, i32
  }
  func.func @transform_5(%arg0: i32) -> (i32, i32) {
    %c0_i32 = arith.constant 0 : i32
    %c0_i32_0 = arith.constant 0 : i32
    %c0_i32_1 = arith.constant 0 : i32
    return %c0_i32, %c0_i32_0 : i32, i32
  }
  func.func @transform_6(%arg0: i32) -> (i32, i32) {
    %c0_i32 = arith.constant 0 : i32
    %c0_i32_0 = arith.constant 0 : i32
    return %arg0, %c0_i32 : i32, i32
  }
}

module attributes {stable_mosaic.version = 11 : i64} {
  func.func @_linear_kernel(%arg0: i32, %arg1: i32, %arg2: i32, %arg3: memref<16x32xf32, #tpu.memory_space<vmem>>, %arg4: memref<32x128xbf16, #tpu.memory_space<vmem>>, %arg5: memref<1x128xf32, #tpu.memory_space<vmem>>, %arg6: memref<16x128xf32, #tpu.memory_space<vmem>>, %arg7: memref<16x128xf32, #tpu.memory_space<vmem>>) attributes {dimension_semantics = [#tpu.dimension_semantics<parallel>, #tpu.dimension_semantics<parallel>, #tpu.dimension_semantics<arbitrary>], iteration_bounds = array<i64: 1, 1, 1>, scalar_prefetch = 0 : i64, scratch_operands = 1 : i64, tpu.core_type = #tpu.core_type<tc>, window_params = [{transform_indices = @transform_0, window_bounds = array<i64: 16, 32>}, {transform_indices = @transform_1, window_bounds = array<i64: 32, 128>}, {transform_indices = @transform_2, window_bounds = array<i64: 1, 128>}, {transform_indices = @transform_3, window_bounds = array<i64: 16, 128>}]} {
    %c0_i32 = arith.constant 0 : i32
    %0 = arith.cmpi eq, %arg2, %c0_i32 : i32
    %1 = arith.extui %0 : i1 to i32
    %c0_i32_0 = arith.constant 0 : i32
    %2 = arith.cmpi ne, %1, %c0_i32_0 : i32
    scf.if %2 {
      %cst_10 = arith.constant 0.000000e+00 : f32
      %13 = vector.broadcast %cst_10 : f32 to vector<16x128xf32>
      %c0_11 = arith.constant 0 : index
      %c0_12 = arith.constant 0 : index
      %14 = vector.load %arg7[%c0_11, %c0_12] : memref<16x128xf32, #tpu.memory_space<vmem>>, vector<16x128xf32>
      tpu.vector_store %arg7[%c0_11, %c0_12], %13 {strides = array<i32>} : memref<16x128xf32, #tpu.memory_space<vmem>>, vector<16x128xf32>,
    } else {
    }
    %c0 = arith.constant 0 : index
    %c0_1 = arith.constant 0 : index
    %3 = vector.load %arg7[%c0, %c0_1] : memref<16x128xf32, #tpu.memory_space<vmem>>, vector<16x128xf32>
    %c0_2 = arith.constant 0 : index
    %c0_3 = arith.constant 0 : index
    %4 = vector.load %arg3[%c0_2, %c0_3] : memref<16x32xf32, #tpu.memory_space<vmem>>, vector<16x32xf32>
    %5 = arith.truncf %4 : vector<16x32xf32> to vector<16x32xbf16>
    %c0_4 = arith.constant 0 : index
    %c0_5 = arith.constant 0 : index
    %6 = vector.load %arg4[%c0_4, %c0_5] : memref<32x128xbf16, #tpu.memory_space<vmem>>, vector<32x128xbf16>
    %cst = arith.constant dense<0.000000e+00> : vector<16x128xf32>
    %7 = tpu.matmul %5, %6, %cst {dimension_numbers = #tpu.dot_dimension_numbers<[1], [0], [0], [1], [0, 0, 1, 1], [], []>} : vector<16x32xbf16>, vector<32x128xbf16>, vector<16x128xf32> -> vector<16x128xf32>
    %8 = arith.addf %3, %7 : vector<16x128xf32>
    %c0_6 = arith.constant 0 : index
    %c0_7 = arith.constant 0 : index
    %9 = vector.load %arg7[%c0_6, %c0_7] : memref<16x128xf32, #tpu.memory_space<vmem>>, vector<16x128xf32>
    tpu.vector_store %arg7[%c0_6, %c0_7], %8 {strides = array<i32>} : memref<16x128xf32, #tpu.memory_space<vmem>>, vector<16x128xf32>,
    %c0_i32_8 = arith.constant 0 : i32
    %10 = arith.cmpi eq, %arg2, %c0_i32_8 : i32
    %11 = arith.extui %10 : i1 to i32
    %c0_i32_9 = arith.constant 0 : i32
    %12 = arith.cmpi ne, %11, %c0_i32_9 : i32
    scf.if %12 {
      %c0_10 = arith.constant 0 : index
      %c0_11 = arith.constant 0 : index
      %13 = vector.load %arg7[%c0_10, %c0_11] : memref<16x128xf32, #tpu.memory_space<vmem>>, vector<16x128xf32>
      %c0_12 = arith.constant 0 : index
      %c0_13 = arith.constant 0 : index
      %14 = vector.load %arg5[%c0_12, %c0_13] : memref<1x128xf32, #tpu.memory_space<vmem>>, vector<1x128xf32>
      %15 = vector.broadcast %14 : vector<1x128xf32> to vector<16x128xf32>
      %16 = arith.addf %13, %15 : vector<16x128xf32>
      %c0_14 = arith.constant 0 : index
      %c0_15 = arith.constant 0 : index
      %17 = vector.load %arg6[%c0_14, %c0_15] : memref<16x128xf32, #tpu.memory_space<vmem>>, vector<16x128xf32>
      tpu.vector_store %arg6[%c0_14, %c0_15], %16 {strides = array<i32>} : memref<16x128xf32, #tpu.memory_space<vmem>>, vector<16x128xf32>,
    } else {
    }
    return
  }
  func.func @transform_0(%arg0: i32, %arg1: i32, %arg2: i32) -> (i32, i32) {
    %c0_i32 = arith.constant 0 : i32
    return %arg0, %arg2 : i32, i32
  }
  func.func @transform_1(%arg0: i32, %arg1: i32, %arg2: i32) -> (i32, i32) {
    %c0_i32 = arith.constant 0 : i32
    return %arg2, %arg1 : i32, i32
  }
  func.func @transform_2(%arg0: i32, %arg1: i32, %arg2: i32) -> (i32, i32) {
    %c0_i32 = arith.constant 0 : i32
    %c0_i32_0 = arith.constant 0 : i32
    return %c0_i32, %arg1 : i32, i32
  }
  func.func @transform_3(%arg0: i32, %arg1: i32, %arg2: i32) -> (i32, i32) {
    %c0_i32 = arith.constant 0 : i32
    return %arg0, %arg1 : i32, i32
  }
}

</mosaic_0001>

<llo_original>
// kernel: friday_transformer.25
$region0: #{friday_transformer.25}
  #allocation0 [shape = 'u32[]', space=smem, size = 0x4, offset = 0x4, fixed_abs, tag = 'smem constant byte address 0x4 - core index']
  #allocation1 [shape = 'u32[72,128]{1,0:T(1,128)}', space=vmem, size = 0x9000, scoped, tag = 'internal scratch']
  #allocation2 [shape = 'f32[16,96]{1,0:T(8,128)}', space=vmem, size = 0x2000, scoped, tag = 'scratch operand']
  %s0 = inlined_call_operand.vmem [shape: f32[16,32], index: 0, kind: input, shape index: {}]
  %s1 = inlined_call_operand.vmem [shape: bf16[32,96], index: 1, kind: input, shape index: {}]
  %s2 = inlined_call_operand.vmem [shape: f32[1,96], index: 2, kind: input, shape index: {}]
  %s3 = inlined_call_operand.vmem [shape: f32[16,96], index: 3, kind: output, shape index: {}]
  %s4 = sld [smem:[#allocation0]]
  $region30: #{friday_transformer.25} parent=0
    _
  %s6 = ssub.s32 1, %s4
  %s7 = scalar_select 0, %s6, %s4
  // Predicated region
  $region2: #{friday_transformer.25} parent=0 // pred_check
    _
  $region3: #{friday_transformer.25} parent=0 // pred_check_branch
    %9 = sbr.rel (0) target = $region5
  $region4: #{friday_transformer.25} parent=0 // pred_region
    _
  $region5: #{friday_transformer.25} parent=0 // pred_fallthru
    _
  // Predicated region
  $region6: #{friday_transformer.25} parent=0 // pred_check
    _
  $region7: #{friday_transformer.25} parent=0 // pred_check_branch
    %11 = sbr.rel (0) target = $region9
  $region8: #{friday_transformer.25} parent=0 // pred_region
    _
  $region9: #{friday_transformer.25} parent=0 // pred_fallthru
    _
  // Predicated region
  $region10: #{friday_transformer.25} parent=0 // pred_check
    _
  $region11: #{friday_transformer.25} parent=0 // pred_check_branch
    %13 = sbr.rel (0) target = $region13
  $region12: #{friday_transformer.25} parent=0 // pred_region
    _
  $region13: #{friday_transformer.25} parent=0 // pred_fallthru
    _
  %p15 = scmp.eq.s32.totalorder 0, 0
  // Predicated region
  $region14: #{friday_transformer.25} parent=0 // pred_check
    %p16 = pneg %p15
  $region15: #{friday_transformer.25} parent=0 // pred_check_branch
    %18 = sbr.rel (%p16) target = $region17
  $region16: #{friday_transformer.25} parent=0 // pred_region
    %vm19 = vcmask 785408
    %20 = vst.msk [vmem:[#allocation2] sm:$0xff] %vm19, 0.0
    %21 = vst.msk [vmem:[#allocation2 + $0x8] sm:$0xff] %vm19, 0.0
  $region17: #{friday_transformer.25} parent=0 // pred_fallthru
    _
  %v22 = vld [vmem:[#allocation2] sm:$0xff]
  %v23 = vld [vmem:[#allocation2 + $0x8] sm:$0xff]
  %v24 = vld [vmem:[%s0] sm:$0xff]
  %v25 = vld [vmem:[%s0 + $0x8] sm:$0xff]
  %v26 = vpack.c.bf16 %v25, %v24
  %v27 = vld [vmem:[%s1] sm:$0xf]
  %v28 = vld [vmem:[%s1 + $0x4] sm:$0xf]
  %v29 = vld [vmem:[%s1 + $0x8] sm:$0xf]
  %v30 = vld [vmem:[%s1 + $0xc] sm:$0xf]
  %v35 = vunpack.c.l.b16 %v27
  %v36 = vunpack.c.l.b16 %v28
  %v37 = vunpack.c.l.b16 %v29
  %v38 = vunpack.c.l.b16 %v30
  %v39 = vpack.c.b16 %v36, %v35
  %v40 = vpack.c.b16 %v38, %v37
  %vm43 = vcmask 261120
  %v45 = vsel %vm43, %v26, 0
  %47 = vmatpush.bf16.msra.mxu0 0
  %48 = vmatpush.bf16.msra.mxu0 0
  %49 = vmatpush.bf16.msra.mxu0 0
  %50 = vmatpush.bf16.msra.mxu0 0
  %51 = vmatpush.bf16.msra.mxu0 0
  %52 = vmatpush.bf16.msra.mxu0 0
  %53 = vmatpush.bf16.msra.mxu0 %v40
  %54 = vmatpush.bf16.msra.mxu0 %v39
  %55 = vmatmul.bf16.gmra.mxu0 %v45
  %v56 = vpop.f32.mrf.mxu0
  %v57 = vadd.f32 0.0, %v56
  %v58 = vpop.f32.mrf.mxu0
  %v59 = vadd.f32 0.0, %v58
  %60 = vdwg.mxu0
  %v61 = vadd.f32 %v22, %v57
  %v62 = vadd.f32 %v23, %v59
  %vm63 = vcmask 785408
  %64 = vst.msk [vmem:[#allocation2] sm:$0xff] %vm63, %v61
  %65 = vst.msk [vmem:[#allocation2 + $0x8] sm:$0xff] %vm63, %v62
  // Predicated region
  $region18: #{friday_transformer.25} parent=0 // pred_check
    %p66 = pneg %p15
  $region19: #{friday_transformer.25} parent=0 // pred_check_branch
    %68 = sbr.rel (%p66) target = $region21
  $region20: #{friday_transformer.25} parent=0 // pred_region
    %v69 = vld [vmem:[#allocation2] sm:$0xff]
    %v70 = vld [vmem:[#allocation2 + $0x8] sm:$0xff]
    %v71 = vld [vmem:[%s2] sm:$0x1]
    %v73 = vperm.slane %v71, 0
    %v75 = vadd.f32 %v69, %v73
    %v76 = vadd.f32 %v70, %v73
    %77 = vst.msk [vmem:[%s3] sm:$0xff] %vm63, %v75
    %78 = vst.msk [vmem:[%s3 + $0x8] sm:$0xff] %vm63, %v76
  $region21: #{friday_transformer.25} parent=0 // pred_fallthru
    _
  // Predicated region
  $region22: #{friday_transformer.25} parent=0 // pred_check
    _
  $region23: #{friday_transformer.25} parent=0 // pred_check_branch
    %80 = sbr.rel (0) target = $region25
  $region24: #{friday_transformer.25} parent=0 // pred_region
    _
  $region25: #{friday_transformer.25} parent=0 // pred_fallthru
    _
  // Predicated region
  $region26: #{friday_transformer.25} parent=0 // pred_check
    _
  $region27: #{friday_transformer.25} parent=0 // pred_check_branch
    %82 = sbr.rel (0) target = $region29
  $region28: #{friday_transformer.25} parent=0 // pred_region
    _
  $region29: #{friday_transformer.25} parent=0 // pred_fallthru
    _

// kernel: friday_transformer.27
$region0: #{friday_transformer.27}
  #allocation0 [shape = 'u32[]', space=smem, size = 0x4, offset = 0x4, fixed_abs, tag = 'smem constant byte address 0x4 - core index']
  #allocation1 [shape = 'u32[72,128]{1,0:T(1,128)}', space=vmem, size = 0x9000, scoped, tag = 'internal scratch']
  %s0 = inlined_call_operand.vmem [shape: f32[16,32], index: 0, kind: input, shape index: {}]
  %s1 = inlined_call_operand.vmem [shape: bf16[32,32], index: 1, kind: input, shape index: {}]
  %s2 = inlined_call_operand.vmem [shape: f32[1,32], index: 2, kind: input, shape index: {}]
  %s3 = inlined_call_operand.vmem [shape: f32[16,32], index: 3, kind: input, shape index: {}]
  %s4 = inlined_call_operand.vmem [shape: f32[1,32], index: 4, kind: input, shape index: {}]
  %s5 = inlined_call_operand.vmem [shape: f32[1,32], index: 5, kind: input, shape index: {}]
  %s6 = inlined_call_operand.vmem [shape: f32[16,32], index: 6, kind: output, shape index: {}]
  %s7 = sld [smem:[#allocation0]]
  $region34: #{friday_transformer.27} parent=0
    _
  %s9 = ssub.s32 1, %s7
  %s10 = scalar_select 0, %s9, %s7
  // Predicated region
  $region2: #{friday_transformer.27} parent=0 // pred_check
    _
  $region3: #{friday_transformer.27} parent=0 // pred_check_branch
    %12 = sbr.rel (0) target = $region5
  $region4: #{friday_transformer.27} parent=0 // pred_region
    _
  $region5: #{friday_transformer.27} parent=0 // pred_fallthru
    _
  // Predicated region
  $region6: #{friday_transformer.27} parent=0 // pred_check
    _
  $region7: #{friday_transformer.27} parent=0 // pred_check_branch
    %14 = sbr.rel (0) target = $region9
  $region8: #{friday_transformer.27} parent=0 // pred_region
    _
  $region9: #{friday_transformer.27} parent=0 // pred_fallthru
    _
  // Predicated region
  $region10: #{friday_transformer.27} parent=0 // pred_check
    _
  $region11: #{friday_transformer.27} parent=0 // pred_check_branch
    %16 = sbr.rel (0) target = $region13
  $region12: #{friday_transformer.27} parent=0 // pred_region
    _
  $region13: #{friday_transformer.27} parent=0 // pred_fallthru
    _
  // Predicated region
  $region14: #{friday_transformer.27} parent=0 // pred_check
    _
  $region15: #{friday_transformer.27} parent=0 // pred_check_branch
    %18 = sbr.rel (0) target = $region17
  $region16: #{friday_transformer.27} parent=0 // pred_region
    _
  $region17: #{friday_transformer.27} parent=0 // pred_fallthru
    _
  // Predicated region
  $region18: #{friday_transformer.27} parent=0 // pred_check
    _
  $region19: #{friday_transformer.27} parent=0 // pred_check_branch
    %20 = sbr.rel (0) target = $region21
  $region20: #{friday_transformer.27} parent=0 // pred_region
    _
  $region21: #{friday_transformer.27} parent=0 // pred_fallthru
    _
  // Predicated region
  $region22: #{friday_transformer.27} parent=0 // pred_check
    _
  $region23: #{friday_transformer.27} parent=0 // pred_check_branch
    %22 = sbr.rel (0) target = $region25
  $region24: #{friday_transformer.27} parent=0 // pred_region
    _
  $region25: #{friday_transformer.27} parent=0 // pred_fallthru
    _
  %v24 = vld [vmem:[%s0] sm:$0xff]
  %v25 = vld [vmem:[%s0 + $0x8] sm:$0xff]
  %v26 = vpack.c.bf16 %v25, %v24
  %v27 = vld [vmem:[%s1] sm:$0xf]
  %v28 = vld [vmem:[%s1 + $0x4] sm:$0xf]
  %v29 = vld [vmem:[%s1 + $0x8] sm:$0xf]
  %v30 = vld [vmem:[%s1 + $0xc] sm:$0xf]
  %v31 = vld [vmem:[%s2] sm:$0x1]
  %v33 = vperm.slane %v31, 0
  %v39 = vunpack.c.l.b16 %v27
  %v40 = vunpack.c.l.b16 %v28
  %v41 = vunpack.c.l.b16 %v29
  %v42 = vunpack.c.l.b16 %v30
  %v43 = vpack.c.b16 %v40, %v39
  %v44 = vpack.c.b16 %v42, %v41
  %vm47 = vcmask 261120
  %v49 = vsel %vm47, %v26, 0
  %51 = vmatpush.bf16.msra.mxu0 0
  %52 = vmatpush.bf16.msra.mxu0 0
  %53 = vmatpush.bf16.msra.mxu0 0
  %54 = vmatpush.bf16.msra.mxu0 0
  %55 = vmatpush.bf16.msra.mxu0 0
  %56 = vmatpush.bf16.msra.mxu0 0
  %57 = vmatpush.bf16.msra.mxu0 %v44
  %58 = vmatpush.bf16.msra.mxu0 %v43
  %59 = vmatmul.bf16.gmra.mxu0 %v49
  %v60 = vpop.f32.mrf.mxu0
  %v61 = vadd.f32 %v33, %v60
  %v62 = vpop.f32.mrf.mxu0
  %v63 = vadd.f32 %v33, %v62
  %64 = vdwg.mxu0
  %v65 = vld [vmem:[%s3] sm:$0xff]
  %v66 = vld [vmem:[%s3 + $0x8] sm:$0xff]
  %v67 = vadd.f32 %v65, %v61
  %v68 = vadd.f32 %v66, %v63
  %v69 = vsel %vm47, %v67, 0.0
  %70 = vadd.xlane.f32.xlu0 %v69
  %v71 = vpop.xlane.xlu0 %70
  %v72 = vsel %vm47, %v68, 0.0
  %73 = vadd.xlane.f32.xlu0 %v72
  %v74 = vpop.xlane.xlu0 %73
  %v75 = vrcp.pop 32.0
  %v76 = vmul.f32 32.0, %v75
  %v77 = vsub.f32 1.0, %v76
  %v78 = vmul.f32 %v75, %v77
  %v79 = vadd.f32 %v75, %v78
  %vm80 = vweird.f32 %v75
  %v81 = vsel %vm80, %v75, %v79
  %v82 = vmul.f32 %v71, %v81
  %v83 = vmul.f32 %v74, %v81
  %v84 = vsub.f32 %v67, %v82
  %v85 = vsub.f32 %v68, %v83
  %v86 = vmul.f32 %v84, %v84
  %v87 = vmul.f32 %v85, %v85
  %v88 = vsel %vm47, %v86, 0.0
  %89 = vadd.xlane.f32.xlu0 %v88
  %v90 = vpop.xlane.xlu0 %89
  %v91 = vsel %vm47, %v87, 0.0
  %92 = vadd.xlane.f32.xlu0 %v91
  %v93 = vpop.xlane.xlu0 %92
  %v94 = vmul.f32 %v90, %v81
  %v95 = vmul.f32 %v93, %v81
  %v96 = vadd.f32 %v94, 1e-05
  %v97 = vadd.f32 %v95, 1e-05
  %v98 = vrsqrt.pop %v96
  %v99 = vmul.f32 %v98, %v96
  %v100 = vmul.f32 %v99, %v98
  %v101 = vmul.f32 0.5, %v100
  %v102 = vsub.f32 1.5, %v101
  %v103 = vmul.f32 %v98, %v102
  %vm104 = vweird.f32 %v96
  %vm105 = vweird.f32 %v98
  %vm106 = vmor %vm104, %vm105
  %v107 = vsel %vm106, %v98, %v103
  %v108 = vrsqrt.pop %v97
  %v109 = vmul.f32 %v108, %v97
  %v110 = vmul.f32 %v109, %v108
  %v111 = vmul.f32 0.5, %v110
  %v112 = vsub.f32 1.5, %v111
  %v113 = vmul.f32 %v108, %v112
  %vm114 = vweird.f32 %v97
  %vm115 = vweird.f32 %v108
  %vm116 = vmor %vm114, %vm115
  %v117 = vsel %vm116, %v108, %v113
  %v118 = vmul.f32 %v84, %v107
  %v119 = vmul.f32 %v85, %v117
  %v120 = vld [vmem:[%s4] sm:$0x1]
  %v122 = vperm.slane %v120, 0
  %v124 = vmul.f32 %v118, %v122
  %v125 = vmul.f32 %v119, %v122
  %v126 = vld [vmem:[%s5] sm:$0x1]
  %v128 = vperm.slane %v126, 0
  %v130 = vadd.f32 %v124, %v128
  %v131 = vadd.f32 %v125, %v128
  %132 = vst.msk [vmem:[%s6] sm:$0xff] %vm47, %v130
  %133 = vst.msk [vmem:[%s6 + $0x8] sm:$0xff] %vm47, %v131
  // Predicated region
  $region26: #{friday_transformer.27} parent=0 // pred_check
    _
  $region27: #{friday_transformer.27} parent=0 // pred_check_branch
    %135 = sbr.rel (0) target = $region29
  $region28: #{friday_transformer.27} parent=0 // pred_region
    _
  $region29: #{friday_transformer.27} parent=0 // pred_fallthru
    _
  // Predicated region
  $region30: #{friday_transformer.27} parent=0 // pred_check
    _
  $region31: #{friday_transformer.27} parent=0 // pred_check_branch
    %137 = sbr.rel (0) target = $region33
  $region32: #{friday_transformer.27} parent=0 // pred_region
    _
  $region33: #{friday_transformer.27} parent=0 // pred_fallthru
    _

// kernel: friday_transformer.28
$region0: #{friday_transformer.28}
  #allocation0 [shape = 'u32[]', space=smem, size = 0x4, offset = 0x4, fixed_abs, tag = 'smem constant byte address 0x4 - core index']
  #allocation1 [shape = 'u32[72,128]{1,0:T(1,128)}', space=vmem, size = 0x9000, scoped, tag = 'internal scratch']
  #allocation2 [shape = 'f32[16,32]{1,0:T(8,128)}', space=vmem, size = 0x2000, scoped, tag = 'scratch operand']
  %s0 = inlined_call_operand.vmem [shape: f32[16,32], index: 0, kind: input, shape index: {}]
  %s1 = inlined_call_operand.vmem [shape: bf16[32,64], index: 1, kind: input, shape index: {}]
  %s2 = inlined_call_operand.vmem [shape: f32[1,64], index: 2, kind: input, shape index: {}]
  %s3 = inlined_call_operand.vmem [shape: bf16[64,32], index: 3, kind: input, shape index: {}]
  %s4 = inlined_call_operand.vmem [shape: f32[1,32], index: 4, kind: input, shape index: {}]
  %s5 = inlined_call_operand.vmem [shape: f32[1,32], index: 5, kind: input, shape index: {}]
  %s6 = inlined_call_operand.vmem [shape: f32[1,32], index: 6, kind: input, shape index: {}]
  %s7 = inlined_call_operand.vmem [shape: f32[16,32], index: 7, kind: output, shape index: {}]
  %s8 = sld [smem:[#allocation0]]
  $region46: #{friday_transformer.28} parent=0
    _
  %s10 = ssub.s32 1, %s8
  %s11 = scalar_select 0, %s10, %s8
  // Predicated region
  $region2: #{friday_transformer.28} parent=0 // pred_check
    _
  $region3: #{friday_transformer.28} parent=0 // pred_check_branch
    %13 = sbr.rel (0) target = $region5
  $region4: #{friday_transformer.28} parent=0 // pred_region
    _
  $region5: #{friday_transformer.28} parent=0 // pred_fallthru
    _
  // Predicated region
  $region6: #{friday_transformer.28} parent=0 // pred_check
    _
  $region7: #{friday_transformer.28} parent=0 // pred_check_branch
    %15 = sbr.rel (0) target = $region9
  $region8: #{friday_transformer.28} parent=0 // pred_region
    _
  $region9: #{friday_transformer.28} parent=0 // pred_fallthru
    _
  // Predicated region
  $region10: #{friday_transformer.28} parent=0 // pred_check
    _
  $region11: #{friday_transformer.28} parent=0 // pred_check_branch
    %17 = sbr.rel (0) target = $region13
  $region12: #{friday_transformer.28} parent=0 // pred_region
    _
  $region13: #{friday_transformer.28} parent=0 // pred_fallthru
    _
  // Predicated region
  $region14: #{friday_transformer.28} parent=0 // pred_check
    _
  $region15: #{friday_transformer.28} parent=0 // pred_check_branch
    %19 = sbr.rel (0) target = $region17
  $region16: #{friday_transformer.28} parent=0 // pred_region
    _
  $region17: #{friday_transformer.28} parent=0 // pred_fallthru
    _
  // Predicated region
  $region18: #{friday_transformer.28} parent=0 // pred_check
    _
  $region19: #{friday_transformer.28} parent=0 // pred_check_branch
    %21 = sbr.rel (0) target = $region21
  $region20: #{friday_transformer.28} parent=0 // pred_region
    _
  $region21: #{friday_transformer.28} parent=0 // pred_fallthru
    _
  // Predicated region
  $region22: #{friday_transformer.28} parent=0 // pred_check
    _
  $region23: #{friday_transformer.28} parent=0 // pred_check_branch
    %23 = sbr.rel (0) target = $region25
  $region24: #{friday_transformer.28} parent=0 // pred_region
    _
  $region25: #{friday_transformer.28} parent=0 // pred_fallthru
    _
  // Predicated region
  $region26: #{friday_transformer.28} parent=0 // pred_check
    _
  $region27: #{friday_transformer.28} parent=0 // pred_check_branch
    %25 = sbr.rel (0) target = $region29
  $region28: #{friday_transformer.28} parent=0 // pred_region
    _
  $region29: #{friday_transformer.28} parent=0 // pred_fallthru
    _
  %p27 = scmp.eq.s32.totalorder 0, 0
  // Predicated region
  $region30: #{friday_transformer.28} parent=0 // pred_check
    %p28 = pneg %p27
  $region31: #{friday_transformer.28} parent=0 // pred_check_branch
    %30 = sbr.rel (%p28) target = $region33
  $region32: #{friday_transformer.28} parent=0 // pred_region
    %vm31 = vcmask 261120
    %32 = vst.msk [vmem:[#allocation2] sm:$0xff] %vm31, 0.0
    %33 = vst.msk [vmem:[#allocation2 + $0x8] sm:$0xff] %vm31, 0.0
  $region33: #{friday_transformer.28} parent=0 // pred_fallthru
    _
  %v34 = vld [vmem:[%s0] sm:$0xff]
  %v35 = vld [vmem:[%s0 + $0x8] sm:$0xff]
  %v36 = vpack.c.bf16 %v35, %v34
  %v37 = vld [vmem:[%s1] sm:$0xf]
  %v38 = vld [vmem:[%s1 + $0x4] sm:$0xf]
  %v39 = vld [vmem:[%s1 + $0x8] sm:$0xf]
  %v40 = vld [vmem:[%s1 + $0xc] sm:$0xf]
  %v41 = vld [vmem:[%s2] sm:$0x1]
  %v43 = vperm.slane %v41, 0
  %v49 = vunpack.c.l.b16 %v37
  %v50 = vunpack.c.l.b16 %v38
  %v51 = vunpack.c.l.b16 %v39
  %v52 = vunpack.c.l.b16 %v40
  %v53 = vpack.c.b16 %v50, %v49
  %v54 = vpack.c.b16 %v52, %v51
  %vm57 = vcmask 261120
  %v59 = vsel %vm57, %v36, 0
  %61 = vmatpush.bf16.msra.mxu0 0
  %62 = vmatpush.bf16.msra.mxu0 0
  %63 = vmatpush.bf16.msra.mxu0 0
  %64 = vmatpush.bf16.msra.mxu0 0
  %65 = vmatpush.bf16.msra.mxu0 0
  %66 = vmatpush.bf16.msra.mxu0 0
  %67 = vmatpush.bf16.msra.mxu0 %v54
  %68 = vmatpush.bf16.msra.mxu0 %v53
  %69 = vmatmul.bf16.gmra.mxu0 %v59
  %v70 = vpop.f32.mrf.mxu0
  %v71 = vadd.f32 %v43, %v70
  %v72 = vpop.f32.mrf.mxu0
  %v73 = vadd.f32 %v43, %v72
  %74 = vdwg.mxu0
  %v75 = vmax.f32 %v71, 0.0
  %v76 = vmax.f32 %v73, 0.0
  %v77 = vld [vmem:[#allocation2] sm:$0xff]
  %v78 = vld [vmem:[#allocation2 + $0x8] sm:$0xff]
  %v79 = vpack.c.bf16 %v76, %v75
  %v80 = vld [vmem:[%s3] sm:$0xf]
  %v81 = vld [vmem:[%s3 + $0x4] sm:$0xf]
  %v82 = vld [vmem:[%s3 + $0x8] sm:$0xf]
  %v83 = vld [vmem:[%s3 + $0xc] sm:$0xf]
  %v84 = vld [vmem:[%s3 + $0x10] sm:$0xf]
  %v85 = vld [vmem:[%s3 + $0x14] sm:$0xf]
  %v86 = vld [vmem:[%s3 + $0x18] sm:$0xf]
  %v87 = vld [vmem:[%s3 + $0x1c] sm:$0xf]
  %v96 = vunpack.c.l.b16 %v80
  %v97 = vunpack.c.l.b16 %v81
  %v98 = vunpack.c.l.b16 %v82
  %v99 = vunpack.c.l.b16 %v83
  %v100 = vunpack.c.l.b16 %v84
  %v101 = vunpack.c.l.b16 %v85
  %v102 = vunpack.c.l.b16 %v86
  %v103 = vunpack.c.l.b16 %v87
  %v104 = vpack.c.b16 %v97, %v96
  %v105 = vpack.c.b16 %v99, %v98
  %v106 = vpack.c.b16 %v101, %v100
  %v107 = vpack.c.b16 %v103, %v102
  %vm112 = vcmask 523264
  %v114 = vsel %vm112, %v79, 0
  %116 = vmatpush.bf16.msra.mxu0 0
  %117 = vmatpush.bf16.msra.mxu0 0
  %118 = vmatpush.bf16.msra.mxu0 0
  %119 = vmatpush.bf16.msra.mxu0 0
  %120 = vmatpush.bf16.msra.mxu0 %v107
  %121 = vmatpush.bf16.msra.mxu0 %v106
  %122 = vmatpush.bf16.msra.mxu0 %v105
  %123 = vmatpush.bf16.msra.mxu0 %v104
  %124 = vmatmul.bf16.gmra.mxu0 %v114
  %v125 = vpop.f32.mrf.mxu0
  %v126 = vadd.f32 0.0, %v125
  %v127 = vpop.f32.mrf.mxu0
  %v128 = vadd.f32 0.0, %v127
  %129 = vdwg.mxu0
  %v130 = vadd.f32 %v77, %v126
  %v131 = vadd.f32 %v78, %v128
  %132 = vst.msk [vmem:[#allocation2] sm:$0xff] %vm57, %v130
  %133 = vst.msk [vmem:[#allocation2 + $0x8] sm:$0xff] %vm57, %v131
  // Predicated region
  $region34: #{friday_transformer.28} parent=0 // pred_check
    %p134 = pneg %p27
  $region35: #{friday_transformer.28} parent=0 // pred_check_branch
    %136 = sbr.rel (%p134) target = $region37
  $region36: #{friday_transformer.28} parent=0 // pred_region
    %v137 = vld [vmem:[%s0] sm:$0xff]
    %v138 = vld [vmem:[%s0 + $0x8] sm:$0xff]
    %v139 = vld [vmem:[#allocation2] sm:$0xff]
    %v140 = vld [vmem:[#allocation2 + $0x8] sm:$0xff]
    %v141 = vadd.f32 %v137, %v139
    %v142 = vadd.f32 %v138, %v140
    %v143 = vld [vmem:[%s4] sm:$0x1]
    %v145 = vperm.slane %v143, 0
    %v147 = vadd.f32 %v141, %v145
    %v148 = vadd.f32 %v142, %v145
    %v149 = vsel %vm57, %v147, 0.0
    %150 = vadd.xlane.f32.xlu0 %v149
    %v151 = vpop.xlane.xlu0 %150
    %v152 = vsel %vm57, %v148, 0.0
    %153 = vadd.xlane.f32.xlu0 %v152
    %v154 = vpop.xlane.xlu0 %153
    %v155 = vrcp.pop 32.0
    %v156 = vmul.f32 32.0, %v155
    %v157 = vsub.f32 1.0, %v156
    %v158 = vmul.f32 %v155, %v157
    %v159 = vadd.f32 %v155, %v158
    %vm160 = vweird.f32 %v155
    %v161 = vsel %vm160, %v155, %v159
    %v162 = vmul.f32 %v151, %v161
    %v163 = vmul.f32 %v154, %v161
    %v164 = vsub.f32 %v147, %v162
    %v165 = vsub.f32 %v148, %v163
    %v166 = vmul.f32 %v164, %v164
    %v167 = vmul.f32 %v165, %v165
    %v168 = vsel %vm57, %v166, 0.0
    %169 = vadd.xlane.f32.xlu0 %v168
    %v170 = vpop.xlane.xlu0 %169
    %v171 = vsel %vm57, %v167, 0.0
    %172 = vadd.xlane.f32.xlu0 %v171
    %v173 = vpop.xlane.xlu0 %172
    %v174 = vmul.f32 %v170, %v161
    %v175 = vmul.f32 %v173, %v161
    %v176 = vadd.f32 %v174, 1e-05
    %v177 = vadd.f32 %v175, 1e-05
    %v178 = vrsqrt.pop %v176
    %v179 = vmul.f32 %v178, %v176
    %v180 = vmul.f32 %v179, %v178
    %v181 = vmul.f32 0.5, %v180
    %v182 = vsub.f32 1.5, %v181
    %v183 = vmul.f32 %v178, %v182
    %vm184 = vweird.f32 %v176
    %vm185 = vweird.f32 %v178
    %vm186 = vmor %vm184, %vm185
    %v187 = vsel %vm186, %v178, %v183
    %v188 = vrsqrt.pop %v177
    %v189 = vmul.f32 %v188, %v177
    %v190 = vmul.f32 %v189, %v188
    %v191 = vmul.f32 0.5, %v190
    %v192 = vsub.f32 1.5, %v191
    %v193 = vmul.f32 %v188, %v192
    %vm194 = vweird.f32 %v177
    %vm195 = vweird.f32 %v188
    %vm196 = vmor %vm194, %vm195
    %v197 = vsel %vm196, %v188, %v193
    %v198 = vmul.f32 %v164, %v187
    %v199 = vmul.f32 %v165, %v197
    %v200 = vld [vmem:[%s5] sm:$0x1]
    %v202 = vperm.slane %v200, 0
    %v204 = vmul.f32 %v198, %v202
    %v205 = vmul.f32 %v199, %v202
    %v206 = vld [vmem:[%s6] sm:$0x1]
    %v208 = vperm.slane %v206, 0
    %v210 = vadd.f32 %v204, %v208
    %v211 = vadd.f32 %v205, %v208
    %212 = vst.msk [vmem:[%s7] sm:$0xff] %vm57, %v210
    %213 = vst.msk [vmem:[%s7 + $0x8] sm:$0xff] %vm57, %v211
  $region37: #{friday_transformer.28} parent=0 // pred_fallthru
    _
  // Predicated region
  $region38: #{friday_transformer.28} parent=0 // pred_check
    _
  $region39: #{friday_transformer.28} parent=0 // pred_check_branch
    %215 = sbr.rel (0) target = $region41
  $region40: #{friday_transformer.28} parent=0 // pred_region
    _
  $region41: #{friday_transformer.28} parent=0 // pred_fallthru
    _
  // Predicated region
  $region42: #{friday_transformer.28} parent=0 // pred_check
    _
  $region43: #{friday_transformer.28} parent=0 // pred_check_branch
    %217 = sbr.rel (0) target = $region45
  $region44: #{friday_transformer.28} parent=0 // pred_region
    _
  $region45: #{friday_transformer.28} parent=0 // pred_fallthru
    _

// kernel: friday_transformer.26
$region0: #{friday_transformer.26}
  #allocation0 [shape = 'u32[]', space=smem, size = 0x4, offset = 0x4, fixed_abs, tag = 'smem constant byte address 0x4 - core index']
  #allocation1 [shape = 'u32[72,128]{1,0:T(1,128)}', space=vmem, size = 0x9000, scoped, tag = 'internal scratch']
  %s0 = inlined_call_operand.vmem [shape: f32[2,8,96], index: 0, kind: input, shape index: {}]
  %s1 = inlined_call_operand.vmem [shape: f32[2,1,8], index: 1, kind: input, shape index: {}]
  %s2 = inlined_call_operand.vmem [shape: f32[2,8,32], index: 2, kind: output, shape index: {}]
  %s3 = sld [smem:[#allocation0]]
  $region41: #{friday_transformer.26} parent=0
    _
  %s5 = ssub.s32 1, %s3
  %s6 = scalar_select 0, %s5, %s3
  loop: start=0, step=1, limit=4
  $region2: #{friday_transformer.26} parent=0 // loop_pre_header
    _
  $region3: #{friday_transformer.26} parent=0 // loop_header
    %s8 = sphi 0, %s12
    %p9 = scmp.ge.s32.totalorder %s8, 4
    %s18 = sphi 0, %s20
    %s21 = sphi 0, %s18
    %s22 = sphi 0, %s21
    %s38 = sphi 0, %s22
    %s44 = sphi 0, %s46
    %s47 = sphi 0, %s44
    %s48 = sphi 0, %s47
    %s64 = sphi 0, %s48
    %s70 = sphi 0, %s72
    %s73 = sphi 0, %s70
    %s74 = sphi 0, %s73
    %s90 = sphi 0, %s74
  $region4: #{friday_transformer.26} parent=0 // loop_header_branch
    %11 = sbr.rel (%p9) target = $region8
  $region5: #{friday_transformer.26} parent=0 // loop_body
    %s13 = ssub.s32 %s8, 1
    %s14 = ssub.s32 %s8, 2
    %s15 = sadd.s32 %s8, 1
    %s16 = ssub.s32 %s8, %s15
    %p17 = scmp.eq.s32.totalorder %s16, 0
    %s19 = sadd.s32 %s18, 1
    %s20 = scalar_select %p17, %s18, %s19
    %p23 = pneg %p17
    %p24 = scmp.eq.s32.totalorder %s8, 1
    %p25 = por %p23, %p24
    %p26 = scmp.ne.s32.totalorder %s18, %s21
    %p27 = scmp.eq.s32.totalorder %s8, 0
    %p28 = por %p26, %p27
    %p29 = scmp.ne.s32.totalorder %s18, %s21
    %p30 = scmp.eq.s32.totalorder %s13, 1
    %p31 = por %p29, %p30
    %p32 = scmp.ne.s32.totalorder %s21, %s22
    %p33 = scmp.eq.s32.totalorder %s13, 0
    %p34 = por %p32, %p33
    %p35 = scmp.ne.s32.totalorder %s21, %s22
    %p36 = scmp.eq.s32.totalorder %s14, 1
    %p37 = por %p35, %p36
    %p39 = scmp.ne.s32.totalorder %s22, %s38
    %p40 = scmp.eq.s32.totalorder %s14, 0
    %p41 = por %p39, %p40
    %s42 = ssub.s32 %s8, %s15
    %p43 = scmp.eq.s32.totalorder %s42, 0
    %s45 = sadd.s32 %s44, 1
    %s46 = scalar_select %p43, %s44, %s45
    %p49 = pneg %p43
    %p50 = scmp.eq.s32.totalorder %s8, 1
    %p51 = por %p49, %p50
    %p52 = scmp.ne.s32.totalorder %s44, %s47
    %p53 = scmp.eq.s32.totalorder %s8, 0
    %p54 = por %p52, %p53
    %p55 = scmp.ne.s32.totalorder %s44, %s47
    %p56 = scmp.eq.s32.totalorder %s13, 1
    %p57 = por %p55, %p56
    %p58 = scmp.ne.s32.totalorder %s47, %s48
    %p59 = scmp.eq.s32.totalorder %s13, 0
    %p60 = por %p58, %p59
    %p61 = scmp.ne.s32.totalorder %s47, %s48
    %p62 = scmp.eq.s32.totalorder %s14, 1
    %p63 = por %p61, %p62
    %p65 = scmp.ne.s32.totalorder %s48, %s64
    %p66 = scmp.eq.s32.totalorder %s14, 0
    %p67 = por %p65, %p66
    %s68 = ssub.s32 %s8, %s15
    %p69 = scmp.eq.s32.totalorder %s68, 0
    %s71 = sadd.s32 %s70, 1
    %s72 = scalar_select %p69, %s70, %s71
    %p75 = pneg %p69
    %p76 = scmp.eq.s32.totalorder %s8, 1
    %p77 = por %p75, %p76
    %p78 = scmp.ne.s32.totalorder %s70, %s73
    %p79 = scmp.eq.s32.totalorder %s8, 0
    %p80 = por %p78, %p79
    %p81 = scmp.ne.s32.totalorder %s70, %s73
    %p82 = scmp.eq.s32.totalorder %s13, 1
    %p83 = por %p81, %p82
    %p84 = scmp.ne.s32.totalorder %s73, %s74
    %p85 = scmp.eq.s32.totalorder %s13, 0
    %p86 = por %p84, %p85
    %p87 = scmp.ne.s32.totalorder %s73, %s74
    %p88 = scmp.eq.s32.totalorder %s14, 1
    %p89 = por %p87, %p88
    %p91 = scmp.ne.s32.totalorder %s74, %s90
    %p92 = scmp.eq.s32.totalorder %s14, 0
    %p93 = por %p91, %p92
    %p94 = scmp.le.s32.totalorder 1, %s8
    %p95 = scmp.lt.s32.totalorder %s8, 3
    %p96 = pnand %p94, %p95
    %p97 = pneg %p96
    // Predicated region
    $region9: #{friday_transformer.26} parent=5 // pred_check
      _
    $region10: #{friday_transformer.26} parent=5 // pred_check_branch
      %99 = sbr.rel (%p96) target = $region12
    $region11: #{friday_transformer.26} parent=5 // pred_region
      %s100 = ssub.s32 %s8, 1
    $region12: #{friday_transformer.26} parent=5 // pred_fallthru
      _
    %p101 = scmp.lt.s32.totalorder %s8, 2
    // Predicated region
    $region13: #{friday_transformer.26} parent=5 // pred_check
      %p102 = pneg %p101
    $region14: #{friday_transformer.26} parent=5 // pred_check_branch
      %104 = sbr.rel (%p102) target = $region16
    $region15: #{friday_transformer.26} parent=5 // pred_region
      // Predicated region
      $region17: #{friday_transformer.26} parent=15 // pred_check
        %p105 = pneg %p28
      $region18: #{friday_transformer.26} parent=15 // pred_check_branch
        %107 = sbr.rel (%p105) target = $region20
      $region19: #{friday_transformer.26} parent=15 // pred_region
        %p108 = scmp.lt.s32.totalorder %s8, 1
        %s109 = scalar_select %p108, %s8, 1
        %s110 = smul.addr %s109, 8
        %s111 = scalar_lea.vmem %s0, %s110
      $region20: #{friday_transformer.26} parent=15 // pred_fallthru
        _
      // Predicated region
      $region21: #{friday_transformer.26} parent=15 // pred_check
        %p112 = pneg %p54
      $region22: #{friday_transformer.26} parent=15 // pred_check_branch
        %114 = sbr.rel (%p112) target = $region24
      $region23: #{friday_transformer.26} parent=15 // pred_region
        %p115 = scmp.lt.s32.totalorder %s8, 1
        %s116 = scalar_select %p115, %s8, 1
        %s117 = scalar_lea.vmem %s1, %s116
      $region24: #{friday_transformer.26} parent=15 // pred_fallthru
        _
    $region16: #{friday_transformer.26} parent=5 // pred_fallthru
      _
    %p118 = scmp.le.s32.totalorder 1, %s8
    %p119 = scmp.lt.s32.totalorder %s8, 3
    %p120 = pnand %p118, %p119
    %p121 = pneg %p120
    // Predicated region
    $region25: #{friday_transformer.26} parent=5 // pred_check
      _
    $region26: #{friday_transformer.26} parent=5 // pred_check_branch
      %123 = sbr.rel (%p120) target = $region28
    $region27: #{friday_transformer.26} parent=5 // pred_region
      %s124 = ssub.s32 %s8, 1
      %p125 = scmp.lt.s32.totalorder %s13, 1
      %s126 = scalar_select %p125, %s13, 1
      %s127 = smul.addr %s126, 8
      %s128 = scalar_lea.vmem %s0, %s127
      %p129 = pneg %p34
      %p130 = pneg %p31
      %p131 = scmp.lt.s32.totalorder %s13, 1
      %s132 = scalar_select %p131, %s13, 1
      %s133 = scalar_lea.vmem %s1, %s132
      %p134 = pneg %p60
      %p135 = pneg %p57
      %p136 = pneg %p86
      %p137 = pneg %p83
      %p138 = scmp.lt.s32.totalorder %s13, 1
      %s139 = scalar_select %p138, %s13, 1
      %s140 = smul.addr %s139, 8
      %s141 = scalar_lea.vmem %s2, %s140
      %p142 = scmp.lt.s32.totalorder %s13, 1
      %s143 = scalar_select %p142, %s13, 1
      %s144 = smul.addr %s143, 8
      %s145 = scalar_lea.vmem %s0, %s144
      %p146 = scmp.lt.s32.totalorder %s13, 1
      %s147 = scalar_select %p146, %s13, 1
      %s148 = scalar_lea.vmem %s1, %s147
      %p149 = scmp.lt.s32.totalorder %s13, 1
      %s150 = scalar_select %p149, %s13, 1
      %s151 = smul.addr %s150, 8
      %s152 = scalar_lea.vmem %s2, %s151
      %v154 = vld [vmem:[%s145] sm:$0xff]
      %v155 = vld [vmem:[%s148] sm:$0x1]
      %v156 = vmul.f32 %v154, 0.5
      %v157 = vpack.c.bf16 %v156, %v156
      %v158 = vpack.c.bf16 %v154, %v154
      %160 = vrot.lane.b32.xlu0 %v158, 96
      %v161 = vpop.permute.xlu0 %160
      %vm162 = vcmask 31744
      %v164 = vsel %vm162, %v157, 0
      %v167 = vsel %vm162, %v161, 0
      %169 = vmatpush.bf16.xpose.msra.mxu0 0
      %170 = vmatpush.bf16.xpose.msra.mxu0 0
      %171 = vmatpush.bf16.xpose.msra.mxu0 0
      %172 = vmatpush.bf16.xpose.msra.mxu0 0
      %173 = vmatpush.bf16.xpose.msra.mxu0 0
      %174 = vmatpush.bf16.xpose.msra.mxu0 0
      %175 = vmatpush.bf16.xpose.msra.mxu0 0
      %176 = vmatpush.bf16.xpose.msra.mxu0 %v167
      %177 = vmatmul.bf16.gmra.mxu0 %v164
      %v178 = vpop.f32.mrf.mxu0
      %v179 = vadd.f32 0.0, %v178
      %v180 = vpop.f32.mrf.mxu0
      %181 = vdwg.mxu0
      %vm182 = vcmp.eq.f32.partialorder %v155, 0.0
      %v183 = vsel %vm182, 1, 0
      %v184 = vperm.slane %v183, 0
      %vm185 = vcmp.eq.s32.totalorder %v184, 1
      %v186 = vsel %vm185, -1e+09, %v179
      %vm187 = vcmask 64512
      %v188 = vsel %vm187, %v186, -inf
      %189 = vmax.xlane.f32.xlu0 %v188
      %v190 = vpop.xlane.xlu0 %189
      %v191 = vsub.f32 %v186, %v190
      %v192 = vmul.f32 %v191, 1.442695
      %v193 = vpow.pop %v192
      %v194 = vsel %vm187, %v193, 0.0
      %195 = vadd.xlane.f32.xlu0 %v194
      %v196 = vpop.xlane.xlu0 %195
      %v197 = vrcp.pop %v196
      %v198 = vmul.f32 %v196, %v197
      %v199 = vsub.f32 1.0, %v198
      %v200 = vmul.f32 %v197, %v199
      %v201 = vadd.f32 %v197, %v200
      %vm202 = vweird.f32 %v196
      %vm203 = vweird.f32 %v197
      %vm204 = vmor %vm202, %vm203
      %v205 = vsel %vm204, %v197, %v201
      %v206 = vand.u32 2147483647, %v196
      %vm207 = vcmp.eq.f32.partialorder %v206, 8.507059e+37
      %v208 = vand.u32 %v196, 2147483648
      %v209 = vor.u32 1.1754944e-38, %v208
      %v210 = vsel %vm207, %v209, %v205
      %v211 = vmul.f32 %v193, %v210
      %v212 = vpack.c.bf16 %v211, %v211
      %213 = vrot.lane.b32.xlu0 %v158, 64
      %v214 = vpop.permute.xlu0 %213
      %v216 = vsel %vm187, %v212, 0
      %vm218 = vcmask 1043456
      %v220 = vsel %vm218, %v214, 0
      %222 = vmatpush.bf16.msra.mxu0 0
      %223 = vmatpush.bf16.msra.mxu0 0
      %224 = vmatpush.bf16.msra.mxu0 0
      %225 = vmatpush.bf16.msra.mxu0 0
      %226 = vmatpush.bf16.msra.mxu0 0
      %227 = vmatpush.bf16.msra.mxu0 0
      %228 = vmatpush.bf16.msra.mxu0 0
      %229 = vmatpush.bf16.msra.mxu0 %v220
      %230 = vmatmul.bf16.gmra.mxu0 %v216
      %v231 = vpop.f32.mrf.mxu0
      %v232 = vadd.f32 0.0, %v231
      %v233 = vpop.f32.mrf.mxu0
      %234 = vdwg.mxu0
      %236 = vrot.lane.b32.xlu0 %v157, 124
      %v237 = vpop.permute.xlu0 %236
      %238 = vrot.lane.b32.xlu0 %v158, 92
      %v239 = vpop.permute.xlu0 %238
      %v241 = vsel %vm162, %v237, 0
      %v244 = vsel %vm162, %v239, 0
      %246 = vmatpush.bf16.xpose.msra.mxu0 0
      %247 = vmatpush.bf16.xpose.msra.mxu0 0
      %248 = vmatpush.bf16.xpose.msra.mxu0 0
      %249 = vmatpush.bf16.xpose.msra.mxu0 0
      %250 = vmatpush.bf16.xpose.msra.mxu0 0
      %251 = vmatpush.bf16.xpose.msra.mxu0 0
      %252 = vmatpush.bf16.xpose.msra.mxu0 0
      %253 = vmatpush.bf16.xpose.msra.mxu0 %v244
      %254 = vmatmul.bf16.gmra.mxu0 %v241
      %v255 = vpop.f32.mrf.mxu0
      %v256 = vadd.f32 0.0, %v255
      %v257 = vpop.f32.mrf.mxu0
      %258 = vdwg.mxu0
      %v259 = vsel %vm185, -1e+09, %v256
      %v260 = vsel %vm187, %v259, -inf
      %261 = vmax.xlane.f32.xlu0 %v260
      %v262 = vpop.xlane.xlu0 %261
      %v263 = vsub.f32 %v259, %v262
      %v264 = vmul.f32 %v263, 1.442695
      %v265 = vpow.pop %v264
      %v266 = vsel %vm187, %v265, 0.0
      %267 = vadd.xlane.f32.xlu0 %v266
      %v268 = vpop.xlane.xlu0 %267
      %v269 = vrcp.pop %v268
      %v270 = vmul.f32 %v268, %v269
      %v271 = vsub.f32 1.0, %v270
      %v272 = vmul.f32 %v269, %v271
      %v273 = vadd.f32 %v269, %v272
      %vm274 = vweird.f32 %v268
      %vm275 = vweird.f32 %v269
      %vm276 = vmor %vm274, %vm275
      %v277 = vsel %vm276, %v269, %v273
      %v278 = vand.u32 2147483647, %v268
      %vm279 = vcmp.eq.f32.partialorder %v278, 8.507059e+37
      %v280 = vand.u32 %v268, 2147483648
      %v281 = vor.u32 1.1754944e-38, %v280
      %v282 = vsel %vm279, %v281, %v277
      %v283 = vmul.f32 %v265, %v282
      %v284 = vpack.c.bf16 %v283, %v283
      %285 = vrot.lane.b32.xlu0 %v158, 60
      %v286 = vpop.permute.xlu0 %285
      %v288 = vsel %vm187, %v284, 0
      %v291 = vsel %vm218, %v286, 0
      %293 = vmatpush.bf16.msra.mxu0 0
      %294 = vmatpush.bf16.msra.mxu0 0
      %295 = vmatpush.bf16.msra.mxu0 0
      %296 = vmatpush.bf16.msra.mxu0 0
      %297 = vmatpush.bf16.msra.mxu0 0
      %298 = vmatpush.bf16.msra.mxu0 0
      %299 = vmatpush.bf16.msra.mxu0 0
      %300 = vmatpush.bf16.msra.mxu0 %v291
      %301 = vmatmul.bf16.gmra.mxu0 %v288
      %v302 = vpop.f32.mrf.mxu0
      %v303 = vadd.f32 0.0, %v302
      %v304 = vpop.f32.mrf.mxu0
      %305 = vdwg.mxu0
      %306 = vrot.lane.b32.xlu0 %v157, 120
      %v307 = vpop.permute.xlu0 %306
      %308 = vrot.lane.b32.xlu0 %v158, 88
      %v309 = vpop.permute.xlu0 %308
      %v311 = vsel %vm162, %v307, 0
      %v314 = vsel %vm162, %v309, 0
      %316 = vmatpush.bf16.xpose.msra.mxu0 0
      %317 = vmatpush.bf16.xpose.msra.mxu0 0
      %318 = vmatpush.bf16.xpose.msra.mxu0 0
      %319 = vmatpush.bf16.xpose.msra.mxu0 0
      %320 = vmatpush.bf16.xpose.msra.mxu0 0
      %321 = vmatpush.bf16.xpose.msra.mxu0 0
      %322 = vmatpush.bf16.xpose.msra.mxu0 0
      %323 = vmatpush.bf16.xpose.msra.mxu0 %v314
      %324 = vmatmul.bf16.gmra.mxu0 %v311
      %v325 = vpop.f32.mrf.mxu0
      %v326 = vadd.f32 0.0, %v325
      %v327 = vpop.f32.mrf.mxu0
      %328 = vdwg.mxu0
      %v329 = vsel %vm185, -1e+09, %v326
      %v330 = vsel %vm187, %v329, -inf
      %331 = vmax.xlane.f32.xlu0 %v330
      %v332 = vpop.xlane.xlu0 %331
      %v333 = vsub.f32 %v329, %v332
      %v334 = vmul.f32 %v333, 1.442695
      %v335 = vpow.pop %v334
      %v336 = vsel %vm187, %v335, 0.0
      %337 = vadd.xlane.f32.xlu0 %v336
      %v338 = vpop.xlane.xlu0 %337
      %v339 = vrcp.pop %v338
      %v340 = vmul.f32 %v338, %v339
      %v341 = vsub.f32 1.0, %v340
      %v342 = vmul.f32 %v339, %v341
      %v343 = vadd.f32 %v339, %v342
      %vm344 = vweird.f32 %v338
      %vm345 = vweird.f32 %v339
      %vm346 = vmor %vm344, %vm345
      %v347 = vsel %vm346, %v339, %v343
      %v348 = vand.u32 2147483647, %v338
      %vm349 = vcmp.eq.f32.partialorder %v348, 8.507059e+37
      %v350 = vand.u32 %v338, 2147483648
      %v351 = vor.u32 1.1754944e-38, %v350
      %v352 = vsel %vm349, %v351, %v347
      %v353 = vmul.f32 %v335, %v352
      %v354 = vpack.c.bf16 %v353, %v353
      %355 = vrot.lane.b32.xlu0 %v158, 56
      %v356 = vpop.permute.xlu0 %355
      %v358 = vsel %vm187, %v354, 0
      %v361 = vsel %vm218, %v356, 0
      %363 = vmatpush.bf16.msra.mxu0 0
      %364 = vmatpush.bf16.msra.mxu0 0
      %365 = vmatpush.bf16.msra.mxu0 0
      %366 = vmatpush.bf16.msra.mxu0 0
      %367 = vmatpush.bf16.msra.mxu0 0
      %368 = vmatpush.bf16.msra.mxu0 0
      %369 = vmatpush.bf16.msra.mxu0 0
      %370 = vmatpush.bf16.msra.mxu0 %v361
      %371 = vmatmul.bf16.gmra.mxu0 %v358
      %v372 = vpop.f32.mrf.mxu0
      %v373 = vadd.f32 0.0, %v372
      %v374 = vpop.f32.mrf.mxu0
      %375 = vdwg.mxu0
      %376 = vrot.lane.b32.xlu0 %v157, 116
      %v377 = vpop.permute.xlu0 %376
      %378 = vrot.lane.b32.xlu0 %v158, 84
      %v379 = vpop.permute.xlu0 %378
      %v381 = vsel %vm162, %v377, 0
      %v384 = vsel %vm162, %v379, 0
      %386 = vmatpush.bf16.xpose.msra.mxu0 0
      %387 = vmatpush.bf16.xpose.msra.mxu0 0
      %388 = vmatpush.bf16.xpose.msra.mxu0 0
      %389 = vmatpush.bf16.xpose.msra.mxu0 0
      %390 = vmatpush.bf16.xpose.msra.mxu0 0
      %391 = vmatpush.bf16.xpose.msra.mxu0 0
      %392 = vmatpush.bf16.xpose.msra.mxu0 0
      %393 = vmatpush.bf16.xpose.msra.mxu0 %v384
      %394 = vmatmul.bf16.gmra.mxu0 %v381
      %v395 = vpop.f32.mrf.mxu0
      %v396 = vadd.f32 0.0, %v395
      %v397 = vpop.f32.mrf.mxu0
      %398 = vdwg.mxu0
      %v399 = vsel %vm185, -1e+09, %v396
      %v400 = vsel %vm187, %v399, -inf
      %401 = vmax.xlane.f32.xlu0 %v400
      %v402 = vpop.xlane.xlu0 %401
      %v403 = vsub.f32 %v399, %v402
      %v404 = vmul.f32 %v403, 1.442695
      %v405 = vpow.pop %v404
      %v406 = vsel %vm187, %v405, 0.0
      %407 = vadd.xlane.f32.xlu0 %v406
      %v408 = vpop.xlane.xlu0 %407
      %v409 = vrcp.pop %v408
      %v410 = vmul.f32 %v408, %v409
      %v411 = vsub.f32 1.0, %v410
      %v412 = vmul.f32 %v409, %v411
      %v413 = vadd.f32 %v409, %v412
      %vm414 = vweird.f32 %v408
      %vm415 = vweird.f32 %v409
      %vm416 = vmor %vm414, %vm415
      %v417 = vsel %vm416, %v409, %v413
      %v418 = vand.u32 2147483647, %v408
      %vm419 = vcmp.eq.f32.partialorder %v418, 8.507059e+37
      %v420 = vand.u32 %v408, 2147483648
      %v421 = vor.u32 1.1754944e-38, %v420
      %v422 = vsel %vm419, %v421, %v417
      %v423 = vmul.f32 %v405, %v422
      %v424 = vpack.c.bf16 %v423, %v423
      %425 = vrot.lane.b32.xlu0 %v158, 52
      %v426 = vpop.permute.xlu0 %425
      %v428 = vsel %vm187, %v424, 0
      %v431 = vsel %vm218, %v426, 0
      %433 = vmatpush.bf16.msra.mxu0 0
      %434 = vmatpush.bf16.msra.mxu0 0
      %435 = vmatpush.bf16.msra.mxu0 0
      %436 = vmatpush.bf16.msra.mxu0 0
      %437 = vmatpush.bf16.msra.mxu0 0
      %438 = vmatpush.bf16.msra.mxu0 0
      %439 = vmatpush.bf16.msra.mxu0 0
      %440 = vmatpush.bf16.msra.mxu0 %v431
      %441 = vmatmul.bf16.gmra.mxu0 %v428
      %v442 = vpop.f32.mrf.mxu0
      %v443 = vadd.f32 0.0, %v442
      %v444 = vpop.f32.mrf.mxu0
      %445 = vdwg.mxu0
      %446 = vrot.lane.b32.xlu0 %v157, 112
      %v447 = vpop.permute.xlu0 %446
      %448 = vrot.lane.b32.xlu0 %v158, 80
      %v449 = vpop.permute.xlu0 %448
      %v451 = vsel %vm162, %v447, 0
      %v454 = vsel %vm162, %v449, 0
      %456 = vmatpush.bf16.xpose.msra.mxu0 0
      %457 = vmatpush.bf16.xpose.msra.mxu0 0
      %458 = vmatpush.bf16.xpose.msra.mxu0 0
      %459 = vmatpush.bf16.xpose.msra.mxu0 0
      %460 = vmatpush.bf16.xpose.msra.mxu0 0
      %461 = vmatpush.bf16.xpose.msra.mxu0 0
      %462 = vmatpush.bf16.xpose.msra.mxu0 0
      %463 = vmatpush.bf16.xpose.msra.mxu0 %v454
      %464 = vmatmul.bf16.gmra.mxu0 %v451
      %v465 = vpop.f32.mrf.mxu0
      %v466 = vadd.f32 0.0, %v465
      %v467 = vpop.f32.mrf.mxu0
      %468 = vdwg.mxu0
      %v469 = vsel %vm185, -1e+09, %v466
      %v470 = vsel %vm187, %v469, -inf
      %471 = vmax.xlane.f32.xlu0 %v470
      %v472 = vpop.xlane.xlu0 %471
      %v473 = vsub.f32 %v469, %v472
      %v474 = vmul.f32 %v473, 1.442695
      %v475 = vpow.pop %v474
      %v476 = vsel %vm187, %v475, 0.0
      %477 = vadd.xlane.f32.xlu0 %v476
      %v478 = vpop.xlane.xlu0 %477
      %v479 = vrcp.pop %v478
      %v480 = vmul.f32 %v478, %v479
      %v481 = vsub.f32 1.0, %v480
      %v482 = vmul.f32 %v479, %v481
      %v483 = vadd.f32 %v479, %v482
      %vm484 = vweird.f32 %v478
      %vm485 = vweird.f32 %v479
      %vm486 = vmor %vm484, %vm485
      %v487 = vsel %vm486, %v479, %v483
      %v488 = vand.u32 2147483647, %v478
      %vm489 = vcmp.eq.f32.partialorder %v488, 8.507059e+37
      %v490 = vand.u32 %v478, 2147483648
      %v491 = vor.u32 1.1754944e-38, %v490
      %v492 = vsel %vm489, %v491, %v487
      %v493 = vmul.f32 %v475, %v492
      %v494 = vpack.c.bf16 %v493, %v493
      %495 = vrot.lane.b32.xlu0 %v158, 48
      %v496 = vpop.permute.xlu0 %495
      %v498 = vsel %vm187, %v494, 0
      %v501 = vsel %vm218, %v496, 0
      %503 = vmatpush.bf16.msra.mxu0 0
      %504 = vmatpush.bf16.msra.mxu0 0
      %505 = vmatpush.bf16.msra.mxu0 0
      %506 = vmatpush.bf16.msra.mxu0 0
      %507 = vmatpush.bf16.msra.mxu0 0
      %508 = vmatpush.bf16.msra.mxu0 0
      %509 = vmatpush.bf16.msra.mxu0 0
      %510 = vmatpush.bf16.msra.mxu0 %v501
      %511 = vmatmul.bf16.gmra.mxu0 %v498
      %v512 = vpop.f32.mrf.mxu0
      %v513 = vadd.f32 0.0, %v512
      %v514 = vpop.f32.mrf.mxu0
      %515 = vdwg.mxu0
      %516 = vrot.lane.b32.xlu0 %v157, 108
      %v517 = vpop.permute.xlu0 %516
      %518 = vrot.lane.b32.xlu0 %v158, 76
      %v519 = vpop.permute.xlu0 %518
      %v521 = vsel %vm162, %v517, 0
      %v524 = vsel %vm162, %v519, 0
      %526 = vmatpush.bf16.xpose.msra.mxu0 0
      %527 = vmatpush.bf16.xpose.msra.mxu0 0
      %528 = vmatpush.bf16.xpose.msra.mxu0 0
      %529 = vmatpush.bf16.xpose.msra.mxu0 0
      %530 = vmatpush.bf16.xpose.msra.mxu0 0
      %531 = vmatpush.bf16.xpose.msra.mxu0 0
      %532 = vmatpush.bf16.xpose.msra.mxu0 0
      %533 = vmatpush.bf16.xpose.msra.mxu0 %v524
      %534 = vmatmul.bf16.gmra.mxu0 %v521
      %v535 = vpop.f32.mrf.mxu0
      %v536 = vadd.f32 0.0, %v535
      %v537 = vpop.f32.mrf.mxu0
      %538 = vdwg.mxu0
      %v539 = vsel %vm185, -1e+09, %v536
      %v540 = vsel %vm187, %v539, -inf
      %541 = vmax.xlane.f32.xlu0 %v540
      %v542 = vpop.xlane.xlu0 %541
      %v543 = vsub.f32 %v539, %v542
      %v544 = vmul.f32 %v543, 1.442695
      %v545 = vpow.pop %v544
      %v546 = vsel %vm187, %v545, 0.0
      %547 = vadd.xlane.f32.xlu0 %v546
      %v548 = vpop.xlane.xlu0 %547
      %v549 = vrcp.pop %v548
      %v550 = vmul.f32 %v548, %v549
      %v551 = vsub.f32 1.0, %v550
      %v552 = vmul.f32 %v549, %v551
      %v553 = vadd.f32 %v549, %v552
      %vm554 = vweird.f32 %v548
      %vm555 = vweird.f32 %v549
      %vm556 = vmor %vm554, %vm555
      %v557 = vsel %vm556, %v549, %v553
      %v558 = vand.u32 2147483647, %v548
      %vm559 = vcmp.eq.f32.partialorder %v558, 8.507059e+37
      %v560 = vand.u32 %v548, 2147483648
      %v561 = vor.u32 1.1754944e-38, %v560
      %v562 = vsel %vm559, %v561, %v557
      %v563 = vmul.f32 %v545, %v562
      %v564 = vpack.c.bf16 %v563, %v563
      %565 = vrot.lane.b32.xlu0 %v158, 44
      %v566 = vpop.permute.xlu0 %565
      %v568 = vsel %vm187, %v564, 0
      %v571 = vsel %vm218, %v566, 0
      %573 = vmatpush.bf16.msra.mxu0 0
      %574 = vmatpush.bf16.msra.mxu0 0
      %575 = vmatpush.bf16.msra.mxu0 0
      %576 = vmatpush.bf16.msra.mxu0 0
      %577 = vmatpush.bf16.msra.mxu0 0
      %578 = vmatpush.bf16.msra.mxu0 0
      %579 = vmatpush.bf16.msra.mxu0 0
      %580 = vmatpush.bf16.msra.mxu0 %v571
      %581 = vmatmul.bf16.gmra.mxu0 %v568
      %v582 = vpop.f32.mrf.mxu0
      %v583 = vadd.f32 0.0, %v582
      %v584 = vpop.f32.mrf.mxu0
      %585 = vdwg.mxu0
      %586 = vrot.lane.b32.xlu0 %v157, 104
      %v587 = vpop.permute.xlu0 %586
      %588 = vrot.lane.b32.xlu0 %v158, 72
      %v589 = vpop.permute.xlu0 %588
      %v591 = vsel %vm162, %v587, 0
      %v594 = vsel %vm162, %v589, 0
      %596 = vmatpush.bf16.xpose.msra.mxu0 0
      %597 = vmatpush.bf16.xpose.msra.mxu0 0
      %598 = vmatpush.bf16.xpose.msra.mxu0 0
      %599 = vmatpush.bf16.xpose.msra.mxu0 0
      %600 = vmatpush.bf16.xpose.msra.mxu0 0
      %601 = vmatpush.bf16.xpose.msra.mxu0 0
      %602 = vmatpush.bf16.xpose.msra.mxu0 0
      %603 = vmatpush.bf16.xpose.msra.mxu0 %v594
      %604 = vmatmul.bf16.gmra.mxu0 %v591
      %v605 = vpop.f32.mrf.mxu0
      %v606 = vadd.f32 0.0, %v605
      %v607 = vpop.f32.mrf.mxu0
      %608 = vdwg.mxu0
      %v609 = vsel %vm185, -1e+09, %v606
      %v610 = vsel %vm187, %v609, -inf
      %611 = vmax.xlane.f32.xlu0 %v610
      %v612 = vpop.xlane.xlu0 %611
      %v613 = vsub.f32 %v609, %v612
      %v614 = vmul.f32 %v613, 1.442695
      %v615 = vpow.pop %v614
      %v616 = vsel %vm187, %v615, 0.0
      %617 = vadd.xlane.f32.xlu0 %v616
      %v618 = vpop.xlane.xlu0 %617
      %v619 = vrcp.pop %v618
      %v620 = vmul.f32 %v618, %v619
      %v621 = vsub.f32 1.0, %v620
      %v622 = vmul.f32 %v619, %v621
      %v623 = vadd.f32 %v619, %v622
      %vm624 = vweird.f32 %v618
      %vm625 = vweird.f32 %v619
      %vm626 = vmor %vm624, %vm625
      %v627 = vsel %vm626, %v619, %v623
      %v628 = vand.u32 2147483647, %v618
      %vm629 = vcmp.eq.f32.partialorder %v628, 8.507059e+37
      %v630 = vand.u32 %v618, 2147483648
      %v631 = vor.u32 1.1754944e-38, %v630
      %v632 = vsel %vm629, %v631, %v627
      %v633 = vmul.f32 %v615, %v632
      %v634 = vpack.c.bf16 %v633, %v633
      %635 = vrot.lane.b32.xlu0 %v158, 40
      %v636 = vpop.permute.xlu0 %635
      %v638 = vsel %vm187, %v634, 0
      %v641 = vsel %vm218, %v636, 0
      %643 = vmatpush.bf16.msra.mxu0 0
      %644 = vmatpush.bf16.msra.mxu0 0
      %645 = vmatpush.bf16.msra.mxu0 0
      %646 = vmatpush.bf16.msra.mxu0 0
      %647 = vmatpush.bf16.msra.mxu0 0
      %648 = vmatpush.bf16.msra.mxu0 0
      %649 = vmatpush.bf16.msra.mxu0 0
      %650 = vmatpush.bf16.msra.mxu0 %v641
      %651 = vmatmul.bf16.gmra.mxu0 %v638
      %v652 = vpop.f32.mrf.mxu0
      %v653 = vadd.f32 0.0, %v652
      %v654 = vpop.f32.mrf.mxu0
      %655 = vdwg.mxu0
      %656 = vrot.lane.b32.xlu0 %v157, 100
      %v657 = vpop.permute.xlu0 %656
      %658 = vrot.lane.b32.xlu0 %v158, 68
      %v659 = vpop.permute.xlu0 %658
      %v661 = vsel %vm162, %v657, 0
      %v664 = vsel %vm162, %v659, 0
      %666 = vmatpush.bf16.xpose.msra.mxu0 0
      %667 = vmatpush.bf16.xpose.msra.mxu0 0
      %668 = vmatpush.bf16.xpose.msra.mxu0 0
      %669 = vmatpush.bf16.xpose.msra.mxu0 0
      %670 = vmatpush.bf16.xpose.msra.mxu0 0
      %671 = vmatpush.bf16.xpose.msra.mxu0 0
      %672 = vmatpush.bf16.xpose.msra.mxu0 0
      %673 = vmatpush.bf16.xpose.msra.mxu0 %v664
      %674 = vmatmul.bf16.gmra.mxu0 %v661
      %v675 = vpop.f32.mrf.mxu0
      %v676 = vadd.f32 0.0, %v675
      %v677 = vpop.f32.mrf.mxu0
      %678 = vdwg.mxu0
      %v679 = vsel %vm185, -1e+09, %v676
      %v680 = vsel %vm187, %v679, -inf
      %681 = vmax.xlane.f32.xlu0 %v680
      %v682 = vpop.xlane.xlu0 %681
      %v683 = vsub.f32 %v679, %v682
      %v684 = vmul.f32 %v683, 1.442695
      %v685 = vpow.pop %v684
      %v686 = vsel %vm187, %v685, 0.0
      %687 = vadd.xlane.f32.xlu0 %v686
      %v688 = vpop.xlane.xlu0 %687
      %v689 = vrcp.pop %v688
      %v690 = vmul.f32 %v688, %v689
      %v691 = vsub.f32 1.0, %v690
      %v692 = vmul.f32 %v689, %v691
      %v693 = vadd.f32 %v689, %v692
      %vm694 = vweird.f32 %v688
      %vm695 = vweird.f32 %v689
      %vm696 = vmor %vm694, %vm695
      %v697 = vsel %vm696, %v689, %v693
      %v698 = vand.u32 2147483647, %v688
      %vm699 = vcmp.eq.f32.partialorder %v698, 8.507059e+37
      %v700 = vand.u32 %v688, 2147483648
      %v701 = vor.u32 1.1754944e-38, %v700
      %v702 = vsel %vm699, %v701, %v697
      %v703 = vmul.f32 %v685, %v702
      %v704 = vpack.c.bf16 %v703, %v703
      %705 = vrot.lane.b32.xlu0 %v158, 36
      %v706 = vpop.permute.xlu0 %705
      %v708 = vsel %vm187, %v704, 0
      %v711 = vsel %vm218, %v706, 0
      %713 = vmatpush.bf16.msra.mxu0 0
      %714 = vmatpush.bf16.msra.mxu0 0
      %715 = vmatpush.bf16.msra.mxu0 0
      %716 = vmatpush.bf16.msra.mxu0 0
      %717 = vmatpush.bf16.msra.mxu0 0
      %718 = vmatpush.bf16.msra.mxu0 0
      %719 = vmatpush.bf16.msra.mxu0 0
      %720 = vmatpush.bf16.msra.mxu0 %v711
      %721 = vmatmul.bf16.gmra.mxu0 %v708
      %v722 = vpop.f32.mrf.mxu0
      %v723 = vadd.f32 0.0, %v722
      %v724 = vpop.f32.mrf.mxu0
      %725 = vdwg.mxu0
      %727 = vrot.lane.b32.xlu0 %v303, 4
      %v728 = vpop.permute.xlu0 %727
      %731 = vrot.lane.b32.xlu0 %v373, 8
      %v732 = vpop.permute.xlu0 %731
      %735 = vrot.lane.b32.xlu0 %v443, 12
      %v736 = vpop.permute.xlu0 %735
      %739 = vrot.lane.b32.xlu0 %v513, 16
      %v740 = vpop.permute.xlu0 %739
      %743 = vrot.lane.b32.xlu0 %v583, 20
      %v744 = vpop.permute.xlu0 %743
      %747 = vrot.lane.b32.xlu0 %v653, 24
      %v748 = vpop.permute.xlu0 %747
      %751 = vrot.lane.b32.xlu0 %v723, 28
      %v752 = vpop.permute.xlu0 %751
      %v754 = vsel %vm162, %v232, %v728
      %v755 = vsel %vm187, %v754, %v732
      %vm756 = vcmask 97280
      %v757 = vsel %vm756, %v755, %v736
      %vm758 = vcmask 130048
      %v759 = vsel %vm758, %v757, %v740
      %vm760 = vcmask 162816
      %v761 = vsel %vm760, %v759, %v744
      %vm762 = vcmask 195584
      %v763 = vsel %vm762, %v761, %v748
      %vm764 = vcmask 228352
      %v765 = vsel %vm764, %v763, %v752
      %vm766 = vcmask 261120
      %767 = vst.msk [vmem:[%s152] sm:$0xff] %vm766, %v765
      %p768 = scmp.lt.s32.totalorder %s13, 1
      %s769 = scalar_select %p768, %s13, 1
      %s770 = smul.addr %s769, 8
      %s771 = scalar_lea.vmem %s2, %s770
      // Predicated region
      $region29: #{friday_transformer.26} parent=27 // pred_check
        %p772 = pneg %p83
      $region30: #{friday_transformer.26} parent=27 // pred_check_branch
        %774 = sbr.rel (%p772) target = $region32
      $region31: #{friday_transformer.26} parent=27 // pred_region
        _
      $region32: #{friday_transformer.26} parent=27 // pred_fallthru
        _
    $region28: #{friday_transformer.26} parent=5 // pred_fallthru
      _
    %p775 = scmp.le.s32.totalorder 2, %s8
    // Predicated region
    $region33: #{friday_transformer.26} parent=5 // pred_check
      %p776 = pneg %p775
    $region34: #{friday_transformer.26} parent=5 // pred_check_branch
      %778 = sbr.rel (%p776) target = $region36
    $region35: #{friday_transformer.26} parent=5 // pred_region
      %s779 = ssub.s32 %s8, 2
      // Predicated region
      $region37: #{friday_transformer.26} parent=35 // pred_check
        %p780 = pneg %p89
      $region38: #{friday_transformer.26} parent=35 // pred_check_branch
        %782 = sbr.rel (%p780) target = $region40
      $region39: #{friday_transformer.26} parent=35 // pred_region
        %p783 = scmp.lt.s32.totalorder %s14, 1
        %s784 = scalar_select %p783, %s14, 1
        %s785 = smul.addr %s784, 8
        %s786 = scalar_lea.vmem %s2, %s785
      $region40: #{friday_transformer.26} parent=35 // pred_fallthru
        _
    $region36: #{friday_transformer.26} parent=5 // pred_fallthru
      _
  $region6: #{friday_transformer.26} parent=0 // loop_footer
    %s12 = sadd.s32 1, %s8
  $region7: #{friday_transformer.26} parent=0 // loop_footer_branch
    %7 = sbr.rel target = $region3
  $region8: #{friday_transformer.26} parent=0 // loop_exit
    _

// kernel: friday_transformer.37
$region0: #{friday_transformer.37}
  #allocation0 [shape = 'u32[]', space=smem, size = 0x4, offset = 0x4, fixed_abs, tag = 'smem constant byte address 0x4 - core index']
  #allocation1 [shape = 'u32[72,128]{1,0:T(1,128)}', space=vmem, size = 0x9000, scoped, tag = 'internal scratch']
  #allocation2 [shape = 'f32[16,64]{1,0:T(8,128)}', space=vmem, size = 0x2000, scoped, tag = 'scratch operand']
  %s0 = inlined_call_operand.vmem [shape: f32[16,32], index: 0, kind: input, shape index: {}]
  %s1 = inlined_call_operand.vmem [shape: bf16[32,64], index: 1, kind: input, shape index: {}]
  %s2 = inlined_call_operand.vmem [shape: f32[1,64], index: 2, kind: input, shape index: {}]
  %s3 = inlined_call_operand.vmem [shape: f32[16,64], index: 3, kind: output, shape index: {}]
  %s4 = sld [smem:[#allocation0]]
  $region30: #{friday_transformer.37} parent=0
    _
  %s6 = ssub.s32 1, %s4
  %s7 = scalar_select 0, %s6, %s4
  // Predicated region
  $region2: #{friday_transformer.37} parent=0 // pred_check
    _
  $region3: #{friday_transformer.37} parent=0 // pred_check_branch
    %9 = sbr.rel (0) target = $region5
  $region4: #{friday_transformer.37} parent=0 // pred_region
    _
  $region5: #{friday_transformer.37} parent=0 // pred_fallthru
    _
  // Predicated region
  $region6: #{friday_transformer.37} parent=0 // pred_check
    _
  $region7: #{friday_transformer.37} parent=0 // pred_check_branch
    %11 = sbr.rel (0) target = $region9
  $region8: #{friday_transformer.37} parent=0 // pred_region
    _
  $region9: #{friday_transformer.37} parent=0 // pred_fallthru
    _
  // Predicated region
  $region10: #{friday_transformer.37} parent=0 // pred_check
    _
  $region11: #{friday_transformer.37} parent=0 // pred_check_branch
    %13 = sbr.rel (0) target = $region13
  $region12: #{friday_transformer.37} parent=0 // pred_region
    _
  $region13: #{friday_transformer.37} parent=0 // pred_fallthru
    _
  %p15 = scmp.eq.s32.totalorder 0, 0
  // Predicated region
  $region14: #{friday_transformer.37} parent=0 // pred_check
    %p16 = pneg %p15
  $region15: #{friday_transformer.37} parent=0 // pred_check_branch
    %18 = sbr.rel (%p16) target = $region17
  $region16: #{friday_transformer.37} parent=0 // pred_region
    %vm19 = vcmask 523264
    %20 = vst.msk [vmem:[#allocation2] sm:$0xff] %vm19, 0.0
    %21 = vst.msk [vmem:[#allocation2 + $0x8] sm:$0xff] %vm19, 0.0
  $region17: #{friday_transformer.37} parent=0 // pred_fallthru
    _
  %v22 = vld [vmem:[#allocation2] sm:$0xff]
  %v23 = vld [vmem:[#allocation2 + $0x8] sm:$0xff]
  %v24 = vld [vmem:[%s0] sm:$0xff]
  %v25 = vld [vmem:[%s0 + $0x8] sm:$0xff]
  %v26 = vpack.c.bf16 %v25, %v24
  %v27 = vld [vmem:[%s1] sm:$0xf]
  %v28 = vld [vmem:[%s1 + $0x4] sm:$0xf]
  %v29 = vld [vmem:[%s1 + $0x8] sm:$0xf]
  %v30 = vld [vmem:[%s1 + $0xc] sm:$0xf]
  %v35 = vunpack.c.l.b16 %v27
  %v36 = vunpack.c.l.b16 %v28
  %v37 = vunpack.c.l.b16 %v29
  %v38 = vunpack.c.l.b16 %v30
  %v39 = vpack.c.b16 %v36, %v35
  %v40 = vpack.c.b16 %v38, %v37
  %vm43 = vcmask 261120
  %v45 = vsel %vm43, %v26, 0
  %47 = vmatpush.bf16.msra.mxu0 0
  %48 = vmatpush.bf16.msra.mxu0 0
  %49 = vmatpush.bf16.msra.mxu0 0
  %50 = vmatpush.bf16.msra.mxu0 0
  %51 = vmatpush.bf16.msra.mxu0 0
  %52 = vmatpush.bf16.msra.mxu0 0
  %53 = vmatpush.bf16.msra.mxu0 %v40
  %54 = vmatpush.bf16.msra.mxu0 %v39
  %55 = vmatmul.bf16.gmra.mxu0 %v45
  %v56 = vpop.f32.mrf.mxu0
  %v57 = vadd.f32 0.0, %v56
  %v58 = vpop.f32.mrf.mxu0
  %v59 = vadd.f32 0.0, %v58
  %60 = vdwg.mxu0
  %v61 = vadd.f32 %v22, %v57
  %v62 = vadd.f32 %v23, %v59
  %vm63 = vcmask 523264
  %64 = vst.msk [vmem:[#allocation2] sm:$0xff] %vm63, %v61
  %65 = vst.msk [vmem:[#allocation2 + $0x8] sm:$0xff] %vm63, %v62
  // Predicated region
  $region18: #{friday_transformer.37} parent=0 // pred_check
    %p66 = pneg %p15
  $region19: #{friday_transformer.37} parent=0 // pred_check_branch
    %68 = sbr.rel (%p66) target = $region21
  $region20: #{friday_transformer.37} parent=0 // pred_region
    %v69 = vld [vmem:[#allocation2] sm:$0xff]
    %v70 = vld [vmem:[#allocation2 + $0x8] sm:$0xff]
    %v71 = vld [vmem:[%s2] sm:$0x1]
    %v73 = vperm.slane %v71, 0
    %v75 = vadd.f32 %v69, %v73
    %v76 = vadd.f32 %v70, %v73
    %77 = vst.msk [vmem:[%s3] sm:$0xff] %vm63, %v75
    %78 = vst.msk [vmem:[%s3 + $0x8] sm:$0xff] %vm63, %v76
  $region21: #{friday_transformer.37} parent=0 // pred_fallthru
    _
  // Predicated region
  $region22: #{friday_transformer.37} parent=0 // pred_check
    _
  $region23: #{friday_transformer.37} parent=0 // pred_check_branch
    %80 = sbr.rel (0) target = $region25
  $region24: #{friday_transformer.37} parent=0 // pred_region
    _
  $region25: #{friday_transformer.37} parent=0 // pred_fallthru
    _
  // Predicated region
  $region26: #{friday_transformer.37} parent=0 // pred_check
    _
  $region27: #{friday_transformer.37} parent=0 // pred_check_branch
    %82 = sbr.rel (0) target = $region29
  $region28: #{friday_transformer.37} parent=0 // pred_region
    _
  $region29: #{friday_transformer.37} parent=0 // pred_fallthru
    _

// kernel: friday_transformer.36
$region0: #{friday_transformer.36}
  #allocation0 [shape = 'u32[]', space=smem, size = 0x4, offset = 0x4, fixed_abs, tag = 'smem constant byte address 0x4 - core index']
  #allocation1 [shape = 'u32[72,128]{1,0:T(1,128)}', space=vmem, size = 0x9000, scoped, tag = 'internal scratch']
  #allocation2 [shape = 'f32[16,32]{1,0:T(8,128)}', space=vmem, size = 0x2000, scoped, tag = 'scratch operand']
  %s0 = inlined_call_operand.vmem [shape: f32[16,32], index: 0, kind: input, shape index: {}]
  %s1 = inlined_call_operand.vmem [shape: bf16[32,32], index: 1, kind: input, shape index: {}]
  %s2 = inlined_call_operand.vmem [shape: f32[1,32], index: 2, kind: input, shape index: {}]
  %s3 = inlined_call_operand.vmem [shape: f32[16,32], index: 3, kind: output, shape index: {}]
  %s4 = sld [smem:[#allocation0]]
  $region30: #{friday_transformer.36} parent=0
    _
  %s6 = ssub.s32 1, %s4
  %s7 = scalar_select 0, %s6, %s4
  // Predicated region
  $region2: #{friday_transformer.36} parent=0 // pred_check
    _
  $region3: #{friday_transformer.36} parent=0 // pred_check_branch
    %9 = sbr.rel (0) target = $region5
  $region4: #{friday_transformer.36} parent=0 // pred_region
    _
  $region5: #{friday_transformer.36} parent=0 // pred_fallthru
    _
  // Predicated region
  $region6: #{friday_transformer.36} parent=0 // pred_check
    _
  $region7: #{friday_transformer.36} parent=0 // pred_check_branch
    %11 = sbr.rel (0) target = $region9
  $region8: #{friday_transformer.36} parent=0 // pred_region
    _
  $region9: #{friday_transformer.36} parent=0 // pred_fallthru
    _
  // Predicated region
  $region10: #{friday_transformer.36} parent=0 // pred_check
    _
  $region11: #{friday_transformer.36} parent=0 // pred_check_branch
    %13 = sbr.rel (0) target = $region13
  $region12: #{friday_transformer.36} parent=0 // pred_region
    _
  $region13: #{friday_transformer.36} parent=0 // pred_fallthru
    _
  %p15 = scmp.eq.s32.totalorder 0, 0
  // Predicated region
  $region14: #{friday_transformer.36} parent=0 // pred_check
    %p16 = pneg %p15
  $region15: #{friday_transformer.36} parent=0 // pred_check_branch
    %18 = sbr.rel (%p16) target = $region17
  $region16: #{friday_transformer.36} parent=0 // pred_region
    %vm19 = vcmask 261120
    %20 = vst.msk [vmem:[#allocation2] sm:$0xff] %vm19, 0.0
    %21 = vst.msk [vmem:[#allocation2 + $0x8] sm:$0xff] %vm19, 0.0
  $region17: #{friday_transformer.36} parent=0 // pred_fallthru
    _
  %v22 = vld [vmem:[#allocation2] sm:$0xff]
  %v23 = vld [vmem:[#allocation2 + $0x8] sm:$0xff]
  %v24 = vld [vmem:[%s0] sm:$0xff]
  %v25 = vld [vmem:[%s0 + $0x8] sm:$0xff]
  %v26 = vpack.c.bf16 %v25, %v24
  %v27 = vld [vmem:[%s1] sm:$0xf]
  %v28 = vld [vmem:[%s1 + $0x4] sm:$0xf]
  %v29 = vld [vmem:[%s1 + $0x8] sm:$0xf]
  %v30 = vld [vmem:[%s1 + $0xc] sm:$0xf]
  %v35 = vunpack.c.l.b16 %v27
  %v36 = vunpack.c.l.b16 %v28
  %v37 = vunpack.c.l.b16 %v29
  %v38 = vunpack.c.l.b16 %v30
  %v39 = vpack.c.b16 %v36, %v35
  %v40 = vpack.c.b16 %v38, %v37
  %vm43 = vcmask 261120
  %v45 = vsel %vm43, %v26, 0
  %47 = vmatpush.bf16.msra.mxu0 0
  %48 = vmatpush.bf16.msra.mxu0 0
  %49 = vmatpush.bf16.msra.mxu0 0
  %50 = vmatpush.bf16.msra.mxu0 0
  %51 = vmatpush.bf16.msra.mxu0 0
  %52 = vmatpush.bf16.msra.mxu0 0
  %53 = vmatpush.bf16.msra.mxu0 %v40
  %54 = vmatpush.bf16.msra.mxu0 %v39
  %55 = vmatmul.bf16.gmra.mxu0 %v45
  %v56 = vpop.f32.mrf.mxu0
  %v57 = vadd.f32 0.0, %v56
  %v58 = vpop.f32.mrf.mxu0
  %v59 = vadd.f32 0.0, %v58
  %60 = vdwg.mxu0
  %v61 = vadd.f32 %v22, %v57
  %v62 = vadd.f32 %v23, %v59
  %63 = vst.msk [vmem:[#allocation2] sm:$0xff] %vm43, %v61
  %64 = vst.msk [vmem:[#allocation2 + $0x8] sm:$0xff] %vm43, %v62
  // Predicated region
  $region18: #{friday_transformer.36} parent=0 // pred_check
    %p65 = pneg %p15
  $region19: #{friday_transformer.36} parent=0 // pred_check_branch
    %67 = sbr.rel (%p65) target = $region21
  $region20: #{friday_transformer.36} parent=0 // pred_region
    %v68 = vld [vmem:[#allocation2] sm:$0xff]
    %v69 = vld [vmem:[#allocation2 + $0x8] sm:$0xff]
    %v70 = vld [vmem:[%s2] sm:$0x1]
    %v72 = vperm.slane %v70, 0
    %v74 = vadd.f32 %v68, %v72
    %v75 = vadd.f32 %v69, %v72
    %76 = vst.msk [vmem:[%s3] sm:$0xff] %vm43, %v74
    %77 = vst.msk [vmem:[%s3 + $0x8] sm:$0xff] %vm43, %v75
  $region21: #{friday_transformer.36} parent=0 // pred_fallthru
    _
  // Predicated region
  $region22: #{friday_transformer.36} parent=0 // pred_check
    _
  $region23: #{friday_transformer.36} parent=0 // pred_check_branch
    %79 = sbr.rel (0) target = $region25
  $region24: #{friday_transformer.36} parent=0 // pred_region
    _
  $region25: #{friday_transformer.36} parent=0 // pred_fallthru
    _
  // Predicated region
  $region26: #{friday_transformer.36} parent=0 // pred_check
    _
  $region27: #{friday_transformer.36} parent=0 // pred_check_branch
    %81 = sbr.rel (0) target = $region29
  $region28: #{friday_transformer.36} parent=0 // pred_region
    _
  $region29: #{friday_transformer.36} parent=0 // pred_fallthru
    _

// kernel: friday_transformer.34
$region0: #{friday_transformer.34}
  #allocation0 [shape = 'u32[]', space=smem, size = 0x4, offset = 0x4, fixed_abs, tag = 'smem constant byte address 0x4 - core index']
  #allocation1 [shape = 'u32[72,128]{1,0:T(1,128)}', space=vmem, size = 0x9000, scoped, tag = 'internal scratch']
  %s0 = inlined_call_operand.vmem [shape: f32[2,8,96], index: 0, kind: input, shape index: {}]
  %s1 = inlined_call_operand.vmem [shape: f32[2,8,32], index: 1, kind: output, shape index: {}]
  %s2 = sld [smem:[#allocation0]]
  $region37: #{friday_transformer.34} parent=0
    _
  %s4 = ssub.s32 1, %s2
  %s5 = scalar_select 0, %s4, %s2
  loop: start=0, step=1, limit=4
  $region2: #{friday_transformer.34} parent=0 // loop_pre_header
    _
  $region3: #{friday_transformer.34} parent=0 // loop_header
    %s7 = sphi 0, %s11
    %p8 = scmp.ge.s32.totalorder %s7, 4
    %s17 = sphi 0, %s19
    %s20 = sphi 0, %s17
    %s21 = sphi 0, %s20
    %s37 = sphi 0, %s21
    %s43 = sphi 0, %s45
    %s46 = sphi 0, %s43
    %s47 = sphi 0, %s46
    %s63 = sphi 0, %s47
  $region4: #{friday_transformer.34} parent=0 // loop_header_branch
    %10 = sbr.rel (%p8) target = $region8
  $region5: #{friday_transformer.34} parent=0 // loop_body
    %s12 = ssub.s32 %s7, 1
    %s13 = ssub.s32 %s7, 2
    %s14 = sadd.s32 %s7, 1
    %s15 = ssub.s32 %s7, %s14
    %p16 = scmp.eq.s32.totalorder %s15, 0
    %s18 = sadd.s32 %s17, 1
    %s19 = scalar_select %p16, %s17, %s18
    %p22 = pneg %p16
    %p23 = scmp.eq.s32.totalorder %s7, 1
    %p24 = por %p22, %p23
    %p25 = scmp.ne.s32.totalorder %s17, %s20
    %p26 = scmp.eq.s32.totalorder %s7, 0
    %p27 = por %p25, %p26
    %p28 = scmp.ne.s32.totalorder %s17, %s20
    %p29 = scmp.eq.s32.totalorder %s12, 1
    %p30 = por %p28, %p29
    %p31 = scmp.ne.s32.totalorder %s20, %s21
    %p32 = scmp.eq.s32.totalorder %s12, 0
    %p33 = por %p31, %p32
    %p34 = scmp.ne.s32.totalorder %s20, %s21
    %p35 = scmp.eq.s32.totalorder %s13, 1
    %p36 = por %p34, %p35
    %p38 = scmp.ne.s32.totalorder %s21, %s37
    %p39 = scmp.eq.s32.totalorder %s13, 0
    %p40 = por %p38, %p39
    %s41 = ssub.s32 %s7, %s14
    %p42 = scmp.eq.s32.totalorder %s41, 0
    %s44 = sadd.s32 %s43, 1
    %s45 = scalar_select %p42, %s43, %s44
    %p48 = pneg %p42
    %p49 = scmp.eq.s32.totalorder %s7, 1
    %p50 = por %p48, %p49
    %p51 = scmp.ne.s32.totalorder %s43, %s46
    %p52 = scmp.eq.s32.totalorder %s7, 0
    %p53 = por %p51, %p52
    %p54 = scmp.ne.s32.totalorder %s43, %s46
    %p55 = scmp.eq.s32.totalorder %s12, 1
    %p56 = por %p54, %p55
    %p57 = scmp.ne.s32.totalorder %s46, %s47
    %p58 = scmp.eq.s32.totalorder %s12, 0
    %p59 = por %p57, %p58
    %p60 = scmp.ne.s32.totalorder %s46, %s47
    %p61 = scmp.eq.s32.totalorder %s13, 1
    %p62 = por %p60, %p61
    %p64 = scmp.ne.s32.totalorder %s47, %s63
    %p65 = scmp.eq.s32.totalorder %s13, 0
    %p66 = por %p64, %p65
    %p67 = scmp.le.s32.totalorder 1, %s7
    %p68 = scmp.lt.s32.totalorder %s7, 3
    %p69 = pnand %p67, %p68
    %p70 = pneg %p69
    // Predicated region
    $region9: #{friday_transformer.34} parent=5 // pred_check
      _
    $region10: #{friday_transformer.34} parent=5 // pred_check_branch
      %72 = sbr.rel (%p69) target = $region12
    $region11: #{friday_transformer.34} parent=5 // pred_region
      %s73 = ssub.s32 %s7, 1
    $region12: #{friday_transformer.34} parent=5 // pred_fallthru
      _
    %p74 = scmp.lt.s32.totalorder %s7, 2
    // Predicated region
    $region13: #{friday_transformer.34} parent=5 // pred_check
      %p75 = pneg %p74
    $region14: #{friday_transformer.34} parent=5 // pred_check_branch
      %77 = sbr.rel (%p75) target = $region16
    $region15: #{friday_transformer.34} parent=5 // pred_region
      // Predicated region
      $region17: #{friday_transformer.34} parent=15 // pred_check
        %p78 = pneg %p27
      $region18: #{friday_transformer.34} parent=15 // pred_check_branch
        %80 = sbr.rel (%p78) target = $region20
      $region19: #{friday_transformer.34} parent=15 // pred_region
        %p81 = scmp.lt.s32.totalorder %s7, 1
        %s82 = scalar_select %p81, %s7, 1
        %s83 = smul.addr %s82, 8
        %s84 = scalar_lea.vmem %s0, %s83
      $region20: #{friday_transformer.34} parent=15 // pred_fallthru
        _
    $region16: #{friday_transformer.34} parent=5 // pred_fallthru
      _
    %p85 = scmp.le.s32.totalorder 1, %s7
    %p86 = scmp.lt.s32.totalorder %s7, 3
    %p87 = pnand %p85, %p86
    %p88 = pneg %p87
    // Predicated region
    $region21: #{friday_transformer.34} parent=5 // pred_check
      _
    $region22: #{friday_transformer.34} parent=5 // pred_check_branch
      %90 = sbr.rel (%p87) target = $region24
    $region23: #{friday_transformer.34} parent=5 // pred_region
      %s91 = ssub.s32 %s7, 1
      %p92 = scmp.lt.s32.totalorder %s12, 1
      %s93 = scalar_select %p92, %s12, 1
      %s94 = smul.addr %s93, 8
      %s95 = scalar_lea.vmem %s0, %s94
      %p96 = pneg %p33
      %p97 = pneg %p30
      %p98 = pneg %p59
      %p99 = pneg %p56
      %p100 = scmp.lt.s32.totalorder %s12, 1
      %s101 = scalar_select %p100, %s12, 1
      %s102 = smul.addr %s101, 8
      %s103 = scalar_lea.vmem %s1, %s102
      %p104 = scmp.lt.s32.totalorder %s12, 1
      %s105 = scalar_select %p104, %s12, 1
      %s106 = smul.addr %s105, 8
      %s107 = scalar_lea.vmem %s0, %s106
      %p108 = scmp.lt.s32.totalorder %s12, 1
      %s109 = scalar_select %p108, %s12, 1
      %s110 = smul.addr %s109, 8
      %s111 = scalar_lea.vmem %s1, %s110
      %v113 = vld [vmem:[%s107] sm:$0xff]
      %v114 = vlaneseq
      %v115 = vshrl.u32 %v114, 7
      %v116 = vlaneseq
      %v117 = vand.u32 %v116, 127
      %vm118 = vcmp.le.s32.totalorder %v117, %v115
      %v119 = vmul.f32 %v113, 0.5
      %v120 = vpack.c.bf16 %v119, %v119
      %v121 = vpack.c.bf16 %v113, %v113
      %123 = vrot.lane.b32.xlu0 %v121, 96
      %v124 = vpop.permute.xlu0 %123
      %vm125 = vcmask 31744
      %v127 = vsel %vm125, %v120, 0
      %v130 = vsel %vm125, %v124, 0
      %132 = vmatpush.bf16.xpose.msra.mxu0 0
      %133 = vmatpush.bf16.xpose.msra.mxu0 0
      %134 = vmatpush.bf16.xpose.msra.mxu0 0
      %135 = vmatpush.bf16.xpose.msra.mxu0 0
      %136 = vmatpush.bf16.xpose.msra.mxu0 0
      %137 = vmatpush.bf16.xpose.msra.mxu0 0
      %138 = vmatpush.bf16.xpose.msra.mxu0 0
      %139 = vmatpush.bf16.xpose.msra.mxu0 %v130
      %140 = vmatmul.bf16.gmra.mxu0 %v127
      %v141 = vpop.f32.mrf.mxu0
      %v142 = vadd.f32 0.0, %v141
      %v143 = vpop.f32.mrf.mxu0
      %144 = vdwg.mxu0
      %v145 = vsel %vm118, %v142, -1e+09
      %vm146 = vcmask 64512
      %v147 = vsel %vm146, %v145, -inf
      %148 = vmax.xlane.f32.xlu0 %v147
      %v149 = vpop.xlane.xlu0 %148
      %v150 = vsub.f32 %v145, %v149
      %v151 = vmul.f32 %v150, 1.442695
      %v152 = vpow.pop %v151
      %v153 = vsel %vm146, %v152, 0.0
      %154 = vadd.xlane.f32.xlu0 %v153
      %v155 = vpop.xlane.xlu0 %154
      %v156 = vrcp.pop %v155
      %v157 = vmul.f32 %v155, %v156
      %v158 = vsub.f32 1.0, %v157
      %v159 = vmul.f32 %v156, %v158
      %v160 = vadd.f32 %v156, %v159
      %vm161 = vweird.f32 %v155
      %vm162 = vweird.f32 %v156
      %vm163 = vmor %vm161, %vm162
      %v164 = vsel %vm163, %v156, %v160
      %v165 = vand.u32 2147483647, %v155
      %vm166 = vcmp.eq.f32.partialorder %v165, 8.507059e+37
      %v167 = vand.u32 %v155, 2147483648
      %v168 = vor.u32 1.1754944e-38, %v167
      %v169 = vsel %vm166, %v168, %v164
      %v170 = vmul.f32 %v152, %v169
      %v171 = vpack.c.bf16 %v170, %v170
      %172 = vrot.lane.b32.xlu0 %v121, 64
      %v173 = vpop.permute.xlu0 %172
      %v175 = vsel %vm146, %v171, 0
      %vm177 = vcmask 1043456
      %v179 = vsel %vm177, %v173, 0
      %181 = vmatpush.bf16.msra.mxu0 0
      %182 = vmatpush.bf16.msra.mxu0 0
      %183 = vmatpush.bf16.msra.mxu0 0
      %184 = vmatpush.bf16.msra.mxu0 0
      %185 = vmatpush.bf16.msra.mxu0 0
      %186 = vmatpush.bf16.msra.mxu0 0
      %187 = vmatpush.bf16.msra.mxu0 0
      %188 = vmatpush.bf16.msra.mxu0 %v179
      %189 = vmatmul.bf16.gmra.mxu0 %v175
      %v190 = vpop.f32.mrf.mxu0
      %v191 = vadd.f32 0.0, %v190
      %v192 = vpop.f32.mrf.mxu0
      %193 = vdwg.mxu0
      %195 = vrot.lane.b32.xlu0 %v120, 124
      %v196 = vpop.permute.xlu0 %195
      %197 = vrot.lane.b32.xlu0 %v121, 92
      %v198 = vpop.permute.xlu0 %197
      %v200 = vsel %vm125, %v196, 0
      %v203 = vsel %vm125, %v198, 0
      %205 = vmatpush.bf16.xpose.msra.mxu0 0
      %206 = vmatpush.bf16.xpose.msra.mxu0 0
      %207 = vmatpush.bf16.xpose.msra.mxu0 0
      %208 = vmatpush.bf16.xpose.msra.mxu0 0
      %209 = vmatpush.bf16.xpose.msra.mxu0 0
      %210 = vmatpush.bf16.xpose.msra.mxu0 0
      %211 = vmatpush.bf16.xpose.msra.mxu0 0
      %212 = vmatpush.bf16.xpose.msra.mxu0 %v203
      %213 = vmatmul.bf16.gmra.mxu0 %v200
      %v214 = vpop.f32.mrf.mxu0
      %v215 = vadd.f32 0.0, %v214
      %v216 = vpop.f32.mrf.mxu0
      %217 = vdwg.mxu0
      %v218 = vsel %vm118, %v215, -1e+09
      %v219 = vsel %vm146, %v218, -inf
      %220 = vmax.xlane.f32.xlu0 %v219
      %v221 = vpop.xlane.xlu0 %220
      %v222 = vsub.f32 %v218, %v221
      %v223 = vmul.f32 %v222, 1.442695
      %v224 = vpow.pop %v223
      %v225 = vsel %vm146, %v224, 0.0
      %226 = vadd.xlane.f32.xlu0 %v225
      %v227 = vpop.xlane.xlu0 %226
      %v228 = vrcp.pop %v227
      %v229 = vmul.f32 %v227, %v228
      %v230 = vsub.f32 1.0, %v229
      %v231 = vmul.f32 %v228, %v230
      %v232 = vadd.f32 %v228, %v231
      %vm233 = vweird.f32 %v227
      %vm234 = vweird.f32 %v228
      %vm235 = vmor %vm233, %vm234
      %v236 = vsel %vm235, %v228, %v232
      %v237 = vand.u32 2147483647, %v227
      %vm238 = vcmp.eq.f32.partialorder %v237, 8.507059e+37
      %v239 = vand.u32 %v227, 2147483648
      %v240 = vor.u32 1.1754944e-38, %v239
      %v241 = vsel %vm238, %v240, %v236
      %v242 = vmul.f32 %v224, %v241
      %v243 = vpack.c.bf16 %v242, %v242
      %244 = vrot.lane.b32.xlu0 %v121, 60
      %v245 = vpop.permute.xlu0 %244
      %v247 = vsel %vm146, %v243, 0
      %v250 = vsel %vm177, %v245, 0
      %252 = vmatpush.bf16.msra.mxu0 0
      %253 = vmatpush.bf16.msra.mxu0 0
      %254 = vmatpush.bf16.msra.mxu0 0
      %255 = vmatpush.bf16.msra.mxu0 0
      %256 = vmatpush.bf16.msra.mxu0 0
      %257 = vmatpush.bf16.msra.mxu0 0
      %258 = vmatpush.bf16.msra.mxu0 0
      %259 = vmatpush.bf16.msra.mxu0 %v250
      %260 = vmatmul.bf16.gmra.mxu0 %v247
      %v261 = vpop.f32.mrf.mxu0
      %v262 = vadd.f32 0.0, %v261
      %v263 = vpop.f32.mrf.mxu0
      %264 = vdwg.mxu0
      %265 = vrot.lane.b32.xlu0 %v120, 120
      %v266 = vpop.permute.xlu0 %265
      %267 = vrot.lane.b32.xlu0 %v121, 88
      %v268 = vpop.permute.xlu0 %267
      %v270 = vsel %vm125, %v266, 0
      %v273 = vsel %vm125, %v268, 0
      %275 = vmatpush.bf16.xpose.msra.mxu0 0
      %276 = vmatpush.bf16.xpose.msra.mxu0 0
      %277 = vmatpush.bf16.xpose.msra.mxu0 0
      %278 = vmatpush.bf16.xpose.msra.mxu0 0
      %279 = vmatpush.bf16.xpose.msra.mxu0 0
      %280 = vmatpush.bf16.xpose.msra.mxu0 0
      %281 = vmatpush.bf16.xpose.msra.mxu0 0
      %282 = vmatpush.bf16.xpose.msra.mxu0 %v273
      %283 = vmatmul.bf16.gmra.mxu0 %v270
      %v284 = vpop.f32.mrf.mxu0
      %v285 = vadd.f32 0.0, %v284
      %v286 = vpop.f32.mrf.mxu0
      %287 = vdwg.mxu0
      %v288 = vsel %vm118, %v285, -1e+09
      %v289 = vsel %vm146, %v288, -inf
      %290 = vmax.xlane.f32.xlu0 %v289
      %v291 = vpop.xlane.xlu0 %290
      %v292 = vsub.f32 %v288, %v291
      %v293 = vmul.f32 %v292, 1.442695
      %v294 = vpow.pop %v293
      %v295 = vsel %vm146, %v294, 0.0
      %296 = vadd.xlane.f32.xlu0 %v295
      %v297 = vpop.xlane.xlu0 %296
      %v298 = vrcp.pop %v297
      %v299 = vmul.f32 %v297, %v298
      %v300 = vsub.f32 1.0, %v299
      %v301 = vmul.f32 %v298, %v300
      %v302 = vadd.f32 %v298, %v301
      %vm303 = vweird.f32 %v297
      %vm304 = vweird.f32 %v298
      %vm305 = vmor %vm303, %vm304
      %v306 = vsel %vm305, %v298, %v302
      %v307 = vand.u32 2147483647, %v297
      %vm308 = vcmp.eq.f32.partialorder %v307, 8.507059e+37
      %v309 = vand.u32 %v297, 2147483648
      %v310 = vor.u32 1.1754944e-38, %v309
      %v311 = vsel %vm308, %v310, %v306
      %v312 = vmul.f32 %v294, %v311
      %v313 = vpack.c.bf16 %v312, %v312
      %314 = vrot.lane.b32.xlu0 %v121, 56
      %v315 = vpop.permute.xlu0 %314
      %v317 = vsel %vm146, %v313, 0
      %v320 = vsel %vm177, %v315, 0
      %322 = vmatpush.bf16.msra.mxu0 0
      %323 = vmatpush.bf16.msra.mxu0 0
      %324 = vmatpush.bf16.msra.mxu0 0
      %325 = vmatpush.bf16.msra.mxu0 0
      %326 = vmatpush.bf16.msra.mxu0 0
      %327 = vmatpush.bf16.msra.mxu0 0
      %328 = vmatpush.bf16.msra.mxu0 0
      %329 = vmatpush.bf16.msra.mxu0 %v320
      %330 = vmatmul.bf16.gmra.mxu0 %v317
      %v331 = vpop.f32.mrf.mxu0
      %v332 = vadd.f32 0.0, %v331
      %v333 = vpop.f32.mrf.mxu0
      %334 = vdwg.mxu0
      %335 = vrot.lane.b32.xlu0 %v120, 116
      %v336 = vpop.permute.xlu0 %335
      %337 = vrot.lane.b32.xlu0 %v121, 84
      %v338 = vpop.permute.xlu0 %337
      %v340 = vsel %vm125, %v336, 0
      %v343 = vsel %vm125, %v338, 0
      %345 = vmatpush.bf16.xpose.msra.mxu0 0
      %346 = vmatpush.bf16.xpose.msra.mxu0 0
      %347 = vmatpush.bf16.xpose.msra.mxu0 0
      %348 = vmatpush.bf16.xpose.msra.mxu0 0
      %349 = vmatpush.bf16.xpose.msra.mxu0 0
      %350 = vmatpush.bf16.xpose.msra.mxu0 0
      %351 = vmatpush.bf16.xpose.msra.mxu0 0
      %352 = vmatpush.bf16.xpose.msra.mxu0 %v343
      %353 = vmatmul.bf16.gmra.mxu0 %v340
      %v354 = vpop.f32.mrf.mxu0
      %v355 = vadd.f32 0.0, %v354
      %v356 = vpop.f32.mrf.mxu0
      %357 = vdwg.mxu0
      %v358 = vsel %vm118, %v355, -1e+09
      %v359 = vsel %vm146, %v358, -inf
      %360 = vmax.xlane.f32.xlu0 %v359
      %v361 = vpop.xlane.xlu0 %360
      %v362 = vsub.f32 %v358, %v361
      %v363 = vmul.f32 %v362, 1.442695
      %v364 = vpow.pop %v363
      %v365 = vsel %vm146, %v364, 0.0
      %366 = vadd.xlane.f32.xlu0 %v365
      %v367 = vpop.xlane.xlu0 %366
      %v368 = vrcp.pop %v367
      %v369 = vmul.f32 %v367, %v368
      %v370 = vsub.f32 1.0, %v369
      %v371 = vmul.f32 %v368, %v370
      %v372 = vadd.f32 %v368, %v371
      %vm373 = vweird.f32 %v367
      %vm374 = vweird.f32 %v368
      %vm375 = vmor %vm373, %vm374
      %v376 = vsel %vm375, %v368, %v372
      %v377 = vand.u32 2147483647, %v367
      %vm378 = vcmp.eq.f32.partialorder %v377, 8.507059e+37
      %v379 = vand.u32 %v367, 2147483648
      %v380 = vor.u32 1.1754944e-38, %v379
      %v381 = vsel %vm378, %v380, %v376
      %v382 = vmul.f32 %v364, %v381
      %v383 = vpack.c.bf16 %v382, %v382
      %384 = vrot.lane.b32.xlu0 %v121, 52
      %v385 = vpop.permute.xlu0 %384
      %v387 = vsel %vm146, %v383, 0
      %v390 = vsel %vm177, %v385, 0
      %392 = vmatpush.bf16.msra.mxu0 0
      %393 = vmatpush.bf16.msra.mxu0 0
      %394 = vmatpush.bf16.msra.mxu0 0
      %395 = vmatpush.bf16.msra.mxu0 0
      %396 = vmatpush.bf16.msra.mxu0 0
      %397 = vmatpush.bf16.msra.mxu0 0
      %398 = vmatpush.bf16.msra.mxu0 0
      %399 = vmatpush.bf16.msra.mxu0 %v390
      %400 = vmatmul.bf16.gmra.mxu0 %v387
      %v401 = vpop.f32.mrf.mxu0
      %v402 = vadd.f32 0.0, %v401
      %v403 = vpop.f32.mrf.mxu0
      %404 = vdwg.mxu0
      %405 = vrot.lane.b32.xlu0 %v120, 112
      %v406 = vpop.permute.xlu0 %405
      %407 = vrot.lane.b32.xlu0 %v121, 80
      %v408 = vpop.permute.xlu0 %407
      %v410 = vsel %vm125, %v406, 0
      %v413 = vsel %vm125, %v408, 0
      %415 = vmatpush.bf16.xpose.msra.mxu0 0
      %416 = vmatpush.bf16.xpose.msra.mxu0 0
      %417 = vmatpush.bf16.xpose.msra.mxu0 0
      %418 = vmatpush.bf16.xpose.msra.mxu0 0
      %419 = vmatpush.bf16.xpose.msra.mxu0 0
      %420 = vmatpush.bf16.xpose.msra.mxu0 0
      %421 = vmatpush.bf16.xpose.msra.mxu0 0
      %422 = vmatpush.bf16.xpose.msra.mxu0 %v413
      %423 = vmatmul.bf16.gmra.mxu0 %v410
      %v424 = vpop.f32.mrf.mxu0
      %v425 = vadd.f32 0.0, %v424
      %v426 = vpop.f32.mrf.mxu0
      %427 = vdwg.mxu0
      %v428 = vsel %vm118, %v425, -1e+09
      %v429 = vsel %vm146, %v428, -inf
      %430 = vmax.xlane.f32.xlu0 %v429
      %v431 = vpop.xlane.xlu0 %430
      %v432 = vsub.f32 %v428, %v431
      %v433 = vmul.f32 %v432, 1.442695
      %v434 = vpow.pop %v433
      %v435 = vsel %vm146, %v434, 0.0
      %436 = vadd.xlane.f32.xlu0 %v435
      %v437 = vpop.xlane.xlu0 %436
      %v438 = vrcp.pop %v437
      %v439 = vmul.f32 %v437, %v438
      %v440 = vsub.f32 1.0, %v439
      %v441 = vmul.f32 %v438, %v440
      %v442 = vadd.f32 %v438, %v441
      %vm443 = vweird.f32 %v437
      %vm444 = vweird.f32 %v438
      %vm445 = vmor %vm443, %vm444
      %v446 = vsel %vm445, %v438, %v442
      %v447 = vand.u32 2147483647, %v437
      %vm448 = vcmp.eq.f32.partialorder %v447, 8.507059e+37
      %v449 = vand.u32 %v437, 2147483648
      %v450 = vor.u32 1.1754944e-38, %v449
      %v451 = vsel %vm448, %v450, %v446
      %v452 = vmul.f32 %v434, %v451
      %v453 = vpack.c.bf16 %v452, %v452
      %454 = vrot.lane.b32.xlu0 %v121, 48
      %v455 = vpop.permute.xlu0 %454
      %v457 = vsel %vm146, %v453, 0
      %v460 = vsel %vm177, %v455, 0
      %462 = vmatpush.bf16.msra.mxu0 0
      %463 = vmatpush.bf16.msra.mxu0 0
      %464 = vmatpush.bf16.msra.mxu0 0
      %465 = vmatpush.bf16.msra.mxu0 0
      %466 = vmatpush.bf16.msra.mxu0 0
      %467 = vmatpush.bf16.msra.mxu0 0
      %468 = vmatpush.bf16.msra.mxu0 0
      %469 = vmatpush.bf16.msra.mxu0 %v460
      %470 = vmatmul.bf16.gmra.mxu0 %v457
      %v471 = vpop.f32.mrf.mxu0
      %v472 = vadd.f32 0.0, %v471
      %v473 = vpop.f32.mrf.mxu0
      %474 = vdwg.mxu0
      %475 = vrot.lane.b32.xlu0 %v120, 108
      %v476 = vpop.permute.xlu0 %475
      %477 = vrot.lane.b32.xlu0 %v121, 76
      %v478 = vpop.permute.xlu0 %477
      %v480 = vsel %vm125, %v476, 0
      %v483 = vsel %vm125, %v478, 0
      %485 = vmatpush.bf16.xpose.msra.mxu0 0
      %486 = vmatpush.bf16.xpose.msra.mxu0 0
      %487 = vmatpush.bf16.xpose.msra.mxu0 0
      %488 = vmatpush.bf16.xpose.msra.mxu0 0
      %489 = vmatpush.bf16.xpose.msra.mxu0 0
      %490 = vmatpush.bf16.xpose.msra.mxu0 0
      %491 = vmatpush.bf16.xpose.msra.mxu0 0
      %492 = vmatpush.bf16.xpose.msra.mxu0 %v483
      %493 = vmatmul.bf16.gmra.mxu0 %v480
      %v494 = vpop.f32.mrf.mxu0
      %v495 = vadd.f32 0.0, %v494
      %v496 = vpop.f32.mrf.mxu0
      %497 = vdwg.mxu0
      %v498 = vsel %vm118, %v495, -1e+09
      %v499 = vsel %vm146, %v498, -inf
      %500 = vmax.xlane.f32.xlu0 %v499
      %v501 = vpop.xlane.xlu0 %500
      %v502 = vsub.f32 %v498, %v501
      %v503 = vmul.f32 %v502, 1.442695
      %v504 = vpow.pop %v503
      %v505 = vsel %vm146, %v504, 0.0
      %506 = vadd.xlane.f32.xlu0 %v505
      %v507 = vpop.xlane.xlu0 %506
      %v508 = vrcp.pop %v507
      %v509 = vmul.f32 %v507, %v508
      %v510 = vsub.f32 1.0, %v509
      %v511 = vmul.f32 %v508, %v510
      %v512 = vadd.f32 %v508, %v511
      %vm513 = vweird.f32 %v507
      %vm514 = vweird.f32 %v508
      %vm515 = vmor %vm513, %vm514
      %v516 = vsel %vm515, %v508, %v512
      %v517 = vand.u32 2147483647, %v507
      %vm518 = vcmp.eq.f32.partialorder %v517, 8.507059e+37
      %v519 = vand.u32 %v507, 2147483648
      %v520 = vor.u32 1.1754944e-38, %v519
      %v521 = vsel %vm518, %v520, %v516
      %v522 = vmul.f32 %v504, %v521
      %v523 = vpack.c.bf16 %v522, %v522
      %524 = vrot.lane.b32.xlu0 %v121, 44
      %v525 = vpop.permute.xlu0 %524
      %v527 = vsel %vm146, %v523, 0
      %v530 = vsel %vm177, %v525, 0
      %532 = vmatpush.bf16.msra.mxu0 0
      %533 = vmatpush.bf16.msra.mxu0 0
      %534 = vmatpush.bf16.msra.mxu0 0
      %535 = vmatpush.bf16.msra.mxu0 0
      %536 = vmatpush.bf16.msra.mxu0 0
      %537 = vmatpush.bf16.msra.mxu0 0
      %538 = vmatpush.bf16.msra.mxu0 0
      %539 = vmatpush.bf16.msra.mxu0 %v530
      %540 = vmatmul.bf16.gmra.mxu0 %v527
      %v541 = vpop.f32.mrf.mxu0
      %v542 = vadd.f32 0.0, %v541
      %v543 = vpop.f32.mrf.mxu0
      %544 = vdwg.mxu0
      %545 = vrot.lane.b32.xlu0 %v120, 104
      %v546 = vpop.permute.xlu0 %545
      %547 = vrot.lane.b32.xlu0 %v121, 72
      %v548 = vpop.permute.xlu0 %547
      %v550 = vsel %vm125, %v546, 0
      %v553 = vsel %vm125, %v548, 0
      %555 = vmatpush.bf16.xpose.msra.mxu0 0
      %556 = vmatpush.bf16.xpose.msra.mxu0 0
      %557 = vmatpush.bf16.xpose.msra.mxu0 0
      %558 = vmatpush.bf16.xpose.msra.mxu0 0
      %559 = vmatpush.bf16.xpose.msra.mxu0 0
      %560 = vmatpush.bf16.xpose.msra.mxu0 0
      %561 = vmatpush.bf16.xpose.msra.mxu0 0
      %562 = vmatpush.bf16.xpose.msra.mxu0 %v553
      %563 = vmatmul.bf16.gmra.mxu0 %v550
      %v564 = vpop.f32.mrf.mxu0
      %v565 = vadd.f32 0.0, %v564
      %v566 = vpop.f32.mrf.mxu0
      %567 = vdwg.mxu0
      %v568 = vsel %vm118, %v565, -1e+09
      %v569 = vsel %vm146, %v568, -inf
      %570 = vmax.xlane.f32.xlu0 %v569
      %v571 = vpop.xlane.xlu0 %570
      %v572 = vsub.f32 %v568, %v571
      %v573 = vmul.f32 %v572, 1.442695
      %v574 = vpow.pop %v573
      %v575 = vsel %vm146, %v574, 0.0
      %576 = vadd.xlane.f32.xlu0 %v575
      %v577 = vpop.xlane.xlu0 %576
      %v578 = vrcp.pop %v577
      %v579 = vmul.f32 %v577, %v578
      %v580 = vsub.f32 1.0, %v579
      %v581 = vmul.f32 %v578, %v580
      %v582 = vadd.f32 %v578, %v581
      %vm583 = vweird.f32 %v577
      %vm584 = vweird.f32 %v578
      %vm585 = vmor %vm583, %vm584
      %v586 = vsel %vm585, %v578, %v582
      %v587 = vand.u32 2147483647, %v577
      %vm588 = vcmp.eq.f32.partialorder %v587, 8.507059e+37
      %v589 = vand.u32 %v577, 2147483648
      %v590 = vor.u32 1.1754944e-38, %v589
      %v591 = vsel %vm588, %v590, %v586
      %v592 = vmul.f32 %v574, %v591
      %v593 = vpack.c.bf16 %v592, %v592
      %594 = vrot.lane.b32.xlu0 %v121, 40
      %v595 = vpop.permute.xlu0 %594
      %v597 = vsel %vm146, %v593, 0
      %v600 = vsel %vm177, %v595, 0
      %602 = vmatpush.bf16.msra.mxu0 0
      %603 = vmatpush.bf16.msra.mxu0 0
      %604 = vmatpush.bf16.msra.mxu0 0
      %605 = vmatpush.bf16.msra.mxu0 0
      %606 = vmatpush.bf16.msra.mxu0 0
      %607 = vmatpush.bf16.msra.mxu0 0
      %608 = vmatpush.bf16.msra.mxu0 0
      %609 = vmatpush.bf16.msra.mxu0 %v600
      %610 = vmatmul.bf16.gmra.mxu0 %v597
      %v611 = vpop.f32.mrf.mxu0
      %v612 = vadd.f32 0.0, %v611
      %v613 = vpop.f32.mrf.mxu0
      %614 = vdwg.mxu0
      %615 = vrot.lane.b32.xlu0 %v120, 100
      %v616 = vpop.permute.xlu0 %615
      %617 = vrot.lane.b32.xlu0 %v121, 68
      %v618 = vpop.permute.xlu0 %617
      %v620 = vsel %vm125, %v616, 0
      %v623 = vsel %vm125, %v618, 0
      %625 = vmatpush.bf16.xpose.msra.mxu0 0
      %626 = vmatpush.bf16.xpose.msra.mxu0 0
      %627 = vmatpush.bf16.xpose.msra.mxu0 0
      %628 = vmatpush.bf16.xpose.msra.mxu0 0
      %629 = vmatpush.bf16.xpose.msra.mxu0 0
      %630 = vmatpush.bf16.xpose.msra.mxu0 0
      %631 = vmatpush.bf16.xpose.msra.mxu0 0
      %632 = vmatpush.bf16.xpose.msra.mxu0 %v623
      %633 = vmatmul.bf16.gmra.mxu0 %v620
      %v634 = vpop.f32.mrf.mxu0
      %v635 = vadd.f32 0.0, %v634
      %v636 = vpop.f32.mrf.mxu0
      %637 = vdwg.mxu0
      %v638 = vsel %vm118, %v635, -1e+09
      %v639 = vsel %vm146, %v638, -inf
      %640 = vmax.xlane.f32.xlu0 %v639
      %v641 = vpop.xlane.xlu0 %640
      %v642 = vsub.f32 %v638, %v641
      %v643 = vmul.f32 %v642, 1.442695
      %v644 = vpow.pop %v643
      %v645 = vsel %vm146, %v644, 0.0
      %646 = vadd.xlane.f32.xlu0 %v645
      %v647 = vpop.xlane.xlu0 %646
      %v648 = vrcp.pop %v647
      %v649 = vmul.f32 %v647, %v648
      %v650 = vsub.f32 1.0, %v649
      %v651 = vmul.f32 %v648, %v650
      %v652 = vadd.f32 %v648, %v651
      %vm653 = vweird.f32 %v647
      %vm654 = vweird.f32 %v648
      %vm655 = vmor %vm653, %vm654
      %v656 = vsel %vm655, %v648, %v652
      %v657 = vand.u32 2147483647, %v647
      %vm658 = vcmp.eq.f32.partialorder %v657, 8.507059e+37
      %v659 = vand.u32 %v647, 2147483648
      %v660 = vor.u32 1.1754944e-38, %v659
      %v661 = vsel %vm658, %v660, %v656
      %v662 = vmul.f32 %v644, %v661
      %v663 = vpack.c.bf16 %v662, %v662
      %664 = vrot.lane.b32.xlu0 %v121, 36
      %v665 = vpop.permute.xlu0 %664
      %v667 = vsel %vm146, %v663, 0
      %v670 = vsel %vm177, %v665, 0
      %672 = vmatpush.bf16.msra.mxu0 0
      %673 = vmatpush.bf16.msra.mxu0 0
      %674 = vmatpush.bf16.msra.mxu0 0
      %675 = vmatpush.bf16.msra.mxu0 0
      %676 = vmatpush.bf16.msra.mxu0 0
      %677 = vmatpush.bf16.msra.mxu0 0
      %678 = vmatpush.bf16.msra.mxu0 0
      %679 = vmatpush.bf16.msra.mxu0 %v670
      %680 = vmatmul.bf16.gmra.mxu0 %v667
      %v681 = vpop.f32.mrf.mxu0
      %v682 = vadd.f32 0.0, %v681
      %v683 = vpop.f32.mrf.mxu0
      %684 = vdwg.mxu0
      %686 = vrot.lane.b32.xlu0 %v262, 4
      %v687 = vpop.permute.xlu0 %686
      %690 = vrot.lane.b32.xlu0 %v332, 8
      %v691 = vpop.permute.xlu0 %690
      %694 = vrot.lane.b32.xlu0 %v402, 12
      %v695 = vpop.permute.xlu0 %694
      %698 = vrot.lane.b32.xlu0 %v472, 16
      %v699 = vpop.permute.xlu0 %698
      %702 = vrot.lane.b32.xlu0 %v542, 20
      %v703 = vpop.permute.xlu0 %702
      %706 = vrot.lane.b32.xlu0 %v612, 24
      %v707 = vpop.permute.xlu0 %706
      %710 = vrot.lane.b32.xlu0 %v682, 28
      %v711 = vpop.permute.xlu0 %710
      %v713 = vsel %vm125, %v191, %v687
      %v714 = vsel %vm146, %v713, %v691
      %vm715 = vcmask 97280
      %v716 = vsel %vm715, %v714, %v695
      %vm717 = vcmask 130048
      %v718 = vsel %vm717, %v716, %v699
      %vm719 = vcmask 162816
      %v720 = vsel %vm719, %v718, %v703
      %vm721 = vcmask 195584
      %v722 = vsel %vm721, %v720, %v707
      %vm723 = vcmask 228352
      %v724 = vsel %vm723, %v722, %v711
      %vm725 = vcmask 261120
      %726 = vst.msk [vmem:[%s111] sm:$0xff] %vm725, %v724
      %p727 = scmp.lt.s32.totalorder %s12, 1
      %s728 = scalar_select %p727, %s12, 1
      %s729 = smul.addr %s728, 8
      %s730 = scalar_lea.vmem %s1, %s729
      // Predicated region
      $region25: #{friday_transformer.34} parent=23 // pred_check
        %p731 = pneg %p56
      $region26: #{friday_transformer.34} parent=23 // pred_check_branch
        %733 = sbr.rel (%p731) target = $region28
      $region27: #{friday_transformer.34} parent=23 // pred_region
        _
      $region28: #{friday_transformer.34} parent=23 // pred_fallthru
        _
    $region24: #{friday_transformer.34} parent=5 // pred_fallthru
      _
    %p734 = scmp.le.s32.totalorder 2, %s7
    // Predicated region
    $region29: #{friday_transformer.34} parent=5 // pred_check
      %p735 = pneg %p734
    $region30: #{friday_transformer.34} parent=5 // pred_check_branch
      %737 = sbr.rel (%p735) target = $region32
    $region31: #{friday_transformer.34} parent=5 // pred_region
      %s738 = ssub.s32 %s7, 2
      // Predicated region
      $region33: #{friday_transformer.34} parent=31 // pred_check
        %p739 = pneg %p62
      $region34: #{friday_transformer.34} parent=31 // pred_check_branch
        %741 = sbr.rel (%p739) target = $region36
      $region35: #{friday_transformer.34} parent=31 // pred_region
        %p742 = scmp.lt.s32.totalorder %s13, 1
        %s743 = scalar_select %p742, %s13, 1
        %s744 = smul.addr %s743, 8
        %s745 = scalar_lea.vmem %s1, %s744
      $region36: #{friday_transformer.34} parent=31 // pred_fallthru
        _
    $region32: #{friday_transformer.34} parent=5 // pred_fallthru
      _
  $region6: #{friday_transformer.34} parent=0 // loop_footer
    %s11 = sadd.s32 1, %s7
  $region7: #{friday_transformer.34} parent=0 // loop_footer_branch
    %6 = sbr.rel target = $region3
  $region8: #{friday_transformer.34} parent=0 // loop_exit
    _

// kernel: friday_transformer.39
$region0: #{friday_transformer.39}
  #allocation0 [shape = 'u32[]', space=smem, size = 0x4, offset = 0x4, fixed_abs, tag = 'smem constant byte address 0x4 - core index']
  #allocation1 [shape = 'u32[72,128]{1,0:T(1,128)}', space=vmem, size = 0x9000, scoped, tag = 'internal scratch']
  %s0 = inlined_call_operand.vmem [shape: f32[16,32], index: 0, kind: input, shape index: {}]
  %s1 = inlined_call_operand.vmem [shape: bf16[32,32], index: 1, kind: input, shape index: {}]
  %s2 = inlined_call_operand.vmem [shape: f32[1,32], index: 2, kind: input, shape index: {}]
  %s3 = inlined_call_operand.vmem [shape: f32[16,32], index: 3, kind: input, shape index: {}]
  %s4 = inlined_call_operand.hbm [shape: f32[1,32], index: 4, kind: input, shape index: {}]
  %s5 = inlined_call_operand.hbm [shape: f32[1,32], index: 5, kind: input, shape index: {}]
  %s6 = inlined_call_operand.vmem [shape: f32[16,32], index: 6, kind: output, shape index: {}]
  %s7 = sld [smem:[#allocation0]]
  $region42: #{friday_transformer.39} parent=0
    _
  %s9 = ssub.s32 1, %s7
  %s10 = scalar_select 0, %s9, %s7
  $region1: #{friday_transformer.39} parent=0
    #allocation2 [shape = 'u8[512]{0}', space=vmem, size = 0x400, scoped, tag = 'input window, operand 4, single buffered']
    #allocation3 [shape = 's32[1]{0}', space=sflag, size = 0x4, scoped, tag = 'scoped memory for friday_transformer.39']
    #allocation4 [shape = 'u8[512]{0}', space=vmem, size = 0x400, scoped, tag = 'input window, operand 5, single buffered']
    #allocation5 [shape = 's32[1]{0}', space=sflag, size = 0x4, scoped, tag = 'scoped memory for friday_transformer.39']
    %11 = vsyncpa [#allocation3], 0
    %12 = vsyncpa [#allocation5], 0
    // Predicated region
    $region2: #{friday_transformer.39} parent=1 // pred_check
      _
    $region3: #{friday_transformer.39} parent=1 // pred_check_branch
      %14 = sbr.rel (0) target = $region5
    $region4: #{friday_transformer.39} parent=1 // pred_region
      _
    $region5: #{friday_transformer.39} parent=1 // pred_fallthru
      _
    // Predicated region
    $region6: #{friday_transformer.39} parent=1 // pred_check
      _
    $region7: #{friday_transformer.39} parent=1 // pred_check_branch
      %16 = sbr.rel (0) target = $region9
    $region8: #{friday_transformer.39} parent=1 // pred_region
      _
    $region9: #{friday_transformer.39} parent=1 // pred_fallthru
      _
    // Predicated region
    $region10: #{friday_transformer.39} parent=1 // pred_check
      _
    $region11: #{friday_transformer.39} parent=1 // pred_check_branch
      %18 = sbr.rel (0) target = $region13
    $region12: #{friday_transformer.39} parent=1 // pred_region
      _
    $region13: #{friday_transformer.39} parent=1 // pred_fallthru
      _
    // Predicated region
    $region14: #{friday_transformer.39} parent=1 // pred_check
      _
    $region15: #{friday_transformer.39} parent=1 // pred_check_branch
      %20 = sbr.rel (0) target = $region17
    $region16: #{friday_transformer.39} parent=1 // pred_region
      _
    $region17: #{friday_transformer.39} parent=1 // pred_fallthru
      _
    // Predicated region
    $region18: #{friday_transformer.39} parent=1 // pred_check
      _
    $region19: #{friday_transformer.39} parent=1 // pred_check_branch
      %22 = sbr.rel (0) target = $region21
    $region20: #{friday_transformer.39} parent=1 // pred_region
      %24 = vsyncadd [#allocation3], 0
      %s26 = sshll.u32 %s4, 4
      %s27 = int_to_ptr.hbm [resolvable:$true] %s26
      %s28 = sshll.u32 [#allocation2], 4
      %s29 = int_to_ptr.vmem [resolvable:$true] %s28
      %31 = dma.hbm_to_vmem [thread:$0]  %s27, 16, %s29, [#allocation3]
    $region21: #{friday_transformer.39} parent=1 // pred_fallthru
      _
    // Predicated region
    $region22: #{friday_transformer.39} parent=1 // pred_check
      _
    $region23: #{friday_transformer.39} parent=1 // pred_check_branch
      %33 = sbr.rel (0) target = $region25
    $region24: #{friday_transformer.39} parent=1 // pred_region
      %35 = vsyncadd [#allocation5], 0
      %s37 = sshll.u32 %s5, 4
      %s38 = int_to_ptr.hbm [resolvable:$true] %s37
      %s39 = sshll.u32 [#allocation4], 4
      %s40 = int_to_ptr.vmem [resolvable:$true] %s39
      %42 = dma.hbm_to_vmem [thread:$0]  %s38, 16, %s40, [#allocation5]
    $region25: #{friday_transformer.39} parent=1 // pred_fallthru
      _
    // Predicated region
    $region26: #{friday_transformer.39} parent=1 // pred_check
      _
    $region27: #{friday_transformer.39} parent=1 // pred_check_branch
      %44 = sbr.rel (0) target = $region29
    $region28: #{friday_transformer.39} parent=1 // pred_region
      %46 = dma.done [#allocation3], 16
    $region29: #{friday_transformer.39} parent=1 // pred_fallthru
      _
    // Predicated region
    $region30: #{friday_transformer.39} parent=1 // pred_check
      _
    $region31: #{friday_transformer.39} parent=1 // pred_check_branch
      %48 = sbr.rel (0) target = $region33
    $region32: #{friday_transformer.39} parent=1 // pred_region
      %50 = dma.done [#allocation5], 16
    $region33: #{friday_transformer.39} parent=1 // pred_fallthru
      _
    %v52 = vld [vmem:[%s0] sm:$0xff]
    %v53 = vld [vmem:[%s0 + $0x8] sm:$0xff]
    %v54 = vpack.c.bf16 %v53, %v52
    %v55 = vld [vmem:[%s1] sm:$0xf]
    %v56 = vld [vmem:[%s1 + $0x4] sm:$0xf]
    %v57 = vld [vmem:[%s1 + $0x8] sm:$0xf]
    %v58 = vld [vmem:[%s1 + $0xc] sm:$0xf]
    %v59 = vld [vmem:[%s2] sm:$0x1]
    %v61 = vperm.slane %v59, 0
    %v67 = vunpack.c.l.b16 %v55
    %v68 = vunpack.c.l.b16 %v56
    %v69 = vunpack.c.l.b16 %v57
    %v70 = vunpack.c.l.b16 %v58
    %v71 = vpack.c.b16 %v68, %v67
    %v72 = vpack.c.b16 %v70, %v69
    %vm75 = vcmask 261120
    %v77 = vsel %vm75, %v54, 0
    %79 = vmatpush.bf16.msra.mxu0 0
    %80 = vmatpush.bf16.msra.mxu0 0
    %81 = vmatpush.bf16.msra.mxu0 0
    %82 = vmatpush.bf16.msra.mxu0 0
    %83 = vmatpush.bf16.msra.mxu0 0
    %84 = vmatpush.bf16.msra.mxu0 0
    %85 = vmatpush.bf16.msra.mxu0 %v72
    %86 = vmatpush.bf16.msra.mxu0 %v71
    %87 = vmatmul.bf16.gmra.mxu0 %v77
    %v88 = vpop.f32.mrf.mxu0
    %v89 = vadd.f32 %v61, %v88
    %v90 = vpop.f32.mrf.mxu0
    %v91 = vadd.f32 %v61, %v90
    %92 = vdwg.mxu0
    %v93 = vld [vmem:[%s3] sm:$0xff]
    %v94 = vld [vmem:[%s3 + $0x8] sm:$0xff]
    %v95 = vadd.f32 %v93, %v89
    %v96 = vadd.f32 %v94, %v91
    %v97 = vsel %vm75, %v95, 0.0
    %98 = vadd.xlane.f32.xlu0 %v97
    %v99 = vpop.xlane.xlu0 %98
    %v100 = vsel %vm75, %v96, 0.0
    %101 = vadd.xlane.f32.xlu0 %v100
    %v102 = vpop.xlane.xlu0 %101
    %v103 = vrcp.pop 32.0
    %v104 = vmul.f32 32.0, %v103
    %v105 = vsub.f32 1.0, %v104
    %v106 = vmul.f32 %v103, %v105
    %v107 = vadd.f32 %v103, %v106
    %vm108 = vweird.f32 %v103
    %v109 = vsel %vm108, %v103, %v107
    %v110 = vmul.f32 %v99, %v109
    %v111 = vmul.f32 %v102, %v109
    %v112 = vsub.f32 %v95, %v110
    %v113 = vsub.f32 %v96, %v111
    %v114 = vmul.f32 %v112, %v112
    %v115 = vmul.f32 %v113, %v113
    %v116 = vsel %vm75, %v114, 0.0
    %117 = vadd.xlane.f32.xlu0 %v116
    %v118 = vpop.xlane.xlu0 %117
    %v119 = vsel %vm75, %v115, 0.0
    %120 = vadd.xlane.f32.xlu0 %v119
    %v121 = vpop.xlane.xlu0 %120
    %v122 = vmul.f32 %v118, %v109
    %v123 = vmul.f32 %v121, %v109
    %v124 = vadd.f32 %v122, 1e-05
    %v125 = vadd.f32 %v123, 1e-05
    %v126 = vrsqrt.pop %v124
    %v127 = vmul.f32 %v126, %v124
    %v128 = vmul.f32 %v127, %v126
    %v129 = vmul.f32 0.5, %v128
    %v130 = vsub.f32 1.5, %v129
    %v131 = vmul.f32 %v126, %v130
    %vm132 = vweird.f32 %v124
    %vm133 = vweird.f32 %v126
    %vm134 = vmor %vm132, %vm133
    %v135 = vsel %vm134, %v126, %v131
    %v136 = vrsqrt.pop %v125
    %v137 = vmul.f32 %v136, %v125
    %v138 = vmul.f32 %v137, %v136
    %v139 = vmul.f32 0.5, %v138
    %v140 = vsub.f32 1.5, %v139
    %v141 = vmul.f32 %v136, %v140
    %vm142 = vweird.f32 %v125
    %vm143 = vweird.f32 %v136
    %vm144 = vmor %vm142, %vm143
    %v145 = vsel %vm144, %v136, %v141
    %v146 = vmul.f32 %v112, %v135
    %v147 = vmul.f32 %v113, %v145
    %v148 = vld [vmem:[#allocation2] sm:$0x1]
    %v150 = vperm.slane %v148, 0
    %v152 = vmul.f32 %v146, %v150
    %v153 = vmul.f32 %v147, %v150
    %v154 = vld [vmem:[#allocation4] sm:$0x1]
    %v156 = vperm.slane %v154, 0
    %v158 = vadd.f32 %v152, %v156
    %v159 = vadd.f32 %v153, %v156
    %160 = vst.msk [vmem:[%s6] sm:$0xff] %vm75, %v158
    %161 = vst.msk [vmem:[%s6 + $0x8] sm:$0xff] %vm75, %v159
    // Predicated region
    $region34: #{friday_transformer.39} parent=1 // pred_check
      _
    $region35: #{friday_transformer.39} parent=1 // pred_check_branch
      %163 = sbr.rel (0) target = $region37
    $region36: #{friday_transformer.39} parent=1 // pred_region
      _
    $region37: #{friday_transformer.39} parent=1 // pred_fallthru
      _
    // Predicated region
    $region38: #{friday_transformer.39} parent=1 // pred_check
      _
    $region39: #{friday_transformer.39} parent=1 // pred_check_branch
      %165 = sbr.rel (0) target = $region41
    $region40: #{friday_transformer.39} parent=1 // pred_region
      _
    $region41: #{friday_transformer.39} parent=1 // pred_fallthru
      _
    %166 = vsyncpa [#allocation3], 1
    %167 = vsyncpa [#allocation5], 1

// kernel: friday_transformer.38
$region0: #{friday_transformer.38}
  #allocation0 [shape = 'u32[]', space=smem, size = 0x4, offset = 0x4, fixed_abs, tag = 'smem constant byte address 0x4 - core index']
  #allocation1 [shape = 'u32[72,128]{1,0:T(1,128)}', space=vmem, size = 0x9000, scoped, tag = 'internal scratch']
  %s0 = inlined_call_operand.vmem [shape: f32[2,8,32], index: 0, kind: input, shape index: {}]
  %s1 = inlined_call_operand.vmem [shape: f32[2,8,64], index: 1, kind: input, shape index: {}]
  %s2 = inlined_call_operand.vmem [shape: f32[2,1,8], index: 2, kind: input, shape index: {}]
  %s3 = inlined_call_operand.vmem [shape: f32[2,8,32], index: 3, kind: output, shape index: {}]
  %s4 = sld [smem:[#allocation0]]
  $region45: #{friday_transformer.38} parent=0
    _
  %s6 = ssub.s32 1, %s4
  %s7 = scalar_select 0, %s6, %s4
  loop: start=0, step=1, limit=4
  $region2: #{friday_transformer.38} parent=0 // loop_pre_header
    _
  $region3: #{friday_transformer.38} parent=0 // loop_header
    %s9 = sphi 0, %s13
    %p10 = scmp.ge.s32.totalorder %s9, 4
    %s19 = sphi 0, %s21
    %s22 = sphi 0, %s19
    %s23 = sphi 0, %s22
    %s39 = sphi 0, %s23
    %s45 = sphi 0, %s47
    %s48 = sphi 0, %s45
    %s49 = sphi 0, %s48
    %s65 = sphi 0, %s49
    %s71 = sphi 0, %s73
    %s74 = sphi 0, %s71
    %s75 = sphi 0, %s74
    %s91 = sphi 0, %s75
    %s97 = sphi 0, %s99
    %s100 = sphi 0, %s97
    %s101 = sphi 0, %s100
    %s117 = sphi 0, %s101
  $region4: #{friday_transformer.38} parent=0 // loop_header_branch
    %12 = sbr.rel (%p10) target = $region8
  $region5: #{friday_transformer.38} parent=0 // loop_body
    %s14 = ssub.s32 %s9, 1
    %s15 = ssub.s32 %s9, 2
    %s16 = sadd.s32 %s9, 1
    %s17 = ssub.s32 %s9, %s16
    %p18 = scmp.eq.s32.totalorder %s17, 0
    %s20 = sadd.s32 %s19, 1
    %s21 = scalar_select %p18, %s19, %s20
    %p24 = pneg %p18
    %p25 = scmp.eq.s32.totalorder %s9, 1
    %p26 = por %p24, %p25
    %p27 = scmp.ne.s32.totalorder %s19, %s22
    %p28 = scmp.eq.s32.totalorder %s9, 0
    %p29 = por %p27, %p28
    %p30 = scmp.ne.s32.totalorder %s19, %s22
    %p31 = scmp.eq.s32.totalorder %s14, 1
    %p32 = por %p30, %p31
    %p33 = scmp.ne.s32.totalorder %s22, %s23
    %p34 = scmp.eq.s32.totalorder %s14, 0
    %p35 = por %p33, %p34
    %p36 = scmp.ne.s32.totalorder %s22, %s23
    %p37 = scmp.eq.s32.totalorder %s15, 1
    %p38 = por %p36, %p37
    %p40 = scmp.ne.s32.totalorder %s23, %s39
    %p41 = scmp.eq.s32.totalorder %s15, 0
    %p42 = por %p40, %p41
    %s43 = ssub.s32 %s9, %s16
    %p44 = scmp.eq.s32.totalorder %s43, 0
    %s46 = sadd.s32 %s45, 1
    %s47 = scalar_select %p44, %s45, %s46
    %p50 = pneg %p44
    %p51 = scmp.eq.s32.totalorder %s9, 1
    %p52 = por %p50, %p51
    %p53 = scmp.ne.s32.totalorder %s45, %s48
    %p54 = scmp.eq.s32.totalorder %s9, 0
    %p55 = por %p53, %p54
    %p56 = scmp.ne.s32.totalorder %s45, %s48
    %p57 = scmp.eq.s32.totalorder %s14, 1
    %p58 = por %p56, %p57
    %p59 = scmp.ne.s32.totalorder %s48, %s49
    %p60 = scmp.eq.s32.totalorder %s14, 0
    %p61 = por %p59, %p60
    %p62 = scmp.ne.s32.totalorder %s48, %s49
    %p63 = scmp.eq.s32.totalorder %s15, 1
    %p64 = por %p62, %p63
    %p66 = scmp.ne.s32.totalorder %s49, %s65
    %p67 = scmp.eq.s32.totalorder %s15, 0
    %p68 = por %p66, %p67
    %s69 = ssub.s32 %s9, %s16
    %p70 = scmp.eq.s32.totalorder %s69, 0
    %s72 = sadd.s32 %s71, 1
    %s73 = scalar_select %p70, %s71, %s72
    %p76 = pneg %p70
    %p77 = scmp.eq.s32.totalorder %s9, 1
    %p78 = por %p76, %p77
    %p79 = scmp.ne.s32.totalorder %s71, %s74
    %p80 = scmp.eq.s32.totalorder %s9, 0
    %p81 = por %p79, %p80
    %p82 = scmp.ne.s32.totalorder %s71, %s74
    %p83 = scmp.eq.s32.totalorder %s14, 1
    %p84 = por %p82, %p83
    %p85 = scmp.ne.s32.totalorder %s74, %s75
    %p86 = scmp.eq.s32.totalorder %s14, 0
    %p87 = por %p85, %p86
    %p88 = scmp.ne.s32.totalorder %s74, %s75
    %p89 = scmp.eq.s32.totalorder %s15, 1
    %p90 = por %p88, %p89
    %p92 = scmp.ne.s32.totalorder %s75, %s91
    %p93 = scmp.eq.s32.totalorder %s15, 0
    %p94 = por %p92, %p93
    %s95 = ssub.s32 %s9, %s16
    %p96 = scmp.eq.s32.totalorder %s95, 0
    %s98 = sadd.s32 %s97, 1
    %s99 = scalar_select %p96, %s97, %s98
    %p102 = pneg %p96
    %p103 = scmp.eq.s32.totalorder %s9, 1
    %p104 = por %p102, %p103
    %p105 = scmp.ne.s32.totalorder %s97, %s100
    %p106 = scmp.eq.s32.totalorder %s9, 0
    %p107 = por %p105, %p106
    %p108 = scmp.ne.s32.totalorder %s97, %s100
    %p109 = scmp.eq.s32.totalorder %s14, 1
    %p110 = por %p108, %p109
    %p111 = scmp.ne.s32.totalorder %s100, %s101
    %p112 = scmp.eq.s32.totalorder %s14, 0
    %p113 = por %p111, %p112
    %p114 = scmp.ne.s32.totalorder %s100, %s101
    %p115 = scmp.eq.s32.totalorder %s15, 1
    %p116 = por %p114, %p115
    %p118 = scmp.ne.s32.totalorder %s101, %s117
    %p119 = scmp.eq.s32.totalorder %s15, 0
    %p120 = por %p118, %p119
    %p121 = scmp.le.s32.totalorder 1, %s9
    %p122 = scmp.lt.s32.totalorder %s9, 3
    %p123 = pnand %p121, %p122
    %p124 = pneg %p123
    // Predicated region
    $region9: #{friday_transformer.38} parent=5 // pred_check
      _
    $region10: #{friday_transformer.38} parent=5 // pred_check_branch
      %126 = sbr.rel (%p123) target = $region12
    $region11: #{friday_transformer.38} parent=5 // pred_region
      %s127 = ssub.s32 %s9, 1
    $region12: #{friday_transformer.38} parent=5 // pred_fallthru
      _
    %p128 = scmp.lt.s32.totalorder %s9, 2
    // Predicated region
    $region13: #{friday_transformer.38} parent=5 // pred_check
      %p129 = pneg %p128
    $region14: #{friday_transformer.38} parent=5 // pred_check_branch
      %131 = sbr.rel (%p129) target = $region16
    $region15: #{friday_transformer.38} parent=5 // pred_region
      // Predicated region
      $region17: #{friday_transformer.38} parent=15 // pred_check
        %p132 = pneg %p29
      $region18: #{friday_transformer.38} parent=15 // pred_check_branch
        %134 = sbr.rel (%p132) target = $region20
      $region19: #{friday_transformer.38} parent=15 // pred_region
        %p135 = scmp.lt.s32.totalorder %s9, 1
        %s136 = scalar_select %p135, %s9, 1
        %s137 = smul.addr %s136, 8
        %s138 = scalar_lea.vmem %s0, %s137
      $region20: #{friday_transformer.38} parent=15 // pred_fallthru
        _
      // Predicated region
      $region21: #{friday_transformer.38} parent=15 // pred_check
        %p139 = pneg %p55
      $region22: #{friday_transformer.38} parent=15 // pred_check_branch
        %141 = sbr.rel (%p139) target = $region24
      $region23: #{friday_transformer.38} parent=15 // pred_region
        %p142 = scmp.lt.s32.totalorder %s9, 1
        %s143 = scalar_select %p142, %s9, 1
        %s144 = smul.addr %s143, 8
        %s145 = scalar_lea.vmem %s1, %s144
      $region24: #{friday_transformer.38} parent=15 // pred_fallthru
        _
      // Predicated region
      $region25: #{friday_transformer.38} parent=15 // pred_check
        %p146 = pneg %p81
      $region26: #{friday_transformer.38} parent=15 // pred_check_branch
        %148 = sbr.rel (%p146) target = $region28
      $region27: #{friday_transformer.38} parent=15 // pred_region
        %p149 = scmp.lt.s32.totalorder %s9, 1
        %s150 = scalar_select %p149, %s9, 1
        %s151 = scalar_lea.vmem %s2, %s150
      $region28: #{friday_transformer.38} parent=15 // pred_fallthru
        _
    $region16: #{friday_transformer.38} parent=5 // pred_fallthru
      _
    %p152 = scmp.le.s32.totalorder 1, %s9
    %p153 = scmp.lt.s32.totalorder %s9, 3
    %p154 = pnand %p152, %p153
    %p155 = pneg %p154
    // Predicated region
    $region29: #{friday_transformer.38} parent=5 // pred_check
      _
    $region30: #{friday_transformer.38} parent=5 // pred_check_branch
      %157 = sbr.rel (%p154) target = $region32
    $region31: #{friday_transformer.38} parent=5 // pred_region
      %s158 = ssub.s32 %s9, 1
      %p159 = scmp.lt.s32.totalorder %s14, 1
      %s160 = scalar_select %p159, %s14, 1
      %s161 = smul.addr %s160, 8
      %s162 = scalar_lea.vmem %s0, %s161
      %p163 = pneg %p35
      %p164 = pneg %p32
      %p165 = scmp.lt.s32.totalorder %s14, 1
      %s166 = scalar_select %p165, %s14, 1
      %s167 = smul.addr %s166, 8
      %s168 = scalar_lea.vmem %s1, %s167
      %p169 = pneg %p61
      %p170 = pneg %p58
      %p171 = scmp.lt.s32.totalorder %s14, 1
      %s172 = scalar_select %p171, %s14, 1
      %s173 = scalar_lea.vmem %s2, %s172
      %p174 = pneg %p87
      %p175 = pneg %p84
      %p176 = pneg %p113
      %p177 = pneg %p110
      %p178 = scmp.lt.s32.totalorder %s14, 1
      %s179 = scalar_select %p178, %s14, 1
      %s180 = smul.addr %s179, 8
      %s181 = scalar_lea.vmem %s3, %s180
      %p182 = scmp.lt.s32.totalorder %s14, 1
      %s183 = scalar_select %p182, %s14, 1
      %s184 = smul.addr %s183, 8
      %s185 = scalar_lea.vmem %s0, %s184
      %p186 = scmp.lt.s32.totalorder %s14, 1
      %s187 = scalar_select %p186, %s14, 1
      %s188 = smul.addr %s187, 8
      %s189 = scalar_lea.vmem %s1, %s188
      %p190 = scmp.lt.s32.totalorder %s14, 1
      %s191 = scalar_select %p190, %s14, 1
      %s192 = scalar_lea.vmem %s2, %s191
      %p193 = scmp.lt.s32.totalorder %s14, 1
      %s194 = scalar_select %p193, %s14, 1
      %s195 = smul.addr %s194, 8
      %s196 = scalar_lea.vmem %s3, %s195
      %v198 = vld [vmem:[%s185] sm:$0xff]
      %v199 = vld [vmem:[%s189] sm:$0xff]
      %v200 = vld [vmem:[%s192] sm:$0x1]
      %v201 = vmul.f32 %v198, 0.5
      %v202 = vpack.c.bf16 %v201, %v201
      %v203 = vpack.c.bf16 %v199, %v199
      %vm204 = vcmask 31744
      %v206 = vsel %vm204, %v202, 0
      %v209 = vsel %vm204, %v203, 0
      %211 = vmatpush.bf16.xpose.msra.mxu0 0
      %212 = vmatpush.bf16.xpose.msra.mxu0 0
      %213 = vmatpush.bf16.xpose.msra.mxu0 0
      %214 = vmatpush.bf16.xpose.msra.mxu0 0
      %215 = vmatpush.bf16.xpose.msra.mxu0 0
      %216 = vmatpush.bf16.xpose.msra.mxu0 0
      %217 = vmatpush.bf16.xpose.msra.mxu0 0
      %218 = vmatpush.bf16.xpose.msra.mxu0 %v209
      %219 = vmatmul.bf16.gmra.mxu0 %v206
      %v220 = vpop.f32.mrf.mxu0
      %v221 = vadd.f32 0.0, %v220
      %v222 = vpop.f32.mrf.mxu0
      %223 = vdwg.mxu0
      %vm224 = vcmp.eq.f32.partialorder %v200, 0.0
      %v225 = vsel %vm224, 1, 0
      %v226 = vperm.slane %v225, 0
      %vm227 = vcmp.eq.s32.totalorder %v226, 1
      %v228 = vsel %vm227, -1e+09, %v221
      %vm229 = vcmask 64512
      %v230 = vsel %vm229, %v228, -inf
      %231 = vmax.xlane.f32.xlu0 %v230
      %v232 = vpop.xlane.xlu0 %231
      %v233 = vsub.f32 %v228, %v232
      %v234 = vmul.f32 %v233, 1.442695
      %v235 = vpow.pop %v234
      %v236 = vsel %vm229, %v235, 0.0
      %237 = vadd.xlane.f32.xlu0 %v236
      %v238 = vpop.xlane.xlu0 %237
      %v239 = vrcp.pop %v238
      %v240 = vmul.f32 %v238, %v239
      %v241 = vsub.f32 1.0, %v240
      %v242 = vmul.f32 %v239, %v241
      %v243 = vadd.f32 %v239, %v242
      %vm244 = vweird.f32 %v238
      %vm245 = vweird.f32 %v239
      %vm246 = vmor %vm244, %vm245
      %v247 = vsel %vm246, %v239, %v243
      %v248 = vand.u32 2147483647, %v238
      %vm249 = vcmp.eq.f32.partialorder %v248, 8.507059e+37
      %v250 = vand.u32 %v238, 2147483648
      %v251 = vor.u32 1.1754944e-38, %v250
      %v252 = vsel %vm249, %v251, %v247
      %v253 = vmul.f32 %v235, %v252
      %v254 = vpack.c.bf16 %v253, %v253
      %256 = vrot.lane.b32.xlu0 %v203, 96
      %v257 = vpop.permute.xlu0 %256
      %v259 = vsel %vm229, %v254, 0
      %vm261 = vcmask 1043456
      %v263 = vsel %vm261, %v257, 0
      %265 = vmatpush.bf16.msra.mxu0 0
      %266 = vmatpush.bf16.msra.mxu0 0
      %267 = vmatpush.bf16.msra.mxu0 0
      %268 = vmatpush.bf16.msra.mxu0 0
      %269 = vmatpush.bf16.msra.mxu0 0
      %270 = vmatpush.bf16.msra.mxu0 0
      %271 = vmatpush.bf16.msra.mxu0 0
      %272 = vmatpush.bf16.msra.mxu0 %v263
      %273 = vmatmul.bf16.gmra.mxu0 %v259
      %v274 = vpop.f32.mrf.mxu0
      %v275 = vadd.f32 0.0, %v274
      %v276 = vpop.f32.mrf.mxu0
      %277 = vdwg.mxu0
      %279 = vrot.lane.b32.xlu0 %v202, 124
      %v280 = vpop.permute.xlu0 %279
      %281 = vrot.lane.b32.xlu0 %v203, 124
      %v282 = vpop.permute.xlu0 %281
      %v284 = vsel %vm204, %v280, 0
      %v287 = vsel %vm204, %v282, 0
      %289 = vmatpush.bf16.xpose.msra.mxu0 0
      %290 = vmatpush.bf16.xpose.msra.mxu0 0
      %291 = vmatpush.bf16.xpose.msra.mxu0 0
      %292 = vmatpush.bf16.xpose.msra.mxu0 0
      %293 = vmatpush.bf16.xpose.msra.mxu0 0
      %294 = vmatpush.bf16.xpose.msra.mxu0 0
      %295 = vmatpush.bf16.xpose.msra.mxu0 0
      %296 = vmatpush.bf16.xpose.msra.mxu0 %v287
      %297 = vmatmul.bf16.gmra.mxu0 %v284
      %v298 = vpop.f32.mrf.mxu0
      %v299 = vadd.f32 0.0, %v298
      %v300 = vpop.f32.mrf.mxu0
      %301 = vdwg.mxu0
      %v302 = vsel %vm227, -1e+09, %v299
      %v303 = vsel %vm229, %v302, -inf
      %304 = vmax.xlane.f32.xlu0 %v303
      %v305 = vpop.xlane.xlu0 %304
      %v306 = vsub.f32 %v302, %v305
      %v307 = vmul.f32 %v306, 1.442695
      %v308 = vpow.pop %v307
      %v309 = vsel %vm229, %v308, 0.0
      %310 = vadd.xlane.f32.xlu0 %v309
      %v311 = vpop.xlane.xlu0 %310
      %v312 = vrcp.pop %v311
      %v313 = vmul.f32 %v311, %v312
      %v314 = vsub.f32 1.0, %v313
      %v315 = vmul.f32 %v312, %v314
      %v316 = vadd.f32 %v312, %v315
      %vm317 = vweird.f32 %v311
      %vm318 = vweird.f32 %v312
      %vm319 = vmor %vm317, %vm318
      %v320 = vsel %vm319, %v312, %v316
      %v321 = vand.u32 2147483647, %v311
      %vm322 = vcmp.eq.f32.partialorder %v321, 8.507059e+37
      %v323 = vand.u32 %v311, 2147483648
      %v324 = vor.u32 1.1754944e-38, %v323
      %v325 = vsel %vm322, %v324, %v320
      %v326 = vmul.f32 %v308, %v325
      %v327 = vpack.c.bf16 %v326, %v326
      %328 = vrot.lane.b32.xlu0 %v203, 92
      %v329 = vpop.permute.xlu0 %328
      %v331 = vsel %vm229, %v327, 0
      %v334 = vsel %vm261, %v329, 0
      %336 = vmatpush.bf16.msra.mxu0 0
      %337 = vmatpush.bf16.msra.mxu0 0
      %338 = vmatpush.bf16.msra.mxu0 0
      %339 = vmatpush.bf16.msra.mxu0 0
      %340 = vmatpush.bf16.msra.mxu0 0
      %341 = vmatpush.bf16.msra.mxu0 0
      %342 = vmatpush.bf16.msra.mxu0 0
      %343 = vmatpush.bf16.msra.mxu0 %v334
      %344 = vmatmul.bf16.gmra.mxu0 %v331
      %v345 = vpop.f32.mrf.mxu0
      %v346 = vadd.f32 0.0, %v345
      %v347 = vpop.f32.mrf.mxu0
      %348 = vdwg.mxu0
      %349 = vrot.lane.b32.xlu0 %v202, 120
      %v350 = vpop.permute.xlu0 %349
      %351 = vrot.lane.b32.xlu0 %v203, 120
      %v352 = vpop.permute.xlu0 %351
      %v354 = vsel %vm204, %v350, 0
      %v357 = vsel %vm204, %v352, 0
      %359 = vmatpush.bf16.xpose.msra.mxu0 0
      %360 = vmatpush.bf16.xpose.msra.mxu0 0
      %361 = vmatpush.bf16.xpose.msra.mxu0 0
      %362 = vmatpush.bf16.xpose.msra.mxu0 0
      %363 = vmatpush.bf16.xpose.msra.mxu0 0
      %364 = vmatpush.bf16.xpose.msra.mxu0 0
      %365 = vmatpush.bf16.xpose.msra.mxu0 0
      %366 = vmatpush.bf16.xpose.msra.mxu0 %v357
      %367 = vmatmul.bf16.gmra.mxu0 %v354
      %v368 = vpop.f32.mrf.mxu0
      %v369 = vadd.f32 0.0, %v368
      %v370 = vpop.f32.mrf.mxu0
      %371 = vdwg.mxu0
      %v372 = vsel %vm227, -1e+09, %v369
      %v373 = vsel %vm229, %v372, -inf
      %374 = vmax.xlane.f32.xlu0 %v373
      %v375 = vpop.xlane.xlu0 %374
      %v376 = vsub.f32 %v372, %v375
      %v377 = vmul.f32 %v376, 1.442695
      %v378 = vpow.pop %v377
      %v379 = vsel %vm229, %v378, 0.0
      %380 = vadd.xlane.f32.xlu0 %v379
      %v381 = vpop.xlane.xlu0 %380
      %v382 = vrcp.pop %v381
      %v383 = vmul.f32 %v381, %v382
      %v384 = vsub.f32 1.0, %v383
      %v385 = vmul.f32 %v382, %v384
      %v386 = vadd.f32 %v382, %v385
      %vm387 = vweird.f32 %v381
      %vm388 = vweird.f32 %v382
      %vm389 = vmor %vm387, %vm388
      %v390 = vsel %vm389, %v382, %v386
      %v391 = vand.u32 2147483647, %v381
      %vm392 = vcmp.eq.f32.partialorder %v391, 8.507059e+37
      %v393 = vand.u32 %v381, 2147483648
      %v394 = vor.u32 1.1754944e-38, %v393
      %v395 = vsel %vm392, %v394, %v390
      %v396 = vmul.f32 %v378, %v395
      %v397 = vpack.c.bf16 %v396, %v396
      %398 = vrot.lane.b32.xlu0 %v203, 88
      %v399 = vpop.permute.xlu0 %398
      %v401 = vsel %vm229, %v397, 0
      %v404 = vsel %vm261, %v399, 0
      %406 = vmatpush.bf16.msra.mxu0 0
      %407 = vmatpush.bf16.msra.mxu0 0
      %408 = vmatpush.bf16.msra.mxu0 0
      %409 = vmatpush.bf16.msra.mxu0 0
      %410 = vmatpush.bf16.msra.mxu0 0
      %411 = vmatpush.bf16.msra.mxu0 0
      %412 = vmatpush.bf16.msra.mxu0 0
      %413 = vmatpush.bf16.msra.mxu0 %v404
      %414 = vmatmul.bf16.gmra.mxu0 %v401
      %v415 = vpop.f32.mrf.mxu0
      %v416 = vadd.f32 0.0, %v415
      %v417 = vpop.f32.mrf.mxu0
      %418 = vdwg.mxu0
      %419 = vrot.lane.b32.xlu0 %v202, 116
      %v420 = vpop.permute.xlu0 %419
      %421 = vrot.lane.b32.xlu0 %v203, 116
      %v422 = vpop.permute.xlu0 %421
      %v424 = vsel %vm204, %v420, 0
      %v427 = vsel %vm204, %v422, 0
      %429 = vmatpush.bf16.xpose.msra.mxu0 0
      %430 = vmatpush.bf16.xpose.msra.mxu0 0
      %431 = vmatpush.bf16.xpose.msra.mxu0 0
      %432 = vmatpush.bf16.xpose.msra.mxu0 0
      %433 = vmatpush.bf16.xpose.msra.mxu0 0
      %434 = vmatpush.bf16.xpose.msra.mxu0 0
      %435 = vmatpush.bf16.xpose.msra.mxu0 0
      %436 = vmatpush.bf16.xpose.msra.mxu0 %v427
      %437 = vmatmul.bf16.gmra.mxu0 %v424
      %v438 = vpop.f32.mrf.mxu0
      %v439 = vadd.f32 0.0, %v438
      %v440 = vpop.f32.mrf.mxu0
      %441 = vdwg.mxu0
      %v442 = vsel %vm227, -1e+09, %v439
      %v443 = vsel %vm229, %v442, -inf
      %444 = vmax.xlane.f32.xlu0 %v443
      %v445 = vpop.xlane.xlu0 %444
      %v446 = vsub.f32 %v442, %v445
      %v447 = vmul.f32 %v446, 1.442695
      %v448 = vpow.pop %v447
      %v449 = vsel %vm229, %v448, 0.0
      %450 = vadd.xlane.f32.xlu0 %v449
      %v451 = vpop.xlane.xlu0 %450
      %v452 = vrcp.pop %v451
      %v453 = vmul.f32 %v451, %v452
      %v454 = vsub.f32 1.0, %v453
      %v455 = vmul.f32 %v452, %v454
      %v456 = vadd.f32 %v452, %v455
      %vm457 = vweird.f32 %v451
      %vm458 = vweird.f32 %v452
      %vm459 = vmor %vm457, %vm458
      %v460 = vsel %vm459, %v452, %v456
      %v461 = vand.u32 2147483647, %v451
      %vm462 = vcmp.eq.f32.partialorder %v461, 8.507059e+37
      %v463 = vand.u32 %v451, 2147483648
      %v464 = vor.u32 1.1754944e-38, %v463
      %v465 = vsel %vm462, %v464, %v460
      %v466 = vmul.f32 %v448, %v465
      %v467 = vpack.c.bf16 %v466, %v466
      %468 = vrot.lane.b32.xlu0 %v203, 84
      %v469 = vpop.permute.xlu0 %468
      %v471 = vsel %vm229, %v467, 0
      %v474 = vsel %vm261, %v469, 0
      %476 = vmatpush.bf16.msra.mxu0 0
      %477 = vmatpush.bf16.msra.mxu0 0
      %478 = vmatpush.bf16.msra.mxu0 0
      %479 = vmatpush.bf16.msra.mxu0 0
      %480 = vmatpush.bf16.msra.mxu0 0
      %481 = vmatpush.bf16.msra.mxu0 0
      %482 = vmatpush.bf16.msra.mxu0 0
      %483 = vmatpush.bf16.msra.mxu0 %v474
      %484 = vmatmul.bf16.gmra.mxu0 %v471
      %v485 = vpop.f32.mrf.mxu0
      %v486 = vadd.f32 0.0, %v485
      %v487 = vpop.f32.mrf.mxu0
      %488 = vdwg.mxu0
      %489 = vrot.lane.b32.xlu0 %v202, 112
      %v490 = vpop.permute.xlu0 %489
      %491 = vrot.lane.b32.xlu0 %v203, 112
      %v492 = vpop.permute.xlu0 %491
      %v494 = vsel %vm204, %v490, 0
      %v497 = vsel %vm204, %v492, 0
      %499 = vmatpush.bf16.xpose.msra.mxu0 0
      %500 = vmatpush.bf16.xpose.msra.mxu0 0
      %501 = vmatpush.bf16.xpose.msra.mxu0 0
      %502 = vmatpush.bf16.xpose.msra.mxu0 0
      %503 = vmatpush.bf16.xpose.msra.mxu0 0
      %504 = vmatpush.bf16.xpose.msra.mxu0 0
      %505 = vmatpush.bf16.xpose.msra.mxu0 0
      %506 = vmatpush.bf16.xpose.msra.mxu0 %v497
      %507 = vmatmul.bf16.gmra.mxu0 %v494
      %v508 = vpop.f32.mrf.mxu0
      %v509 = vadd.f32 0.0, %v508
      %v510 = vpop.f32.mrf.mxu0
      %511 = vdwg.mxu0
      %v512 = vsel %vm227, -1e+09, %v509
      %v513 = vsel %vm229, %v512, -inf
      %514 = vmax.xlane.f32.xlu0 %v513
      %v515 = vpop.xlane.xlu0 %514
      %v516 = vsub.f32 %v512, %v515
      %v517 = vmul.f32 %v516, 1.442695
      %v518 = vpow.pop %v517
      %v519 = vsel %vm229, %v518, 0.0
      %520 = vadd.xlane.f32.xlu0 %v519
      %v521 = vpop.xlane.xlu0 %520
      %v522 = vrcp.pop %v521
      %v523 = vmul.f32 %v521, %v522
      %v524 = vsub.f32 1.0, %v523
      %v525 = vmul.f32 %v522, %v524
      %v526 = vadd.f32 %v522, %v525
      %vm527 = vweird.f32 %v521
      %vm528 = vweird.f32 %v522
      %vm529 = vmor %vm527, %vm528
      %v530 = vsel %vm529, %v522, %v526
      %v531 = vand.u32 2147483647, %v521
      %vm532 = vcmp.eq.f32.partialorder %v531, 8.507059e+37
      %v533 = vand.u32 %v521, 2147483648
      %v534 = vor.u32 1.1754944e-38, %v533
      %v535 = vsel %vm532, %v534, %v530
      %v536 = vmul.f32 %v518, %v535
      %v537 = vpack.c.bf16 %v536, %v536
      %538 = vrot.lane.b32.xlu0 %v203, 80
      %v539 = vpop.permute.xlu0 %538
      %v541 = vsel %vm229, %v537, 0
      %v544 = vsel %vm261, %v539, 0
      %546 = vmatpush.bf16.msra.mxu0 0
      %547 = vmatpush.bf16.msra.mxu0 0
      %548 = vmatpush.bf16.msra.mxu0 0
      %549 = vmatpush.bf16.msra.mxu0 0
      %550 = vmatpush.bf16.msra.mxu0 0
      %551 = vmatpush.bf16.msra.mxu0 0
      %552 = vmatpush.bf16.msra.mxu0 0
      %553 = vmatpush.bf16.msra.mxu0 %v544
      %554 = vmatmul.bf16.gmra.mxu0 %v541
      %v555 = vpop.f32.mrf.mxu0
      %v556 = vadd.f32 0.0, %v555
      %v557 = vpop.f32.mrf.mxu0
      %558 = vdwg.mxu0
      %559 = vrot.lane.b32.xlu0 %v202, 108
      %v560 = vpop.permute.xlu0 %559
      %561 = vrot.lane.b32.xlu0 %v203, 108
      %v562 = vpop.permute.xlu0 %561
      %v564 = vsel %vm204, %v560, 0
      %v567 = vsel %vm204, %v562, 0
      %569 = vmatpush.bf16.xpose.msra.mxu0 0
      %570 = vmatpush.bf16.xpose.msra.mxu0 0
      %571 = vmatpush.bf16.xpose.msra.mxu0 0
      %572 = vmatpush.bf16.xpose.msra.mxu0 0
      %573 = vmatpush.bf16.xpose.msra.mxu0 0
      %574 = vmatpush.bf16.xpose.msra.mxu0 0
      %575 = vmatpush.bf16.xpose.msra.mxu0 0
      %576 = vmatpush.bf16.xpose.msra.mxu0 %v567
      %577 = vmatmul.bf16.gmra.mxu0 %v564
      %v578 = vpop.f32.mrf.mxu0
      %v579 = vadd.f32 0.0, %v578
      %v580 = vpop.f32.mrf.mxu0
      %581 = vdwg.mxu0
      %v582 = vsel %vm227, -1e+09, %v579
      %v583 = vsel %vm229, %v582, -inf
      %584 = vmax.xlane.f32.xlu0 %v583
      %v585 = vpop.xlane.xlu0 %584
      %v586 = vsub.f32 %v582, %v585
      %v587 = vmul.f32 %v586, 1.442695
      %v588 = vpow.pop %v587
      %v589 = vsel %vm229, %v588, 0.0
      %590 = vadd.xlane.f32.xlu0 %v589
      %v591 = vpop.xlane.xlu0 %590
      %v592 = vrcp.pop %v591
      %v593 = vmul.f32 %v591, %v592
      %v594 = vsub.f32 1.0, %v593
      %v595 = vmul.f32 %v592, %v594
      %v596 = vadd.f32 %v592, %v595
      %vm597 = vweird.f32 %v591
      %vm598 = vweird.f32 %v592
      %vm599 = vmor %vm597, %vm598
      %v600 = vsel %vm599, %v592, %v596
      %v601 = vand.u32 2147483647, %v591
      %vm602 = vcmp.eq.f32.partialorder %v601, 8.507059e+37
      %v603 = vand.u32 %v591, 2147483648
      %v604 = vor.u32 1.1754944e-38, %v603
      %v605 = vsel %vm602, %v604, %v600
      %v606 = vmul.f32 %v588, %v605
      %v607 = vpack.c.bf16 %v606, %v606
      %608 = vrot.lane.b32.xlu0 %v203, 76
      %v609 = vpop.permute.xlu0 %608
      %v611 = vsel %vm229, %v607, 0
      %v614 = vsel %vm261, %v609, 0
      %616 = vmatpush.bf16.msra.mxu0 0
      %617 = vmatpush.bf16.msra.mxu0 0
      %618 = vmatpush.bf16.msra.mxu0 0
      %619 = vmatpush.bf16.msra.mxu0 0
      %620 = vmatpush.bf16.msra.mxu0 0
      %621 = vmatpush.bf16.msra.mxu0 0
      %622 = vmatpush.bf16.msra.mxu0 0
      %623 = vmatpush.bf16.msra.mxu0 %v614
      %624 = vmatmul.bf16.gmra.mxu0 %v611
      %v625 = vpop.f32.mrf.mxu0
      %v626 = vadd.f32 0.0, %v625
      %v627 = vpop.f32.mrf.mxu0
      %628 = vdwg.mxu0
      %629 = vrot.lane.b32.xlu0 %v202, 104
      %v630 = vpop.permute.xlu0 %629
      %631 = vrot.lane.b32.xlu0 %v203, 104
      %v632 = vpop.permute.xlu0 %631
      %v634 = vsel %vm204, %v630, 0
      %v637 = vsel %vm204, %v632, 0
      %639 = vmatpush.bf16.xpose.msra.mxu0 0
      %640 = vmatpush.bf16.xpose.msra.mxu0 0
      %641 = vmatpush.bf16.xpose.msra.mxu0 0
      %642 = vmatpush.bf16.xpose.msra.mxu0 0
      %643 = vmatpush.bf16.xpose.msra.mxu0 0
      %644 = vmatpush.bf16.xpose.msra.mxu0 0
      %645 = vmatpush.bf16.xpose.msra.mxu0 0
      %646 = vmatpush.bf16.xpose.msra.mxu0 %v637
      %647 = vmatmul.bf16.gmra.mxu0 %v634
      %v648 = vpop.f32.mrf.mxu0
      %v649 = vadd.f32 0.0, %v648
      %v650 = vpop.f32.mrf.mxu0
      %651 = vdwg.mxu0
      %v652 = vsel %vm227, -1e+09, %v649
      %v653 = vsel %vm229, %v652, -inf
      %654 = vmax.xlane.f32.xlu0 %v653
      %v655 = vpop.xlane.xlu0 %654
      %v656 = vsub.f32 %v652, %v655
      %v657 = vmul.f32 %v656, 1.442695
      %v658 = vpow.pop %v657
      %v659 = vsel %vm229, %v658, 0.0
      %660 = vadd.xlane.f32.xlu0 %v659
      %v661 = vpop.xlane.xlu0 %660
      %v662 = vrcp.pop %v661
      %v663 = vmul.f32 %v661, %v662
      %v664 = vsub.f32 1.0, %v663
      %v665 = vmul.f32 %v662, %v664
      %v666 = vadd.f32 %v662, %v665
      %vm667 = vweird.f32 %v661
      %vm668 = vweird.f32 %v662
      %vm669 = vmor %vm667, %vm668
      %v670 = vsel %vm669, %v662, %v666
      %v671 = vand.u32 2147483647, %v661
      %vm672 = vcmp.eq.f32.partialorder %v671, 8.507059e+37
      %v673 = vand.u32 %v661, 2147483648
      %v674 = vor.u32 1.1754944e-38, %v673
      %v675 = vsel %vm672, %v674, %v670
      %v676 = vmul.f32 %v658, %v675
      %v677 = vpack.c.bf16 %v676, %v676
      %678 = vrot.lane.b32.xlu0 %v203, 72
      %v679 = vpop.permute.xlu0 %678
      %v681 = vsel %vm229, %v677, 0
      %v684 = vsel %vm261, %v679, 0
      %686 = vmatpush.bf16.msra.mxu0 0
      %687 = vmatpush.bf16.msra.mxu0 0
      %688 = vmatpush.bf16.msra.mxu0 0
      %689 = vmatpush.bf16.msra.mxu0 0
      %690 = vmatpush.bf16.msra.mxu0 0
      %691 = vmatpush.bf16.msra.mxu0 0
      %692 = vmatpush.bf16.msra.mxu0 0
      %693 = vmatpush.bf16.msra.mxu0 %v684
      %694 = vmatmul.bf16.gmra.mxu0 %v681
      %v695 = vpop.f32.mrf.mxu0
      %v696 = vadd.f32 0.0, %v695
      %v697 = vpop.f32.mrf.mxu0
      %698 = vdwg.mxu0
      %699 = vrot.lane.b32.xlu0 %v202, 100
      %v700 = vpop.permute.xlu0 %699
      %701 = vrot.lane.b32.xlu0 %v203, 100
      %v702 = vpop.permute.xlu0 %701
      %v704 = vsel %vm204, %v700, 0
      %v707 = vsel %vm204, %v702, 0
      %709 = vmatpush.bf16.xpose.msra.mxu0 0
      %710 = vmatpush.bf16.xpose.msra.mxu0 0
      %711 = vmatpush.bf16.xpose.msra.mxu0 0
      %712 = vmatpush.bf16.xpose.msra.mxu0 0
      %713 = vmatpush.bf16.xpose.msra.mxu0 0
      %714 = vmatpush.bf16.xpose.msra.mxu0 0
      %715 = vmatpush.bf16.xpose.msra.mxu0 0
      %716 = vmatpush.bf16.xpose.msra.mxu0 %v707
      %717 = vmatmul.bf16.gmra.mxu0 %v704
      %v718 = vpop.f32.mrf.mxu0
      %v719 = vadd.f32 0.0, %v718
      %v720 = vpop.f32.mrf.mxu0
      %721 = vdwg.mxu0
      %v722 = vsel %vm227, -1e+09, %v719
      %v723 = vsel %vm229, %v722, -inf
      %724 = vmax.xlane.f32.xlu0 %v723
      %v725 = vpop.xlane.xlu0 %724
      %v726 = vsub.f32 %v722, %v725
      %v727 = vmul.f32 %v726, 1.442695
      %v728 = vpow.pop %v727
      %v729 = vsel %vm229, %v728, 0.0
      %730 = vadd.xlane.f32.xlu0 %v729
      %v731 = vpop.xlane.xlu0 %730
      %v732 = vrcp.pop %v731
      %v733 = vmul.f32 %v731, %v732
      %v734 = vsub.f32 1.0, %v733
      %v735 = vmul.f32 %v732, %v734
      %v736 = vadd.f32 %v732, %v735
      %vm737 = vweird.f32 %v731
      %vm738 = vweird.f32 %v732
      %vm739 = vmor %vm737, %vm738
      %v740 = vsel %vm739, %v732, %v736
      %v741 = vand.u32 2147483647, %v731
      %vm742 = vcmp.eq.f32.partialorder %v741, 8.507059e+37
      %v743 = vand.u32 %v731, 2147483648
      %v744 = vor.u32 1.1754944e-38, %v743
      %v745 = vsel %vm742, %v744, %v740
      %v746 = vmul.f32 %v728, %v745
      %v747 = vpack.c.bf16 %v746, %v746
      %748 = vrot.lane.b32.xlu0 %v203, 68
      %v749 = vpop.permute.xlu0 %748
      %v751 = vsel %vm229, %v747, 0
      %v754 = vsel %vm261, %v749, 0
      %756 = vmatpush.bf16.msra.mxu0 0
      %757 = vmatpush.bf16.msra.mxu0 0
      %758 = vmatpush.bf16.msra.mxu0 0
      %759 = vmatpush.bf16.msra.mxu0 0
      %760 = vmatpush.bf16.msra.mxu0 0
      %761 = vmatpush.bf16.msra.mxu0 0
      %762 = vmatpush.bf16.msra.mxu0 0
      %763 = vmatpush.bf16.msra.mxu0 %v754
      %764 = vmatmul.bf16.gmra.mxu0 %v751
      %v765 = vpop.f32.mrf.mxu0
      %v766 = vadd.f32 0.0, %v765
      %v767 = vpop.f32.mrf.mxu0
      %768 = vdwg.mxu0
      %770 = vrot.lane.b32.xlu0 %v346, 4
      %v771 = vpop.permute.xlu0 %770
      %774 = vrot.lane.b32.xlu0 %v416, 8
      %v775 = vpop.permute.xlu0 %774
      %778 = vrot.lane.b32.xlu0 %v486, 12
      %v779 = vpop.permute.xlu0 %778
      %782 = vrot.lane.b32.xlu0 %v556, 16
      %v783 = vpop.permute.xlu0 %782
      %786 = vrot.lane.b32.xlu0 %v626, 20
      %v787 = vpop.permute.xlu0 %786
      %790 = vrot.lane.b32.xlu0 %v696, 24
      %v791 = vpop.permute.xlu0 %790
      %794 = vrot.lane.b32.xlu0 %v766, 28
      %v795 = vpop.permute.xlu0 %794
      %v797 = vsel %vm204, %v275, %v771
      %v798 = vsel %vm229, %v797, %v775
      %vm799 = vcmask 97280
      %v800 = vsel %vm799, %v798, %v779
      %vm801 = vcmask 130048
      %v802 = vsel %vm801, %v800, %v783
      %vm803 = vcmask 162816
      %v804 = vsel %vm803, %v802, %v787
      %vm805 = vcmask 195584
      %v806 = vsel %vm805, %v804, %v791
      %vm807 = vcmask 228352
      %v808 = vsel %vm807, %v806, %v795
      %vm809 = vcmask 261120
      %810 = vst.msk [vmem:[%s196] sm:$0xff] %vm809, %v808
      %p811 = scmp.lt.s32.totalorder %s14, 1
      %s812 = scalar_select %p811, %s14, 1
      %s813 = smul.addr %s812, 8
      %s814 = scalar_lea.vmem %s3, %s813
      // Predicated region
      $region33: #{friday_transformer.38} parent=31 // pred_check
        %p815 = pneg %p110
      $region34: #{friday_transformer.38} parent=31 // pred_check_branch
        %817 = sbr.rel (%p815) target = $region36
      $region35: #{friday_transformer.38} parent=31 // pred_region
        _
      $region36: #{friday_transformer.38} parent=31 // pred_fallthru
        _
    $region32: #{friday_transformer.38} parent=5 // pred_fallthru
      _
    %p818 = scmp.le.s32.totalorder 2, %s9
    // Predicated region
    $region37: #{friday_transformer.38} parent=5 // pred_check
      %p819 = pneg %p818
    $region38: #{friday_transformer.38} parent=5 // pred_check_branch
      %821 = sbr.rel (%p819) target = $region40
    $region39: #{friday_transformer.38} parent=5 // pred_region
      %s822 = ssub.s32 %s9, 2
      // Predicated region
      $region41: #{friday_transformer.38} parent=39 // pred_check
        %p823 = pneg %p116
      $region42: #{friday_transformer.38} parent=39 // pred_check_branch
        %825 = sbr.rel (%p823) target = $region44
      $region43: #{friday_transformer.38} parent=39 // pred_region
        %p826 = scmp.lt.s32.totalorder %s15, 1
        %s827 = scalar_select %p826, %s15, 1
        %s828 = smul.addr %s827, 8
        %s829 = scalar_lea.vmem %s3, %s828
      $region44: #{friday_transformer.38} parent=39 // pred_fallthru
        _
    $region40: #{friday_transformer.38} parent=5 // pred_fallthru
      _
  $region6: #{friday_transformer.38} parent=0 // loop_footer
    %s13 = sadd.s32 1, %s9
  $region7: #{friday_transformer.38} parent=0 // loop_footer_branch
    %8 = sbr.rel target = $region3
  $region8: #{friday_transformer.38} parent=0 // loop_exit
    _

// kernel: friday_transformer.45
$region0: #{friday_transformer.45}
  #allocation0 [shape = 'u32[]', space=smem, size = 0x4, offset = 0x4, fixed_abs, tag = 'smem constant byte address 0x4 - core index']
  #allocation1 [shape = 'u32[72,128]{1,0:T(1,128)}', space=vmem, size = 0x9000, scoped, tag = 'internal scratch']
  #allocation2 [shape = 'f32[16,64]{1,0:T(8,128)}', space=vmem, size = 0x2000, scoped, tag = 'scratch operand']
  %s0 = inlined_call_operand.vmem [shape: f32[16,32], index: 0, kind: input, shape index: {}]
  %s1 = inlined_call_operand.vmem [shape: bf16[32,64], index: 1, kind: input, shape index: {}]
  %s2 = inlined_call_operand.hbm [shape: f32[1,64], index: 2, kind: input, shape index: {}]
  %s3 = inlined_call_operand.vmem [shape: f32[16,64], index: 3, kind: output, shape index: {}]
  %s4 = sld [smem:[#allocation0]]
  $region34: #{friday_transformer.45} parent=0
    _
  %s6 = ssub.s32 1, %s4
  %s7 = scalar_select 0, %s6, %s4
  $region1: #{friday_transformer.45} parent=0
    #allocation3 [shape = 'u8[512]{0}', space=vmem, size = 0x400, scoped, tag = 'input window, operand 2, single buffered']
    #allocation4 [shape = 's32[1]{0}', space=sflag, size = 0x4, scoped, tag = 'scoped memory for friday_transformer.45']
    %8 = vsyncpa [#allocation4], 0
    // Predicated region
    $region2: #{friday_transformer.45} parent=1 // pred_check
      _
    $region3: #{friday_transformer.45} parent=1 // pred_check_branch
      %10 = sbr.rel (0) target = $region5
    $region4: #{friday_transformer.45} parent=1 // pred_region
      _
    $region5: #{friday_transformer.45} parent=1 // pred_fallthru
      _
    // Predicated region
    $region6: #{friday_transformer.45} parent=1 // pred_check
      _
    $region7: #{friday_transformer.45} parent=1 // pred_check_branch
      %12 = sbr.rel (0) target = $region9
    $region8: #{friday_transformer.45} parent=1 // pred_region
      _
    $region9: #{friday_transformer.45} parent=1 // pred_fallthru
      _
    // Predicated region
    $region10: #{friday_transformer.45} parent=1 // pred_check
      _
    $region11: #{friday_transformer.45} parent=1 // pred_check_branch
      %14 = sbr.rel (0) target = $region13
    $region12: #{friday_transformer.45} parent=1 // pred_region
      %16 = vsyncadd [#allocation4], 0
      %s18 = sshll.u32 %s2, 4
      %s19 = int_to_ptr.hbm [resolvable:$true] %s18
      %s20 = sshll.u32 [#allocation3], 4
      %s21 = int_to_ptr.vmem [resolvable:$true] %s20
      %23 = dma.hbm_to_vmem [thread:$0]  %s19, 16, %s21, [#allocation4]
    $region13: #{friday_transformer.45} parent=1 // pred_fallthru
      _
    // Predicated region
    $region14: #{friday_transformer.45} parent=1 // pred_check
      _
    $region15: #{friday_transformer.45} parent=1 // pred_check_branch
      %25 = sbr.rel (0) target = $region17
    $region16: #{friday_transformer.45} parent=1 // pred_region
      %27 = dma.done [#allocation4], 16
    $region17: #{friday_transformer.45} parent=1 // pred_fallthru
      _
    %p29 = scmp.eq.s32.totalorder 0, 0
    // Predicated region
    $region18: #{friday_transformer.45} parent=1 // pred_check
      %p30 = pneg %p29
    $region19: #{friday_transformer.45} parent=1 // pred_check_branch
      %32 = sbr.rel (%p30) target = $region21
    $region20: #{friday_transformer.45} parent=1 // pred_region
      %vm33 = vcmask 523264
      %34 = vst.msk [vmem:[#allocation2] sm:$0xff] %vm33, 0.0
      %35 = vst.msk [vmem:[#allocation2 + $0x8] sm:$0xff] %vm33, 0.0
    $region21: #{friday_transformer.45} parent=1 // pred_fallthru
      _
    %v36 = vld [vmem:[#allocation2] sm:$0xff]
    %v37 = vld [vmem:[#allocation2 + $0x8] sm:$0xff]
    %v38 = vld [vmem:[%s0] sm:$0xff]
    %v39 = vld [vmem:[%s0 + $0x8] sm:$0xff]
    %v40 = vpack.c.bf16 %v39, %v38
    %v41 = vld [vmem:[%s1] sm:$0xf]
    %v42 = vld [vmem:[%s1 + $0x4] sm:$0xf]
    %v43 = vld [vmem:[%s1 + $0x8] sm:$0xf]
    %v44 = vld [vmem:[%s1 + $0xc] sm:$0xf]
    %v49 = vunpack.c.l.b16 %v41
    %v50 = vunpack.c.l.b16 %v42
    %v51 = vunpack.c.l.b16 %v43
    %v52 = vunpack.c.l.b16 %v44
    %v53 = vpack.c.b16 %v50, %v49
    %v54 = vpack.c.b16 %v52, %v51
    %vm57 = vcmask 261120
    %v59 = vsel %vm57, %v40, 0
    %61 = vmatpush.bf16.msra.mxu0 0
    %62 = vmatpush.bf16.msra.mxu0 0
    %63 = vmatpush.bf16.msra.mxu0 0
    %64 = vmatpush.bf16.msra.mxu0 0
    %65 = vmatpush.bf16.msra.mxu0 0
    %66 = vmatpush.bf16.msra.mxu0 0
    %67 = vmatpush.bf16.msra.mxu0 %v54
    %68 = vmatpush.bf16.msra.mxu0 %v53
    %69 = vmatmul.bf16.gmra.mxu0 %v59
    %v70 = vpop.f32.mrf.mxu0
    %v71 = vadd.f32 0.0, %v70
    %v72 = vpop.f32.mrf.mxu0
    %v73 = vadd.f32 0.0, %v72
    %74 = vdwg.mxu0
    %v75 = vadd.f32 %v36, %v71
    %v76 = vadd.f32 %v37, %v73
    %vm77 = vcmask 523264
    %78 = vst.msk [vmem:[#allocation2] sm:$0xff] %vm77, %v75
    %79 = vst.msk [vmem:[#allocation2 + $0x8] sm:$0xff] %vm77, %v76
    // Predicated region
    $region22: #{friday_transformer.45} parent=1 // pred_check
      %p80 = pneg %p29
    $region23: #{friday_transformer.45} parent=1 // pred_check_branch
      %82 = sbr.rel (%p80) target = $region25
    $region24: #{friday_transformer.45} parent=1 // pred_region
      %v83 = vld [vmem:[#allocation2] sm:$0xff]
      %v84 = vld [vmem:[#allocation2 + $0x8] sm:$0xff]
      %v85 = vld [vmem:[#allocation3] sm:$0x1]
      %v87 = vperm.slane %v85, 0
      %v89 = vadd.f32 %v83, %v87
      %v90 = vadd.f32 %v84, %v87
      %91 = vst.msk [vmem:[%s3] sm:$0xff] %vm77, %v89
      %92 = vst.msk [vmem:[%s3 + $0x8] sm:$0xff] %vm77, %v90
    $region25: #{friday_transformer.45} parent=1 // pred_fallthru
      _
    // Predicated region
    $region26: #{friday_transformer.45} parent=1 // pred_check
      _
    $region27: #{friday_transformer.45} parent=1 // pred_check_branch
      %94 = sbr.rel (0) target = $region29
    $region28: #{friday_transformer.45} parent=1 // pred_region
      _
    $region29: #{friday_transformer.45} parent=1 // pred_fallthru
      _
    // Predicated region
    $region30: #{friday_transformer.45} parent=1 // pred_check
      _
    $region31: #{friday_transformer.45} parent=1 // pred_check_branch
      %96 = sbr.rel (0) target = $region33
    $region32: #{friday_transformer.45} parent=1 // pred_region
      _
    $region33: #{friday_transformer.45} parent=1 // pred_fallthru
      _
    %97 = vsyncpa [#allocation4], 1

// kernel: friday_transformer.49
$region0: #{friday_transformer.49}
  #allocation0 [shape = 'u32[]', space=smem, size = 0x4, offset = 0x4, fixed_abs, tag = 'smem constant byte address 0x4 - core index']
  #allocation1 [shape = 'u32[72,128]{1,0:T(1,128)}', space=vmem, size = 0x9000, scoped, tag = 'internal scratch']
  #allocation2 [shape = 'f32[16,128]{1,0:T(8,128)}', space=vmem, size = 0x2000, scoped, tag = 'scratch operand']
  %s0 = inlined_call_operand.vmem [shape: f32[16,32], index: 0, kind: input, shape index: {}]
  %s1 = inlined_call_operand.vmem [shape: bf16[32,128], index: 1, kind: input, shape index: {}]
  %s2 = inlined_call_operand.vmem [shape: f32[1,128], index: 2, kind: input, shape index: {}]
  %s3 = inlined_call_operand.vmem [shape: f32[16,128], index: 3, kind: output, shape index: {}]
  %s4 = sld [smem:[#allocation0]]
  $region30: #{friday_transformer.49} parent=0
    _
  %s6 = ssub.s32 1, %s4
  %s7 = scalar_select 0, %s6, %s4
  // Predicated region
  $region2: #{friday_transformer.49} parent=0 // pred_check
    _
  $region3: #{friday_transformer.49} parent=0 // pred_check_branch
    %9 = sbr.rel (0) target = $region5
  $region4: #{friday_transformer.49} parent=0 // pred_region
    _
  $region5: #{friday_transformer.49} parent=0 // pred_fallthru
    _
  // Predicated region
  $region6: #{friday_transformer.49} parent=0 // pred_check
    _
  $region7: #{friday_transformer.49} parent=0 // pred_check_branch
    %11 = sbr.rel (0) target = $region9
  $region8: #{friday_transformer.49} parent=0 // pred_region
    _
  $region9: #{friday_transformer.49} parent=0 // pred_fallthru
    _
  // Predicated region
  $region10: #{friday_transformer.49} parent=0 // pred_check
    _
  $region11: #{friday_transformer.49} parent=0 // pred_check_branch
    %13 = sbr.rel (0) target = $region13
  $region12: #{friday_transformer.49} parent=0 // pred_region
    _
  $region13: #{friday_transformer.49} parent=0 // pred_fallthru
    _
  %p15 = scmp.eq.s32.totalorder 0, 0
  // Predicated region
  $region14: #{friday_transformer.49} parent=0 // pred_check
    %p16 = pneg %p15
  $region15: #{friday_transformer.49} parent=0 // pred_check_branch
    %18 = sbr.rel (%p16) target = $region17
  $region16: #{friday_transformer.49} parent=0 // pred_region
    %19 = vst [vmem:[#allocation2] sm:$0xff] 0.0
    %20 = vst [vmem:[#allocation2 + $0x8] sm:$0xff] 0.0
  $region17: #{friday_transformer.49} parent=0 // pred_fallthru
    _
  %v21 = vld [vmem:[#allocation2] sm:$0xff]
  %v22 = vld [vmem:[#allocation2 + $0x8] sm:$0xff]
  %v23 = vld [vmem:[%s0] sm:$0xff]
  %v24 = vld [vmem:[%s0 + $0x8] sm:$0xff]
  %v25 = vpack.c.bf16 %v24, %v23
  %v26 = vld [vmem:[%s1] sm:$0xf]
  %v27 = vld [vmem:[%s1 + $0x4] sm:$0xf]
  %v28 = vld [vmem:[%s1 + $0x8] sm:$0xf]
  %v29 = vld [vmem:[%s1 + $0xc] sm:$0xf]
  %v34 = vunpack.c.l.b16 %v26
  %v35 = vunpack.c.l.b16 %v27
  %v36 = vunpack.c.l.b16 %v28
  %v37 = vunpack.c.l.b16 %v29
  %v38 = vpack.c.b16 %v35, %v34
  %v39 = vpack.c.b16 %v37, %v36
  %vm42 = vcmask 261120
  %v44 = vsel %vm42, %v25, 0
  %46 = vmatpush.bf16.msra.mxu0 0
  %47 = vmatpush.bf16.msra.mxu0 0
  %48 = vmatpush.bf16.msra.mxu0 0
  %49 = vmatpush.bf16.msra.mxu0 0
  %50 = vmatpush.bf16.msra.mxu0 0
  %51 = vmatpush.bf16.msra.mxu0 0
  %52 = vmatpush.bf16.msra.mxu0 %v39
  %53 = vmatpush.bf16.msra.mxu0 %v38
  %54 = vmatmul.bf16.gmra.mxu0 %v44
  %v55 = vpop.f32.mrf.mxu0
  %v56 = vadd.f32 0.0, %v55
  %v57 = vpop.f32.mrf.mxu0
  %v58 = vadd.f32 0.0, %v57
  %59 = vdwg.mxu0
  %v60 = vadd.f32 %v21, %v56
  %v61 = vadd.f32 %v22, %v58
  %62 = vst [vmem:[#allocation2] sm:$0xff] %v60
  %63 = vst [vmem:[#allocation2 + $0x8] sm:$0xff] %v61
  // Predicated region
  $region18: #{friday_transformer.49} parent=0 // pred_check
    %p64 = pneg %p15
  $region19: #{friday_transformer.49} parent=0 // pred_check_branch
    %66 = sbr.rel (%p64) target = $region21
  $region20: #{friday_transformer.49} parent=0 // pred_region
    %v67 = vld [vmem:[#allocation2] sm:$0xff]
    %v68 = vld [vmem:[#allocation2 + $0x8] sm:$0xff]
    %v69 = vld [vmem:[%s2] sm:$0x1]
    %v71 = vperm.slane %v69, 0
    %v73 = vadd.f32 %v67, %v71
    %v74 = vadd.f32 %v68, %v71
    %75 = vst [vmem:[%s3] sm:$0xff] %v73
    %76 = vst [vmem:[%s3 + $0x8] sm:$0xff] %v74
  $region21: #{friday_transformer.49} parent=0 // pred_fallthru
    _
  // Predicated region
  $region22: #{friday_transformer.49} parent=0 // pred_check
    _
  $region23: #{friday_transformer.49} parent=0 // pred_check_branch
    %78 = sbr.rel (0) target = $region25
  $region24: #{friday_transformer.49} parent=0 // pred_region
    _
  $region25: #{friday_transformer.49} parent=0 // pred_fallthru
    _
  // Predicated region
  $region26: #{friday_transformer.49} parent=0 // pred_check
    _
  $region27: #{friday_transformer.49} parent=0 // pred_check_branch
    %80 = sbr.rel (0) target = $region29
  $region28: #{friday_transformer.49} parent=0 // pred_region
    _
  $region29: #{friday_transformer.49} parent=0 // pred_fallthru
    _

// kernel: friday_transformer.47
$region0: #{friday_transformer.47}
  #allocation0 [shape = 'u32[]', space=smem, size = 0x4, offset = 0x4, fixed_abs, tag = 'smem constant byte address 0x4 - core index']
  #allocation1 [shape = 'u32[72,128]{1,0:T(1,128)}', space=vmem, size = 0x9000, scoped, tag = 'internal scratch']
  %s0 = inlined_call_operand.vmem [shape: f32[16,32], index: 0, kind: input, shape index: {}]
  %s1 = inlined_call_operand.vmem [shape: bf16[32,32], index: 1, kind: input, shape index: {}]
  %s2 = inlined_call_operand.hbm [shape: f32[1,32], index: 2, kind: input, shape index: {}]
  %s3 = inlined_call_operand.vmem [shape: f32[16,32], index: 3, kind: input, shape index: {}]
  %s4 = inlined_call_operand.hbm [shape: f32[1,32], index: 4, kind: input, shape index: {}]
  %s5 = inlined_call_operand.hbm [shape: f32[1,32], index: 5, kind: input, shape index: {}]
  %s6 = inlined_call_operand.vmem [shape: f32[16,32], index: 6, kind: output, shape index: {}]
  %s7 = sld [smem:[#allocation0]]
  $region46: #{friday_transformer.47} parent=0
    _
  %s9 = ssub.s32 1, %s7
  %s10 = scalar_select 0, %s9, %s7
  $region1: #{friday_transformer.47} parent=0
    #allocation2 [shape = 'u8[512]{0}', space=vmem, size = 0x400, scoped, tag = 'input window, operand 2, single buffered']
    #allocation3 [shape = 's32[1]{0}', space=sflag, size = 0x4, scoped, tag = 'scoped memory for friday_transformer.47']
    #allocation4 [shape = 'u8[512]{0}', space=vmem, size = 0x400, scoped, tag = 'input window, operand 4, single buffered']
    #allocation5 [shape = 's32[1]{0}', space=sflag, size = 0x4, scoped, tag = 'scoped memory for friday_transformer.47']
    #allocation6 [shape = 'u8[512]{0}', space=vmem, size = 0x400, scoped, tag = 'input window, operand 5, single buffered']
    %11 = vsyncpa [#allocation3], 0
    %12 = vsyncpa [#allocation5], 0
    // Predicated region
    $region2: #{friday_transformer.47} parent=1 // pred_check
      _
    $region3: #{friday_transformer.47} parent=1 // pred_check_branch
      %14 = sbr.rel (0) target = $region5
    $region4: #{friday_transformer.47} parent=1 // pred_region
      _
    $region5: #{friday_transformer.47} parent=1 // pred_fallthru
      _
    // Predicated region
    $region6: #{friday_transformer.47} parent=1 // pred_check
      _
    $region7: #{friday_transformer.47} parent=1 // pred_check_branch
      %16 = sbr.rel (0) target = $region9
    $region8: #{friday_transformer.47} parent=1 // pred_region
      _
    $region9: #{friday_transformer.47} parent=1 // pred_fallthru
      _
    // Predicated region
    $region10: #{friday_transformer.47} parent=1 // pred_check
      _
    $region11: #{friday_transformer.47} parent=1 // pred_check_branch
      %18 = sbr.rel (0) target = $region13
    $region12: #{friday_transformer.47} parent=1 // pred_region
      %20 = vsyncadd [#allocation3], 0
      %s22 = sshll.u32 %s2, 4
      %s23 = int_to_ptr.hbm [resolvable:$true] %s22
      %s24 = sshll.u32 [#allocation2], 4
      %s25 = int_to_ptr.vmem [resolvable:$true] %s24
      %27 = dma.hbm_to_vmem [thread:$0]  %s23, 16, %s25, [#allocation3]
    $region13: #{friday_transformer.47} parent=1 // pred_fallthru
      _
    // Predicated region
    $region14: #{friday_transformer.47} parent=1 // pred_check
      _
    $region15: #{friday_transformer.47} parent=1 // pred_check_branch
      %29 = sbr.rel (0) target = $region17
    $region16: #{friday_transformer.47} parent=1 // pred_region
      _
    $region17: #{friday_transformer.47} parent=1 // pred_fallthru
      _
    // Predicated region
    $region18: #{friday_transformer.47} parent=1 // pred_check
      _
    $region19: #{friday_transformer.47} parent=1 // pred_check_branch
      %31 = sbr.rel (0) target = $region21
    $region20: #{friday_transformer.47} parent=1 // pred_region
      %33 = vsyncadd [#allocation5], 0
      %s35 = sshll.u32 %s4, 4
      %s36 = int_to_ptr.hbm [resolvable:$true] %s35
      %s37 = sshll.u32 [#allocation4], 4
      %s38 = int_to_ptr.vmem [resolvable:$true] %s37
      %40 = dma.hbm_to_vmem [thread:$0]  %s36, 16, %s38, [#allocation5]
    $region21: #{friday_transformer.47} parent=1 // pred_fallthru
      _
    // Predicated region
    $region22: #{friday_transformer.47} parent=1 // pred_check
      _
    $region23: #{friday_transformer.47} parent=1 // pred_check_branch
      %42 = sbr.rel (0) target = $region25
    $region24: #{friday_transformer.47} parent=1 // pred_region
      %44 = vsyncadd [#allocation5], 0
      %s46 = sshll.u32 %s5, 4
      %s47 = int_to_ptr.hbm [resolvable:$true] %s46
      %s48 = sshll.u32 [#allocation6], 4
      %s49 = int_to_ptr.vmem [resolvable:$true] %s48
      %51 = dma.hbm_to_vmem [thread:$0]  %s47, 16, %s49, [#allocation5]
    $region25: #{friday_transformer.47} parent=1 // pred_fallthru
      _
    // Predicated region
    $region26: #{friday_transformer.47} parent=1 // pred_check
      _
    $region27: #{friday_transformer.47} parent=1 // pred_check_branch
      %53 = sbr.rel (0) target = $region29
    $region28: #{friday_transformer.47} parent=1 // pred_region
      %55 = dma.done [#allocation3], 16
    $region29: #{friday_transformer.47} parent=1 // pred_fallthru
      _
    // Predicated region
    $region30: #{friday_transformer.47} parent=1 // pred_check
      _
    $region31: #{friday_transformer.47} parent=1 // pred_check_branch
      %57 = sbr.rel (0) target = $region33
    $region32: #{friday_transformer.47} parent=1 // pred_region
      %59 = dma.done [#allocation5], 16
    $region33: #{friday_transformer.47} parent=1 // pred_fallthru
      _
    // Predicated region
    $region34: #{friday_transformer.47} parent=1 // pred_check
      _
    $region35: #{friday_transformer.47} parent=1 // pred_check_branch
      %61 = sbr.rel (0) target = $region37
    $region36: #{friday_transformer.47} parent=1 // pred_region
      %63 = dma.done [#allocation5], 16
    $region37: #{friday_transformer.47} parent=1 // pred_fallthru
      _
    %v65 = vld [vmem:[%s0] sm:$0xff]
    %v66 = vld [vmem:[%s0 + $0x8] sm:$0xff]
    %v67 = vpack.c.bf16 %v66, %v65
    %v68 = vld [vmem:[%s1] sm:$0xf]
    %v69 = vld [vmem:[%s1 + $0x4] sm:$0xf]
    %v70 = vld [vmem:[%s1 + $0x8] sm:$0xf]
    %v71 = vld [vmem:[%s1 + $0xc] sm:$0xf]
    %v72 = vld [vmem:[#allocation2] sm:$0x1]
    %v74 = vperm.slane %v72, 0
    %v80 = vunpack.c.l.b16 %v68
    %v81 = vunpack.c.l.b16 %v69
    %v82 = vunpack.c.l.b16 %v70
    %v83 = vunpack.c.l.b16 %v71
    %v84 = vpack.c.b16 %v81, %v80
    %v85 = vpack.c.b16 %v83, %v82
    %vm88 = vcmask 261120
    %v90 = vsel %vm88, %v67, 0
    %92 = vmatpush.bf16.msra.mxu0 0
    %93 = vmatpush.bf16.msra.mxu0 0
    %94 = vmatpush.bf16.msra.mxu0 0
    %95 = vmatpush.bf16.msra.mxu0 0
    %96 = vmatpush.bf16.msra.mxu0 0
    %97 = vmatpush.bf16.msra.mxu0 0
    %98 = vmatpush.bf16.msra.mxu0 %v85
    %99 = vmatpush.bf16.msra.mxu0 %v84
    %100 = vmatmul.bf16.gmra.mxu0 %v90
    %v101 = vpop.f32.mrf.mxu0
    %v102 = vadd.f32 %v74, %v101
    %v103 = vpop.f32.mrf.mxu0
    %v104 = vadd.f32 %v74, %v103
    %105 = vdwg.mxu0
    %v106 = vld [vmem:[%s3] sm:$0xff]
    %v107 = vld [vmem:[%s3 + $0x8] sm:$0xff]
    %v108 = vadd.f32 %v106, %v102
    %v109 = vadd.f32 %v107, %v104
    %v110 = vsel %vm88, %v108, 0.0
    %111 = vadd.xlane.f32.xlu0 %v110
    %v112 = vpop.xlane.xlu0 %111
    %v113 = vsel %vm88, %v109, 0.0
    %114 = vadd.xlane.f32.xlu0 %v113
    %v115 = vpop.xlane.xlu0 %114
    %v116 = vrcp.pop 32.0
    %v117 = vmul.f32 32.0, %v116
    %v118 = vsub.f32 1.0, %v117
    %v119 = vmul.f32 %v116, %v118
    %v120 = vadd.f32 %v116, %v119
    %vm121 = vweird.f32 %v116
    %v122 = vsel %vm121, %v116, %v120
    %v123 = vmul.f32 %v112, %v122
    %v124 = vmul.f32 %v115, %v122
    %v125 = vsub.f32 %v108, %v123
    %v126 = vsub.f32 %v109, %v124
    %v127 = vmul.f32 %v125, %v125
    %v128 = vmul.f32 %v126, %v126
    %v129 = vsel %vm88, %v127, 0.0
    %130 = vadd.xlane.f32.xlu0 %v129
    %v131 = vpop.xlane.xlu0 %130
    %v132 = vsel %vm88, %v128, 0.0
    %133 = vadd.xlane.f32.xlu0 %v132
    %v134 = vpop.xlane.xlu0 %133
    %v135 = vmul.f32 %v131, %v122
    %v136 = vmul.f32 %v134, %v122
    %v137 = vadd.f32 %v135, 1e-05
    %v138 = vadd.f32 %v136, 1e-05
    %v139 = vrsqrt.pop %v137
    %v140 = vmul.f32 %v139, %v137
    %v141 = vmul.f32 %v140, %v139
    %v142 = vmul.f32 0.5, %v141
    %v143 = vsub.f32 1.5, %v142
    %v144 = vmul.f32 %v139, %v143
    %vm145 = vweird.f32 %v137
    %vm146 = vweird.f32 %v139
    %vm147 = vmor %vm145, %vm146
    %v148 = vsel %vm147, %v139, %v144
    %v149 = vrsqrt.pop %v138
    %v150 = vmul.f32 %v149, %v138
    %v151 = vmul.f32 %v150, %v149
    %v152 = vmul.f32 0.5, %v151
    %v153 = vsub.f32 1.5, %v152
    %v154 = vmul.f32 %v149, %v153
    %vm155 = vweird.f32 %v138
    %vm156 = vweird.f32 %v149
    %vm157 = vmor %vm155, %vm156
    %v158 = vsel %vm157, %v149, %v154
    %v159 = vmul.f32 %v125, %v148
    %v160 = vmul.f32 %v126, %v158
    %v161 = vld [vmem:[#allocation4] sm:$0x1]
    %v163 = vperm.slane %v161, 0
    %v165 = vmul.f32 %v159, %v163
    %v166 = vmul.f32 %v160, %v163
    %v167 = vld [vmem:[#allocation6] sm:$0x1]
    %v169 = vperm.slane %v167, 0
    %v171 = vadd.f32 %v165, %v169
    %v172 = vadd.f32 %v166, %v169
    %173 = vst.msk [vmem:[%s6] sm:$0xff] %vm88, %v171
    %174 = vst.msk [vmem:[%s6 + $0x8] sm:$0xff] %vm88, %v172
    // Predicated region
    $region38: #{friday_transformer.47} parent=1 // pred_check
      _
    $region39: #{friday_transformer.47} parent=1 // pred_check_branch
      %176 = sbr.rel (0) target = $region41
    $region40: #{friday_transformer.47} parent=1 // pred_region
      _
    $region41: #{friday_transformer.47} parent=1 // pred_fallthru
      _
    // Predicated region
    $region42: #{friday_transformer.47} parent=1 // pred_check
      _
    $region43: #{friday_transformer.47} parent=1 // pred_check_branch
      %178 = sbr.rel (0) target = $region45
    $region44: #{friday_transformer.47} parent=1 // pred_region
      _
    $region45: #{friday_transformer.47} parent=1 // pred_fallthru
      _
    %179 = vsyncpa [#allocation3], 1
    %180 = vsyncpa [#allocation5], 1

</llo_original>
